<compile_context>
chip_gen: v7x
topology: tpu7x:2x2x1
jax: 0.10.0
libtpu: 0.0.40
codegen_flags: <defaults>
</compile_context>

<pallas_src>
import functools

import jax
import jax.numpy as jnp
from jax.experimental import pallas as pl
from jax.experimental.pallas import tpu as pltpu


# ----------------------------------------------------------------------------
# Pallas kernel: tiled GEMM + bias + activation (used for convs via im2col
# and for the fully-connected layers).
# ----------------------------------------------------------------------------
def _gemm_bias_act_kernel(x_ref, w_ref, b_ref, o_ref, acc_ref, *, activation):
    @pl.when(pl.program_id(2) == 0)
    def _init():
        acc_ref[...] = jnp.zeros_like(acc_ref)

    acc_ref[...] += jnp.dot(x_ref[...], w_ref[...],
                            preferred_element_type=jnp.float32)

    @pl.when(pl.program_id(2) == pl.num_programs(2) - 1)
    def _finish():
        r = acc_ref[...] + b_ref[...]
        if activation == "relu":
            r = jnp.maximum(r, 0.0)
        elif activation == "sigmoid":
            r = 1.0 / (1.0 + jnp.exp(-r))
        o_ref[...] = r.astype(o_ref.dtype)


def _pick_tile(dim, candidates):
    for c in candidates:
        if dim % c == 0:
            return c
    return dim


def gemm_bias_act(x, w, b, activation="none"):
    """(M,K) @ (K,N) + b then activation; f32 accumulation, lane-dense store."""
    M, K = x.shape
    Kw, N = w.shape
    assert K == Kw, (K, Kw)
    tm = _pick_tile(M, (256, 128, 64, 32, 16, 8))
    tn = _pick_tile(N, (256, 128))
    tk = _pick_tile(K, (512, 384, 256, 128))
    grid = (M // tm, N // tn, K // tk)
    kernel = functools.partial(_gemm_bias_act_kernel, activation=activation)
    return pl.pallas_call(
        kernel,
        out_shape=jax.ShapeDtypeStruct((M, N), jnp.float32),
        grid_spec=pltpu.PrefetchScalarGridSpec(
            num_scalar_prefetch=0,
            grid=grid,
            in_specs=[
                pl.BlockSpec((tm, tk), lambda i, j, k: (i, k)),
                pl.BlockSpec((tk, tn), lambda i, j, k: (k, j)),
                pl.BlockSpec((1, tn), lambda i, j, k: (0, j)),
            ],
            out_specs=pl.BlockSpec((tm, tn), lambda i, j, k: (i, j)),
            scratch_shapes=[pltpu.VMEM((tm, tn), jnp.float32)],
        ),
        compiler_params=pltpu.CompilerParams(
            dimension_semantics=("parallel", "parallel", "arbitrary")),
    )(x, w, b.reshape(1, N))


# ----------------------------------------------------------------------------
# Layer wrappers
# ----------------------------------------------------------------------------
def _round_up(x, m):
    return ((x + m - 1) // m) * m


def _im2col_3x3_same(x_bhwc, k_pad):
    """3x3 SAME patches -> (B*H*W, k_pad), K zero-padded to k_pad (lane-dense)."""
    B, H, W, C = x_bhwc.shape
    xp = jnp.pad(x_bhwc, ((0, 0), (1, 1), (1, 1), (0, 0)))
    cols = [xp[:, kh:kh + H, kw:kw + W, :]
            for kh in range(3) for kw in range(3)]
    patches = jnp.concatenate(cols, axis=-1).reshape(B * H * W, 9 * C)
    if k_pad > 9 * C:
        patches = jnp.pad(patches, ((0, 0), (0, k_pad - 9 * C)))
    return patches


def conv3x3_relu(x_bhwc, w_gemm, b_pad):
    """Conv2d(k=3, pad=1) + ReLU as a single im2col GEMM. NHWC in/out."""
    B, H, W, _ = x_bhwc.shape
    k_pad, n_pad = w_gemm.shape
    patches = _im2col_3x3_same(x_bhwc, k_pad)
    y = gemm_bias_act(patches, w_gemm, b_pad, activation="relu")
    return y.reshape(B, H, W, n_pad)


def maxpool2x2(x_bhwc):
    # TODO(synk): MaxPool2d(2,2) is a memory-bound reshape+max; kept as an XLA
    # wrapper op rather than a dedicated Pallas kernel.
    B, H, W, C = x_bhwc.shape
    return x_bhwc.reshape(B, H // 2, 2, W // 2, 2, C).max(axis=(2, 4))


# ----------------------------------------------------------------------------
# Parameter preparation (PyTorch layouts -> lane-dense GEMM layouts)
# ----------------------------------------------------------------------------
def _conv_w_to_gemm(w_oihw, cin_pad, cout_pad):
    Cout, Cin, KH, KW = w_oihw.shape
    w = w_oihw
    if cin_pad > Cin:
        w = jnp.pad(w, ((0, 0), (0, cin_pad - Cin), (0, 0), (0, 0)))
    # OIHW -> (kh, kw, cin) x cout, matching the im2col concat order.
    w = jnp.transpose(w, (2, 3, 1, 0)).reshape(KH * KW * cin_pad, Cout)
    k = KH * KW * cin_pad
    k_pad = _round_up(k, 128)
    if k_pad > k:
        w = jnp.pad(w, ((0, k_pad - k), (0, 0)))
    if cout_pad > Cout:
        w = jnp.pad(w, ((0, 0), (0, cout_pad - Cout)))
    return w


def _pad_vec(v, n_pad):
    n = v.shape[0]
    return jnp.pad(v, (0, n_pad - n)) if n_pad > n else v


def prepare_params(p):
    c1_pad = _round_up(64, 128)  # 128; zero channels stay exactly zero downstream
    out_ch = p["fc2_w"].shape[0]
    fc2_pad = _round_up(out_ch, 128)
    return {
        "w1": _conv_w_to_gemm(p["conv1_w"], cin_pad=p["conv1_w"].shape[1],
                              cout_pad=c1_pad),
        "b1": _pad_vec(p["conv1_b"], c1_pad),
        "w2": _conv_w_to_gemm(p["conv2_w"], cin_pad=c1_pad, cout_pad=128),
        "b2": _pad_vec(p["conv2_b"], 128),
        "w3": _conv_w_to_gemm(p["conv3_w"], cin_pad=128, cout_pad=256),
        "b3": _pad_vec(p["conv3_b"], 256),
        "fc1_w": jnp.transpose(p["fc1_w"]),                     # (fc_in, 512)
        "fc1_b": p["fc1_b"],
        "fc2_w": jnp.pad(jnp.transpose(p["fc2_w"]),             # (512, out_ch)
                         ((0, 0), (0, fc2_pad - out_ch))),
        "fc2_b": _pad_vec(p["fc2_b"], fc2_pad),
    }


# ----------------------------------------------------------------------------
# Forward pass (matches ContextEncodingModel.forward)
# ----------------------------------------------------------------------------
def context_encoding_forward(x_nchw, gp, out_channels):
    B = x_nchw.shape[0]
    x = jnp.transpose(x_nchw, (0, 2, 3, 1))                    # NCHW -> NHWC
    y = maxpool2x2(conv3x3_relu(x, gp["w1"], gp["b1"]))
    y = maxpool2x2(conv3x3_relu(y, gp["w2"], gp["b2"]))
    y = maxpool2x2(conv3x3_relu(y, gp["w3"], gp["b3"]))        # (B,H/8,W/8,256)
    # PyTorch x.view(B, -1) flattens NCHW as (C, H, W):
    feats = jnp.transpose(y, (0, 3, 1, 2)).reshape(B, -1)
    h = gemm_bias_act(feats, gp["fc1_w"], gp["fc1_b"], activation="relu")
    o = gemm_bias_act(h, gp["fc2_w"], gp["fc2_b"], activation="sigmoid")
    return o[:, :out_channels]


# ----------------------------------------------------------------------------
# Reference (pure XLA) and test harness
# ----------------------------------------------------------------------------
def reference_forward(x_nchw, p):
    def conv_relu(x, w, b):
        y = jax.lax.conv_general_dilated(
            x, w, (1, 1), "SAME", dimension_numbers=("NCHW", "OIHW", "NCHW"))
        return jnp.maximum(y + b[None, :, None, None], 0.0)

    def pool(x):
        B, C, H, W = x.shape
        return x.reshape(B, C, H // 2, 2, W // 2, 2).max(axis=(3, 5))

    y = pool(conv_relu(x_nchw, p["conv1_w"], p["conv1_b"]))
    y = pool(conv_relu(y, p["conv2_w"], p["conv2_b"]))
    y = pool(conv_relu(y, p["conv3_w"], p["conv3_b"]))
    f = y.reshape(y.shape[0], -1)
    h = jnp.maximum(f @ p["fc1_w"].T + p["fc1_b"], 0.0)
    z = h @ p["fc2_w"].T + p["fc2_b"]
    return 1.0 / (1.0 + jnp.exp(-z))


def make_torch_params(key, in_channels, out_channels, fc_in):
    keys = jax.random.split(key, 5)

    def conv_init(k, cout, cin):
        bound = 1.0 / jnp.sqrt(cin * 9.0)
        kw, kb = jax.random.split(k)
        w = jax.random.uniform(kw, (cout, cin, 3, 3), minval=-bound,
                               maxval=bound, dtype=jnp.float32)
        b = jax.random.uniform(kb, (cout,), minval=-bound, maxval=bound,
                               dtype=jnp.float32)
        return w, b

    def lin_init(k, cout, cin):
        bound = 1.0 / jnp.sqrt(float(cin))
        kw, kb = jax.random.split(k)
        w = jax.random.uniform(kw, (cout, cin), minval=-bound, maxval=bound,
                               dtype=jnp.float32)
        b = jax.random.uniform(kb, (cout,), minval=-bound, maxval=bound,
                               dtype=jnp.float32)
        return w, b

    w1, b1 = conv_init(keys[0], 64, in_channels)
    w2, b2 = conv_init(keys[1], 128, 64)
    w3, b3 = conv_init(keys[2], 256, 128)
    f1w, f1b = lin_init(keys[3], 512, fc_in)
    f2w, f2b = lin_init(keys[4], out_channels, 512)
    return {"conv1_w": w1, "conv1_b": b1, "conv2_w": w2, "conv2_b": b2,
            "conv3_w": w3, "conv3_b": b3, "fc1_w": f1w, "fc1_b": f1b,
            "fc2_w": f2w, "fc2_b": f2b}


if __name__ == "__main__":
    key = jax.random.PRNGKey(0)
    kx, kp = jax.random.split(key)

    B, C_in, H, W = 2, 3, 32, 32
    out_channels = 1
    # TODO(synk): the reference module hard-codes fc in_features = 256*28*28
    # (i.e. 224x224 inputs); this small test scales it to 256*(H//8)*(W//8).
    fc_in = 256 * (H // 8) * (W // 8)

    x = jax.random.normal(kx, (B, C_in, H, W), dtype=jnp.float32)
    tparams = make_torch_params(kp, C_in, out_channels, fc_in)
    gparams = prepare_params(tparams)

    fwd = jax.jit(functools.partial(context_encoding_forward,
                                    out_channels=out_channels))
    out = jax.block_until_ready(fwd(x, gparams))

    ref = reference_forward(x, tparams)
    assert out.shape == (B, out_channels), out.shape
    assert jnp.allclose(out, ref, atol=1e-4, rtol=1e-4), "mismatch vs reference"

    print("KERNEL_OK")
</pallas_src>

<mosaic_0001>
module attributes {stable_mosaic.version = 11 : i64} {
  func.func @_gemm_bias_act_kernel(%arg0: i32, %arg1: i32, %arg2: i32, %arg3: memref<256x128xf32, #tpu.memory_space<vmem>>, %arg4: memref<128x128xf32, #tpu.memory_space<vmem>>, %arg5: memref<1x128xf32, #tpu.memory_space<vmem>>, %arg6: memref<256x128xf32, #tpu.memory_space<vmem>>, %arg7: memref<256x128xf32, #tpu.memory_space<vmem>>) attributes {dimension_semantics = [#tpu.dimension_semantics<parallel>, #tpu.dimension_semantics<parallel>, #tpu.dimension_semantics<arbitrary>], iteration_bounds = array<i64: 8, 1, 1>, scalar_prefetch = 0 : i64, scratch_operands = 1 : i64, tpu.core_type = #tpu.core_type<tc>, window_params = [{transform_indices = @transform_0, window_bounds = array<i64: 256, 128>}, {transform_indices = @transform_1, window_bounds = array<i64: 128, 128>}, {transform_indices = @transform_2, window_bounds = array<i64: 1, 128>}, {transform_indices = @transform_3, window_bounds = array<i64: 256, 128>}]} {
    %c0_i32 = arith.constant 0 : i32
    %0 = arith.cmpi eq, %arg2, %c0_i32 : i32
    %1 = arith.extui %0 : i1 to i32
    %c0_i32_0 = arith.constant 0 : i32
    %2 = arith.cmpi ne, %1, %c0_i32_0 : i32
    scf.if %2 {
      %cst_10 = arith.constant 0.000000e+00 : f32
      %12 = vector.broadcast %cst_10 : f32 to vector<256x128xf32>
      %c0_11 = arith.constant 0 : index
      %c0_12 = arith.constant 0 : index
      %13 = vector.load %arg7[%c0_11, %c0_12] : memref<256x128xf32, #tpu.memory_space<vmem>>, vector<256x128xf32>
      tpu.vector_store %arg7[%c0_11, %c0_12], %12 {strides = array<i32>} : memref<256x128xf32, #tpu.memory_space<vmem>>, vector<256x128xf32>,
    } else {
    }
    %c0 = arith.constant 0 : index
    %c0_1 = arith.constant 0 : index
    %3 = vector.load %arg7[%c0, %c0_1] : memref<256x128xf32, #tpu.memory_space<vmem>>, vector<256x128xf32>
    %c0_2 = arith.constant 0 : index
    %c0_3 = arith.constant 0 : index
    %4 = vector.load %arg3[%c0_2, %c0_3] : memref<256x128xf32, #tpu.memory_space<vmem>>, vector<256x128xf32>
    %c0_4 = arith.constant 0 : index
    %c0_5 = arith.constant 0 : index
    %5 = vector.load %arg4[%c0_4, %c0_5] : memref<128x128xf32, #tpu.memory_space<vmem>>, vector<128x128xf32>
    %cst = arith.constant dense<0.000000e+00> : vector<256x128xf32>
    %6 = tpu.matmul %4, %5, %cst {dimension_numbers = #tpu.dot_dimension_numbers<[1], [0], [0], [1], [0, 0, 1, 1], [], []>} : vector<256x128xf32>, vector<128x128xf32>, vector<256x128xf32> -> vector<256x128xf32>
    %7 = arith.addf %3, %6 : vector<256x128xf32>
    %c0_6 = arith.constant 0 : index
    %c0_7 = arith.constant 0 : index
    %8 = vector.load %arg7[%c0_6, %c0_7] : memref<256x128xf32, #tpu.memory_space<vmem>>, vector<256x128xf32>
    tpu.vector_store %arg7[%c0_6, %c0_7], %7 {strides = array<i32>} : memref<256x128xf32, #tpu.memory_space<vmem>>, vector<256x128xf32>,
    %c0_i32_8 = arith.constant 0 : i32
    %9 = arith.cmpi eq, %arg2, %c0_i32_8 : i32
    %10 = arith.extui %9 : i1 to i32
    %c0_i32_9 = arith.constant 0 : i32
    %11 = arith.cmpi ne, %10, %c0_i32_9 : i32
    scf.if %11 {
      %c0_10 = arith.constant 0 : index
      %c0_11 = arith.constant 0 : index
      %12 = vector.load %arg7[%c0_10, %c0_11] : memref<256x128xf32, #tpu.memory_space<vmem>>, vector<256x128xf32>
      %c0_12 = arith.constant 0 : index
      %c0_13 = arith.constant 0 : index
      %13 = vector.load %arg5[%c0_12, %c0_13] : memref<1x128xf32, #tpu.memory_space<vmem>>, vector<1x128xf32>
      %14 = vector.broadcast %13 : vector<1x128xf32> to vector<256x128xf32>
      %15 = arith.addf %12, %14 : vector<256x128xf32>
      %cst_14 = arith.constant 0.000000e+00 : f32
      %16 = vector.broadcast %cst_14 : f32 to vector<256x128xf32>
      %17 = arith.maximumf %15, %16 : vector<256x128xf32>
      %c0_15 = arith.constant 0 : index
      %c0_16 = arith.constant 0 : index
      %18 = vector.load %arg6[%c0_15, %c0_16] : memref<256x128xf32, #tpu.memory_space<vmem>>, vector<256x128xf32>
      tpu.vector_store %arg6[%c0_15, %c0_16], %17 {strides = array<i32>} : memref<256x128xf32, #tpu.memory_space<vmem>>, vector<256x128xf32>,
    } else {
    }
    return
  }
  func.func @transform_0(%arg0: i32, %arg1: i32, %arg2: i32) -> (i32, i32) {
    %c0_i32 = arith.constant 0 : i32
    return %arg0, %arg2 : i32, i32
  }
  func.func @transform_1(%arg0: i32, %arg1: i32, %arg2: i32) -> (i32, i32) {
    %c0_i32 = arith.constant 0 : i32
    return %arg2, %arg1 : i32, i32
  }
  func.func @transform_2(%arg0: i32, %arg1: i32, %arg2: i32) -> (i32, i32) {
    %c0_i32 = arith.constant 0 : i32
    %c0_i32_0 = arith.constant 0 : i32
    return %c0_i32, %arg1 : i32, i32
  }
  func.func @transform_3(%arg0: i32, %arg1: i32, %arg2: i32) -> (i32, i32) {
    %c0_i32 = arith.constant 0 : i32
    return %arg0, %arg1 : i32, i32
  }
}

module attributes {stable_mosaic.version = 11 : i64} {
  func.func @_gemm_bias_act_kernel(%arg0: i32, %arg1: i32, %arg2: i32, %arg3: memref<256x384xf32, #tpu.memory_space<vmem>>, %arg4: memref<384x128xf32, #tpu.memory_space<vmem>>, %arg5: memref<1x128xf32, #tpu.memory_space<vmem>>, %arg6: memref<256x128xf32, #tpu.memory_space<vmem>>, %arg7: memref<256x128xf32, #tpu.memory_space<vmem>>) attributes {dimension_semantics = [#tpu.dimension_semantics<parallel>, #tpu.dimension_semantics<parallel>, #tpu.dimension_semantics<arbitrary>], iteration_bounds = array<i64: 2, 1, 3>, scalar_prefetch = 0 : i64, scratch_operands = 1 : i64, tpu.core_type = #tpu.core_type<tc>, window_params = [{transform_indices = @transform_0, window_bounds = array<i64: 256, 384>}, {transform_indices = @transform_1, window_bounds = array<i64: 384, 128>}, {transform_indices = @transform_2, window_bounds = array<i64: 1, 128>}, {transform_indices = @transform_3, window_bounds = array<i64: 256, 128>}]} {
    %c0_i32 = arith.constant 0 : i32
    %0 = arith.cmpi eq, %arg2, %c0_i32 : i32
    %1 = arith.extui %0 : i1 to i32
    %c0_i32_0 = arith.constant 0 : i32
    %2 = arith.cmpi ne, %1, %c0_i32_0 : i32
    scf.if %2 {
      %cst_9 = arith.constant 0.000000e+00 : f32
      %12 = vector.broadcast %cst_9 : f32 to vector<256x128xf32>
      %c0_10 = arith.constant 0 : index
      %c0_11 = arith.constant 0 : index
      %13 = vector.load %arg7[%c0_10, %c0_11] : memref<256x128xf32, #tpu.memory_space<vmem>>, vector<256x128xf32>
      tpu.vector_store %arg7[%c0_10, %c0_11], %12 {strides = array<i32>} : memref<256x128xf32, #tpu.memory_space<vmem>>, vector<256x128xf32>,
    } else {
    }
    %c0 = arith.constant 0 : index
    %c0_1 = arith.constant 0 : index
    %3 = vector.load %arg7[%c0, %c0_1] : memref<256x128xf32, #tpu.memory_space<vmem>>, vector<256x128xf32>
    %c0_2 = arith.constant 0 : index
    %c0_3 = arith.constant 0 : index
    %4 = vector.load %arg3[%c0_2, %c0_3] : memref<256x384xf32, #tpu.memory_space<vmem>>, vector<256x384xf32>
    %c0_4 = arith.constant 0 : index
    %c0_5 = arith.constant 0 : index
    %5 = vector.load %arg4[%c0_4, %c0_5] : memref<384x128xf32, #tpu.memory_space<vmem>>, vector<384x128xf32>
    %cst = arith.constant dense<0.000000e+00> : vector<256x128xf32>
    %6 = tpu.matmul %4, %5, %cst {dimension_numbers = #tpu.dot_dimension_numbers<[1], [0], [0], [1], [0, 0, 1, 1], [], []>} : vector<256x384xf32>, vector<384x128xf32>, vector<256x128xf32> -> vector<256x128xf32>
    %7 = arith.addf %3, %6 : vector<256x128xf32>
    %c0_6 = arith.constant 0 : index
    %c0_7 = arith.constant 0 : index
    %8 = vector.load %arg7[%c0_6, %c0_7] : memref<256x128xf32, #tpu.memory_space<vmem>>, vector<256x128xf32>
    tpu.vector_store %arg7[%c0_6, %c0_7], %7 {strides = array<i32>} : memref<256x128xf32, #tpu.memory_space<vmem>>, vector<256x128xf32>,
    %c2_i32 = arith.constant 2 : i32
    %9 = arith.cmpi eq, %arg2, %c2_i32 : i32
    %10 = arith.extui %9 : i1 to i32
    %c0_i32_8 = arith.constant 0 : i32
    %11 = arith.cmpi ne, %10, %c0_i32_8 : i32
    scf.if %11 {
      %c0_9 = arith.constant 0 : index
      %c0_10 = arith.constant 0 : index
      %12 = vector.load %arg7[%c0_9, %c0_10] : memref<256x128xf32, #tpu.memory_space<vmem>>, vector<256x128xf32>
      %c0_11 = arith.constant 0 : index
      %c0_12 = arith.constant 0 : index
      %13 = vector.load %arg5[%c0_11, %c0_12] : memref<1x128xf32, #tpu.memory_space<vmem>>, vector<1x128xf32>
      %14 = vector.broadcast %13 : vector<1x128xf32> to vector<256x128xf32>
      %15 = arith.addf %12, %14 : vector<256x128xf32>
      %cst_13 = arith.constant 0.000000e+00 : f32
      %16 = vector.broadcast %cst_13 : f32 to vector<256x128xf32>
      %17 = arith.maximumf %15, %16 : vector<256x128xf32>
      %c0_14 = arith.constant 0 : index
      %c0_15 = arith.constant 0 : index
      %18 = vector.load %arg6[%c0_14, %c0_15] : memref<256x128xf32, #tpu.memory_space<vmem>>, vector<256x128xf32>
      tpu.vector_store %arg6[%c0_14, %c0_15], %17 {strides = array<i32>} : memref<256x128xf32, #tpu.memory_space<vmem>>, vector<256x128xf32>,
    } else {
    }
    return
  }
  func.func @transform_0(%arg0: i32, %arg1: i32, %arg2: i32) -> (i32, i32) {
    %c0_i32 = arith.constant 0 : i32
    return %arg0, %arg2 : i32, i32
  }
  func.func @transform_1(%arg0: i32, %arg1: i32, %arg2: i32) -> (i32, i32) {
    %c0_i32 = arith.constant 0 : i32
    return %arg2, %arg1 : i32, i32
  }
  func.func @transform_2(%arg0: i32, %arg1: i32, %arg2: i32) -> (i32, i32) {
    %c0_i32 = arith.constant 0 : i32
    %c0_i32_0 = arith.constant 0 : i32
    return %c0_i32, %arg1 : i32, i32
  }
  func.func @transform_3(%arg0: i32, %arg1: i32, %arg2: i32) -> (i32, i32) {
    %c0_i32 = arith.constant 0 : i32
    return %arg0, %arg1 : i32, i32
  }
}

module attributes {stable_mosaic.version = 11 : i64} {
  func.func @_gemm_bias_act_kernel(%arg0: i32, %arg1: i32, %arg2: i32, %arg3: memref<128x384xf32, #tpu.memory_space<vmem>>, %arg4: memref<384x256xf32, #tpu.memory_space<vmem>>, %arg5: memref<1x256xf32, #tpu.memory_space<vmem>>, %arg6: memref<128x256xf32, #tpu.memory_space<vmem>>, %arg7: memref<128x256xf32, #tpu.memory_space<vmem>>) attributes {dimension_semantics = [#tpu.dimension_semantics<parallel>, #tpu.dimension_semantics<parallel>, #tpu.dimension_semantics<arbitrary>], iteration_bounds = array<i64: 1, 1, 3>, scalar_prefetch = 0 : i64, scratch_operands = 1 : i64, tpu.core_type = #tpu.core_type<tc>, window_params = [{transform_indices = @transform_0, window_bounds = array<i64: 128, 384>}, {transform_indices = @transform_1, window_bounds = array<i64: 384, 256>}, {transform_indices = @transform_2, window_bounds = array<i64: 1, 256>}, {transform_indices = @transform_3, window_bounds = array<i64: 128, 256>}]} {
    %c0_i32 = arith.constant 0 : i32
    %0 = arith.cmpi eq, %arg2, %c0_i32 : i32
    %1 = arith.extui %0 : i1 to i32
    %c0_i32_0 = arith.constant 0 : i32
    %2 = arith.cmpi ne, %1, %c0_i32_0 : i32
    scf.if %2 {
      %cst_9 = arith.constant 0.000000e+00 : f32
      %12 = vector.broadcast %cst_9 : f32 to vector<128x256xf32>
      %c0_10 = arith.constant 0 : index
      %c0_11 = arith.constant 0 : index
      %13 = vector.load %arg7[%c0_10, %c0_11] : memref<128x256xf32, #tpu.memory_space<vmem>>, vector<128x256xf32>
      tpu.vector_store %arg7[%c0_10, %c0_11], %12 {strides = array<i32>} : memref<128x256xf32, #tpu.memory_space<vmem>>, vector<128x256xf32>,
    } else {
    }
    %c0 = arith.constant 0 : index
    %c0_1 = arith.constant 0 : index
    %3 = vector.load %arg7[%c0, %c0_1] : memref<128x256xf32, #tpu.memory_space<vmem>>, vector<128x256xf32>
    %c0_2 = arith.constant 0 : index
    %c0_3 = arith.constant 0 : index
    %4 = vector.load %arg3[%c0_2, %c0_3] : memref<128x384xf32, #tpu.memory_space<vmem>>, vector<128x384xf32>
    %c0_4 = arith.constant 0 : index
    %c0_5 = arith.constant 0 : index
    %5 = vector.load %arg4[%c0_4, %c0_5] : memref<384x256xf32, #tpu.memory_space<vmem>>, vector<384x256xf32>
    %cst = arith.constant dense<0.000000e+00> : vector<128x256xf32>
    %6 = tpu.matmul %4, %5, %cst {dimension_numbers = #tpu.dot_dimension_numbers<[1], [0], [0], [1], [0, 0, 1, 1], [], []>} : vector<128x384xf32>, vector<384x256xf32>, vector<128x256xf32> -> vector<128x256xf32>
    %7 = arith.addf %3, %6 : vector<128x256xf32>
    %c0_6 = arith.constant 0 : index
    %c0_7 = arith.constant 0 : index
    %8 = vector.load %arg7[%c0_6, %c0_7] : memref<128x256xf32, #tpu.memory_space<vmem>>, vector<128x256xf32>
    tpu.vector_store %arg7[%c0_6, %c0_7], %7 {strides = array<i32>} : memref<128x256xf32, #tpu.memory_space<vmem>>, vector<128x256xf32>,
    %c2_i32 = arith.constant 2 : i32
    %9 = arith.cmpi eq, %arg2, %c2_i32 : i32
    %10 = arith.extui %9 : i1 to i32
    %c0_i32_8 = arith.constant 0 : i32
    %11 = arith.cmpi ne, %10, %c0_i32_8 : i32
    scf.if %11 {
      %c0_9 = arith.constant 0 : index
      %c0_10 = arith.constant 0 : index
      %12 = vector.load %arg7[%c0_9, %c0_10] : memref<128x256xf32, #tpu.memory_space<vmem>>, vector<128x256xf32>
      %c0_11 = arith.constant 0 : index
      %c0_12 = arith.constant 0 : index
      %13 = vector.load %arg5[%c0_11, %c0_12] : memref<1x256xf32, #tpu.memory_space<vmem>>, vector<1x256xf32>
      %14 = vector.broadcast %13 : vector<1x256xf32> to vector<128x256xf32>
      %15 = arith.addf %12, %14 : vector<128x256xf32>
      %cst_13 = arith.constant 0.000000e+00 : f32
      %16 = vector.broadcast %cst_13 : f32 to vector<128x256xf32>
      %17 = arith.maximumf %15, %16 : vector<128x256xf32>
      %c0_14 = arith.constant 0 : index
      %c0_15 = arith.constant 0 : index
      %18 = vector.load %arg6[%c0_14, %c0_15] : memref<128x256xf32, #tpu.memory_space<vmem>>, vector<128x256xf32>
      tpu.vector_store %arg6[%c0_14, %c0_15], %17 {strides = array<i32>} : memref<128x256xf32, #tpu.memory_space<vmem>>, vector<128x256xf32>,
    } else {
    }
    return
  }
  func.func @transform_0(%arg0: i32, %arg1: i32, %arg2: i32) -> (i32, i32) {
    %c0_i32 = arith.constant 0 : i32
    return %arg0, %arg2 : i32, i32
  }
  func.func @transform_1(%arg0: i32, %arg1: i32, %arg2: i32) -> (i32, i32) {
    %c0_i32 = arith.constant 0 : i32
    return %arg2, %arg1 : i32, i32
  }
  func.func @transform_2(%arg0: i32, %arg1: i32, %arg2: i32) -> (i32, i32) {
    %c0_i32 = arith.constant 0 : i32
    %c0_i32_0 = arith.constant 0 : i32
    return %c0_i32, %arg1 : i32, i32
  }
  func.func @transform_3(%arg0: i32, %arg1: i32, %arg2: i32) -> (i32, i32) {
    %c0_i32 = arith.constant 0 : i32
    return %arg0, %arg1 : i32, i32
  }
}

module attributes {stable_mosaic.version = 11 : i64} {
  func.func @_gemm_bias_act_kernel(%arg0: i32, %arg1: i32, %arg2: i32, %arg3: memref<2x512xf32, #tpu.memory_space<vmem>>, %arg4: memref<512x256xf32, #tpu.memory_space<vmem>>, %arg5: memref<1x256xf32, #tpu.memory_space<vmem>>, %arg6: memref<2x256xf32, #tpu.memory_space<vmem>>, %arg7: memref<2x256xf32, #tpu.memory_space<vmem>>) attributes {dimension_semantics = [#tpu.dimension_semantics<parallel>, #tpu.dimension_semantics<parallel>, #tpu.dimension_semantics<arbitrary>], iteration_bounds = array<i64: 1, 2, 8>, scalar_prefetch = 0 : i64, scratch_operands = 1 : i64, tpu.core_type = #tpu.core_type<tc>, window_params = [{transform_indices = @transform_0, window_bounds = array<i64: 2, 512>}, {transform_indices = @transform_1, window_bounds = array<i64: 512, 256>}, {transform_indices = @transform_2, window_bounds = array<i64: 1, 256>}, {transform_indices = @transform_3, window_bounds = array<i64: 2, 256>}]} {
    %c0_i32 = arith.constant 0 : i32
    %0 = arith.cmpi eq, %arg2, %c0_i32 : i32
    %1 = arith.extui %0 : i1 to i32
    %c0_i32_0 = arith.constant 0 : i32
    %2 = arith.cmpi ne, %1, %c0_i32_0 : i32
    scf.if %2 {
      %cst_9 = arith.constant 0.000000e+00 : f32
      %12 = vector.broadcast %cst_9 : f32 to vector<2x256xf32>
      %c0_10 = arith.constant 0 : index
      %c0_11 = arith.constant 0 : index
      %13 = vector.load %arg7[%c0_10, %c0_11] : memref<2x256xf32, #tpu.memory_space<vmem>>, vector<2x256xf32>
      tpu.vector_store %arg7[%c0_10, %c0_11], %12 {strides = array<i32>} : memref<2x256xf32, #tpu.memory_space<vmem>>, vector<2x256xf32>,
    } else {
    }
    %c0 = arith.constant 0 : index
    %c0_1 = arith.constant 0 : index
    %3 = vector.load %arg7[%c0, %c0_1] : memref<2x256xf32, #tpu.memory_space<vmem>>, vector<2x256xf32>
    %c0_2 = arith.constant 0 : index
    %c0_3 = arith.constant 0 : index
    %4 = vector.load %arg3[%c0_2, %c0_3] : memref<2x512xf32, #tpu.memory_space<vmem>>, vector<2x512xf32>
    %c0_4 = arith.constant 0 : index
    %c0_5 = arith.constant 0 : index
    %5 = vector.load %arg4[%c0_4, %c0_5] : memref<512x256xf32, #tpu.memory_space<vmem>>, vector<512x256xf32>
    %cst = arith.constant dense<0.000000e+00> : vector<2x256xf32>
    %6 = tpu.matmul %4, %5, %cst {dimension_numbers = #tpu.dot_dimension_numbers<[1], [0], [0], [1], [0, 0, 1, 1], [], []>} : vector<2x512xf32>, vector<512x256xf32>, vector<2x256xf32> -> vector<2x256xf32>
    %7 = arith.addf %3, %6 : vector<2x256xf32>
    %c0_6 = arith.constant 0 : index
    %c0_7 = arith.constant 0 : index
    %8 = vector.load %arg7[%c0_6, %c0_7] : memref<2x256xf32, #tpu.memory_space<vmem>>, vector<2x256xf32>
    tpu.vector_store %arg7[%c0_6, %c0_7], %7 {strides = array<i32>} : memref<2x256xf32, #tpu.memory_space<vmem>>, vector<2x256xf32>,
    %c7_i32 = arith.constant 7 : i32
    %9 = arith.cmpi eq, %arg2, %c7_i32 : i32
    %10 = arith.extui %9 : i1 to i32
    %c0_i32_8 = arith.constant 0 : i32
    %11 = arith.cmpi ne, %10, %c0_i32_8 : i32
    scf.if %11 {
      %c0_9 = arith.constant 0 : index
      %c0_10 = arith.constant 0 : index
      %12 = vector.load %arg7[%c0_9, %c0_10] : memref<2x256xf32, #tpu.memory_space<vmem>>, vector<2x256xf32>
      %c0_11 = arith.constant 0 : index
      %c0_12 = arith.constant 0 : index
      %13 = vector.load %arg5[%c0_11, %c0_12] : memref<1x256xf32, #tpu.memory_space<vmem>>, vector<1x256xf32>
      %14 = vector.broadcast %13 : vector<1x256xf32> to vector<2x256xf32>
      %15 = arith.addf %12, %14 : vector<2x256xf32>
      %cst_13 = arith.constant 0.000000e+00 : f32
      %16 = vector.broadcast %cst_13 : f32 to vector<2x256xf32>
      %17 = arith.maximumf %15, %16 : vector<2x256xf32>
      %c0_14 = arith.constant 0 : index
      %c0_15 = arith.constant 0 : index
      %18 = vector.load %arg6[%c0_14, %c0_15] : memref<2x256xf32, #tpu.memory_space<vmem>>, vector<2x256xf32>
      tpu.vector_store %arg6[%c0_14, %c0_15], %17 {strides = array<i32>} : memref<2x256xf32, #tpu.memory_space<vmem>>, vector<2x256xf32>,
    } else {
    }
    return
  }
  func.func @transform_0(%arg0: i32, %arg1: i32, %arg2: i32) -> (i32, i32) {
    %c0_i32 = arith.constant 0 : i32
    return %arg0, %arg2 : i32, i32
  }
  func.func @transform_1(%arg0: i32, %arg1: i32, %arg2: i32) -> (i32, i32) {
    %c0_i32 = arith.constant 0 : i32
    return %arg2, %arg1 : i32, i32
  }
  func.func @transform_2(%arg0: i32, %arg1: i32, %arg2: i32) -> (i32, i32) {
    %c0_i32 = arith.constant 0 : i32
    %c0_i32_0 = arith.constant 0 : i32
    return %c0_i32, %arg1 : i32, i32
  }
  func.func @transform_3(%arg0: i32, %arg1: i32, %arg2: i32) -> (i32, i32) {
    %c0_i32 = arith.constant 0 : i32
    return %arg0, %arg1 : i32, i32
  }
}

module attributes {stable_mosaic.version = 11 : i64} {
  func.func @_gemm_bias_act_kernel(%arg0: i32, %arg1: i32, %arg2: i32, %arg3: memref<2x512xf32, #tpu.memory_space<vmem>>, %arg4: memref<512x128xf32, #tpu.memory_space<vmem>>, %arg5: memref<1x128xf32, #tpu.memory_space<vmem>>, %arg6: memref<2x128xf32, #tpu.memory_space<vmem>>, %arg7: memref<2x128xf32, #tpu.memory_space<vmem>>) attributes {dimension_semantics = [#tpu.dimension_semantics<parallel>, #tpu.dimension_semantics<parallel>, #tpu.dimension_semantics<arbitrary>], iteration_bounds = array<i64: 1, 1, 1>, scalar_prefetch = 0 : i64, scratch_operands = 1 : i64, tpu.core_type = #tpu.core_type<tc>, window_params = [{transform_indices = @transform_0, window_bounds = array<i64: 2, 512>}, {transform_indices = @transform_1, window_bounds = array<i64: 512, 128>}, {transform_indices = @transform_2, window_bounds = array<i64: 1, 128>}, {transform_indices = @transform_3, window_bounds = array<i64: 2, 128>}]} {
    %c0_i32 = arith.constant 0 : i32
    %0 = arith.cmpi eq, %arg2, %c0_i32 : i32
    %1 = arith.extui %0 : i1 to i32
    %c0_i32_0 = arith.constant 0 : i32
    %2 = arith.cmpi ne, %1, %c0_i32_0 : i32
    scf.if %2 {
      %cst_10 = arith.constant 0.000000e+00 : f32
      %12 = vector.broadcast %cst_10 : f32 to vector<2x128xf32>
      %c0_11 = arith.constant 0 : index
      %c0_12 = arith.constant 0 : index
      %13 = vector.load %arg7[%c0_11, %c0_12] : memref<2x128xf32, #tpu.memory_space<vmem>>, vector<2x128xf32>
      tpu.vector_store %arg7[%c0_11, %c0_12], %12 {strides = array<i32>} : memref<2x128xf32, #tpu.memory_space<vmem>>, vector<2x128xf32>,
    } else {
    }
    %c0 = arith.constant 0 : index
    %c0_1 = arith.constant 0 : index
    %3 = vector.load %arg7[%c0, %c0_1] : memref<2x128xf32, #tpu.memory_space<vmem>>, vector<2x128xf32>
    %c0_2 = arith.constant 0 : index
    %c0_3 = arith.constant 0 : index
    %4 = vector.load %arg3[%c0_2, %c0_3] : memref<2x512xf32, #tpu.memory_space<vmem>>, vector<2x512xf32>
    %c0_4 = arith.constant 0 : index
    %c0_5 = arith.constant 0 : index
    %5 = vector.load %arg4[%c0_4, %c0_5] : memref<512x128xf32, #tpu.memory_space<vmem>>, vector<512x128xf32>
    %cst = arith.constant dense<0.000000e+00> : vector<2x128xf32>
    %6 = tpu.matmul %4, %5, %cst {dimension_numbers = #tpu.dot_dimension_numbers<[1], [0], [0], [1], [0, 0, 1, 1], [], []>} : vector<2x512xf32>, vector<512x128xf32>, vector<2x128xf32> -> vector<2x128xf32>
    %7 = arith.addf %3, %6 : vector<2x128xf32>
    %c0_6 = arith.constant 0 : index
    %c0_7 = arith.constant 0 : index
    %8 = vector.load %arg7[%c0_6, %c0_7] : memref<2x128xf32, #tpu.memory_space<vmem>>, vector<2x128xf32>
    tpu.vector_store %arg7[%c0_6, %c0_7], %7 {strides = array<i32>} : memref<2x128xf32, #tpu.memory_space<vmem>>, vector<2x128xf32>,
    %c0_i32_8 = arith.constant 0 : i32
    %9 = arith.cmpi eq, %arg2, %c0_i32_8 : i32
    %10 = arith.extui %9 : i1 to i32
    %c0_i32_9 = arith.constant 0 : i32
    %11 = arith.cmpi ne, %10, %c0_i32_9 : i32
    scf.if %11 {
      %c0_10 = arith.constant 0 : index
      %c0_11 = arith.constant 0 : index
      %12 = vector.load %arg7[%c0_10, %c0_11] : memref<2x128xf32, #tpu.memory_space<vmem>>, vector<2x128xf32>
      %c0_12 = arith.constant 0 : index
      %c0_13 = arith.constant 0 : index
      %13 = vector.load %arg5[%c0_12, %c0_13] : memref<1x128xf32, #tpu.memory_space<vmem>>, vector<1x128xf32>
      %14 = vector.broadcast %13 : vector<1x128xf32> to vector<2x128xf32>
      %15 = arith.addf %12, %14 : vector<2x128xf32>
      %cst_14 = arith.constant 0.000000e+00 : f32
      %16 = vector.broadcast %cst_14 : f32 to vector<2x128xf32>
      %17 = arith.subf %16, %15 : vector<2x128xf32>
      %18 = math.exp %17 : vector<2x128xf32>
      %cst_15 = arith.constant 1.000000e+00 : f32
      %19 = vector.broadcast %cst_15 : f32 to vector<2x128xf32>
      %20 = arith.addf %19, %18 : vector<2x128xf32>
      %cst_16 = arith.constant 1.000000e+00 : f32
      %21 = vector.broadcast %cst_16 : f32 to vector<2x128xf32>
      %22 = arith.divf %21, %20 : vector<2x128xf32>
      %c0_17 = arith.constant 0 : index
      %c0_18 = arith.constant 0 : index
      %23 = vector.load %arg6[%c0_17, %c0_18] : memref<2x128xf32, #tpu.memory_space<vmem>>, vector<2x128xf32>
      tpu.vector_store %arg6[%c0_17, %c0_18], %22 {strides = array<i32>} : memref<2x128xf32, #tpu.memory_space<vmem>>, vector<2x128xf32>,
    } else {
    }
    return
  }
  func.func @transform_0(%arg0: i32, %arg1: i32, %arg2: i32) -> (i32, i32) {
    %c0_i32 = arith.constant 0 : i32
    return %arg0, %arg2 : i32, i32
  }
  func.func @transform_1(%arg0: i32, %arg1: i32, %arg2: i32) -> (i32, i32) {
    %c0_i32 = arith.constant 0 : i32
    return %arg2, %arg1 : i32, i32
  }
  func.func @transform_2(%arg0: i32, %arg1: i32, %arg2: i32) -> (i32, i32) {
    %c0_i32 = arith.constant 0 : i32
    %c0_i32_0 = arith.constant 0 : i32
    return %c0_i32, %arg1 : i32, i32
  }
  func.func @transform_3(%arg0: i32, %arg1: i32, %arg2: i32) -> (i32, i32) {
    %c0_i32 = arith.constant 0 : i32
    return %arg0, %arg1 : i32, i32
  }
}

</mosaic_0001>

<llo_original>
// kernel: context_encoding_forward.5
$region0: #{context_encoding_forward.5}
  #allocation0 [shape = 'u32[]', space=smem, size = 0x4, offset = 0x4, fixed_abs, tag = 'smem constant byte address 0x4 - core index']
  #allocation1 [shape = 'u32[144,128]{1,0:T(1,128)}', space=vmem, size = 0x12000, scoped, tag = 'internal scratch']
  #allocation2 [shape = 'f32[256,128]{1,0:T(8,128)}', space=vmem, size = 0x20000, scoped, tag = 'scratch operand']
  %s0 = inlined_call_operand.vmem [shape: f32[2048,128], index: 0, kind: input, shape index: {}]
  %s1 = inlined_call_operand.vmem [shape: f32[128,128], index: 1, kind: input, shape index: {}]
  %s2 = inlined_call_operand.vmem [shape: f32[1,128], index: 2, kind: input, shape index: {}]
  %s3 = inlined_call_operand.vmem [shape: f32[2048,128], index: 3, kind: output, shape index: {}]
  %s4 = sld [smem:[#allocation0]]
  $region53: #{context_encoding_forward.5} parent=0
    _
  %s6 = ssub.s32 1, %s4
  %s7 = scalar_select 0, %s6, %s4
  loop: start=0, step=1, limit=10
  $region2: #{context_encoding_forward.5} parent=0 // loop_pre_header
    _
  $region3: #{context_encoding_forward.5} parent=0 // loop_header
    %s9 = sphi 0, %s13
    %p10 = scmp.ge.s32.totalorder %s9, 10
    %s16 = sphi 0, %s35
    %s17 = sphi 0, %s31
    %s18 = sphi 0, %s27
    %s19 = sphi 0, %s16
    %s20 = sphi 0, %s17
    %s21 = sphi 0, %s18
    %s22 = sphi 0, %s19
    %s23 = sphi 0, %s20
    %s24 = sphi 0, %s21
    %s40 = sphi 0, %s42
    %s43 = sphi 0, %s40
    %s44 = sphi 0, %s43
    %s60 = sphi 0, %s44
    %s68 = sphi 0, %s70
    %s71 = sphi 0, %s68
    %s72 = sphi 0, %s71
    %s88 = sphi 0, %s72
    %s94 = sphi 0, %s96
    %s97 = sphi 0, %s94
    %s98 = sphi 0, %s97
    %s114 = sphi 0, %s98
    %s122 = sphi 0, %s124
    %s125 = sphi 0, %s122
    %s126 = sphi 0, %s125
    %s142 = sphi 0, %s126
  $region4: #{context_encoding_forward.5} parent=0 // loop_header_branch
    %12 = sbr.rel (%p10) target = $region8
  $region5: #{context_encoding_forward.5} parent=0 // loop_body
    %s14 = ssub.s32 %s9, 1
    %s15 = ssub.s32 %s9, 2
    %s25 = sadd.s32 1, %s18
    %p26 = scmp.ge.s32.totalorder %s25, 1
    %s27 = scalar_select %p26, 0, %s25
    %s28 = sadd.s32 1, %s17
    %s29 = scalar_select %p26, %s28, %s17
    %p30 = scmp.ge.s32.totalorder %s29, 1
    %s31 = scalar_select %p30, 0, %s29
    %s32 = sadd.s32 1, %s16
    %s33 = scalar_select %p30, %s32, %s16
    %p34 = scmp.ge.s32.totalorder %s33, 8
    %s35 = scalar_select %p34, 0, %s33
    %s36 = ssub.s32 %s16, %s35
    %s37 = ssub.s32 %s18, %s27
    %s38 = sor.u32 %s36, %s37
    %p39 = scmp.eq.s32.totalorder %s38, 0
    %s41 = sadd.s32 %s40, 1
    %s42 = scalar_select %p39, %s40, %s41
    %p45 = pneg %p39
    %p46 = scmp.eq.s32.totalorder %s9, 7
    %p47 = por %p45, %p46
    %p48 = scmp.ne.s32.totalorder %s40, %s43
    %p49 = scmp.eq.s32.totalorder %s9, 0
    %p50 = por %p48, %p49
    %p51 = scmp.ne.s32.totalorder %s40, %s43
    %p52 = scmp.eq.s32.totalorder %s14, 7
    %p53 = por %p51, %p52
    %p54 = scmp.ne.s32.totalorder %s43, %s44
    %p55 = scmp.eq.s32.totalorder %s14, 0
    %p56 = por %p54, %p55
    %p57 = scmp.ne.s32.totalorder %s43, %s44
    %p58 = scmp.eq.s32.totalorder %s15, 7
    %p59 = por %p57, %p58
    %p61 = scmp.ne.s32.totalorder %s44, %s60
    %p62 = scmp.eq.s32.totalorder %s15, 0
    %p63 = por %p61, %p62
    %s64 = ssub.s32 %s18, %s27
    %s65 = ssub.s32 %s17, %s31
    %s66 = sor.u32 %s64, %s65
    %p67 = scmp.eq.s32.totalorder %s66, 0
    %s69 = sadd.s32 %s68, 1
    %s70 = scalar_select %p67, %s68, %s69
    %p73 = pneg %p67
    %p74 = scmp.eq.s32.totalorder %s9, 7
    %p75 = por %p73, %p74
    %p76 = scmp.ne.s32.totalorder %s68, %s71
    %p77 = scmp.eq.s32.totalorder %s9, 0
    %p78 = por %p76, %p77
    %p79 = scmp.ne.s32.totalorder %s68, %s71
    %p80 = scmp.eq.s32.totalorder %s14, 7
    %p81 = por %p79, %p80
    %p82 = scmp.ne.s32.totalorder %s71, %s72
    %p83 = scmp.eq.s32.totalorder %s14, 0
    %p84 = por %p82, %p83
    %p85 = scmp.ne.s32.totalorder %s71, %s72
    %p86 = scmp.eq.s32.totalorder %s15, 7
    %p87 = por %p85, %p86
    %p89 = scmp.ne.s32.totalorder %s72, %s88
    %p90 = scmp.eq.s32.totalorder %s15, 0
    %p91 = por %p89, %p90
    %s92 = ssub.s32 %s17, %s31
    %p93 = scmp.eq.s32.totalorder %s92, 0
    %s95 = sadd.s32 %s94, 1
    %s96 = scalar_select %p93, %s94, %s95
    %p99 = pneg %p93
    %p100 = scmp.eq.s32.totalorder %s9, 7
    %p101 = por %p99, %p100
    %p102 = scmp.ne.s32.totalorder %s94, %s97
    %p103 = scmp.eq.s32.totalorder %s9, 0
    %p104 = por %p102, %p103
    %p105 = scmp.ne.s32.totalorder %s94, %s97
    %p106 = scmp.eq.s32.totalorder %s14, 7
    %p107 = por %p105, %p106
    %p108 = scmp.ne.s32.totalorder %s97, %s98
    %p109 = scmp.eq.s32.totalorder %s14, 0
    %p110 = por %p108, %p109
    %p111 = scmp.ne.s32.totalorder %s97, %s98
    %p112 = scmp.eq.s32.totalorder %s15, 7
    %p113 = por %p111, %p112
    %p115 = scmp.ne.s32.totalorder %s98, %s114
    %p116 = scmp.eq.s32.totalorder %s15, 0
    %p117 = por %p115, %p116
    %s118 = ssub.s32 %s16, %s35
    %s119 = ssub.s32 %s17, %s31
    %s120 = sor.u32 %s118, %s119
    %p121 = scmp.eq.s32.totalorder %s120, 0
    %s123 = sadd.s32 %s122, 1
    %s124 = scalar_select %p121, %s122, %s123
    %p127 = pneg %p121
    %p128 = scmp.eq.s32.totalorder %s9, 7
    %p129 = por %p127, %p128
    %p130 = scmp.ne.s32.totalorder %s122, %s125
    %p131 = scmp.eq.s32.totalorder %s9, 0
    %p132 = por %p130, %p131
    %p133 = scmp.ne.s32.totalorder %s122, %s125
    %p134 = scmp.eq.s32.totalorder %s14, 7
    %p135 = por %p133, %p134
    %p136 = scmp.ne.s32.totalorder %s125, %s126
    %p137 = scmp.eq.s32.totalorder %s14, 0
    %p138 = por %p136, %p137
    %p139 = scmp.ne.s32.totalorder %s125, %s126
    %p140 = scmp.eq.s32.totalorder %s15, 7
    %p141 = por %p139, %p140
    %p143 = scmp.ne.s32.totalorder %s126, %s142
    %p144 = scmp.eq.s32.totalorder %s15, 0
    %p145 = por %p143, %p144
    %p146 = scmp.le.s32.totalorder 1, %s9
    %p147 = scmp.lt.s32.totalorder %s9, 9
    %p148 = pnand %p146, %p147
    %p149 = pneg %p148
    // Predicated region
    $region9: #{context_encoding_forward.5} parent=5 // pred_check
      _
    $region10: #{context_encoding_forward.5} parent=5 // pred_check_branch
      %151 = sbr.rel (%p148) target = $region12
    $region11: #{context_encoding_forward.5} parent=5 // pred_region
      %s152 = ssub.s32 %s9, 1
      // Predicated region
      $region13: #{context_encoding_forward.5} parent=11 // pred_check
        %p153 = pneg %p84
      $region14: #{context_encoding_forward.5} parent=11 // pred_check_branch
        %155 = sbr.rel (%p153) target = $region16
      $region15: #{context_encoding_forward.5} parent=11 // pred_region
        %s156 = smul.u32 16, %s21
        %p157 = scmp.lt.s32.totalorder %s156, 15
        %s158 = scalar_select %p157, %s156, 15
        %p159 = scmp.lt.s32.totalorder %s20, 0
        %s160 = scalar_select %p159, %s20, 0
        %s161 = sadd.s32 %s160, %s158
        %s162 = smul.addr %s161, 8
        %s163 = scalar_lea.vmem %s1, %s162
        %s164 = smul.u32 16, %s21
      $region16: #{context_encoding_forward.5} parent=11 // pred_fallthru
        _
      // Predicated region
      $region17: #{context_encoding_forward.5} parent=11 // pred_check
        %p165 = pneg %p110
      $region18: #{context_encoding_forward.5} parent=11 // pred_check_branch
        %167 = sbr.rel (%p165) target = $region20
      $region19: #{context_encoding_forward.5} parent=11 // pred_region
        %p168 = scmp.lt.s32.totalorder %s20, 0
        %s169 = scalar_select %p168, %s20, 0
        %s170 = scalar_lea.vmem %s2, %s169
      $region20: #{context_encoding_forward.5} parent=11 // pred_fallthru
        _
    $region12: #{context_encoding_forward.5} parent=5 // pred_fallthru
      _
    %p171 = scmp.lt.s32.totalorder %s9, 8
    // Predicated region
    $region21: #{context_encoding_forward.5} parent=5 // pred_check
      %p172 = pneg %p171
    $region22: #{context_encoding_forward.5} parent=5 // pred_check_branch
      %174 = sbr.rel (%p172) target = $region24
    $region23: #{context_encoding_forward.5} parent=5 // pred_region
      // Predicated region
      $region25: #{context_encoding_forward.5} parent=23 // pred_check
        %p175 = pneg %p50
      $region26: #{context_encoding_forward.5} parent=23 // pred_check_branch
        %177 = sbr.rel (%p175) target = $region28
      $region27: #{context_encoding_forward.5} parent=23 // pred_region
        %s178 = smul.u32 32, %s16
        %p179 = scmp.lt.s32.totalorder %s178, 255
        %s180 = scalar_select %p179, %s178, 255
        %p181 = scmp.lt.s32.totalorder %s18, 0
        %s182 = scalar_select %p181, %s18, 0
        %s183 = sadd.s32 %s182, %s180
        %s184 = smul.addr %s183, 8
        %s185 = scalar_lea.vmem %s0, %s184
        %s186 = smul.u32 32, %s16
      $region28: #{context_encoding_forward.5} parent=23 // pred_fallthru
        _
    $region24: #{context_encoding_forward.5} parent=5 // pred_fallthru
      _
    %p187 = scmp.le.s32.totalorder 1, %s9
    %p188 = scmp.lt.s32.totalorder %s9, 9
    %p189 = pnand %p187, %p188
    %p190 = pneg %p189
    // Predicated region
    $region29: #{context_encoding_forward.5} parent=5 // pred_check
      _
    $region30: #{context_encoding_forward.5} parent=5 // pred_check_branch
      %192 = sbr.rel (%p189) target = $region32
    $region31: #{context_encoding_forward.5} parent=5 // pred_region
      %s193 = ssub.s32 %s9, 1
      %s194 = smul.u32 32, %s19
      %p195 = scmp.lt.s32.totalorder %s194, 255
      %s196 = scalar_select %p195, %s194, 255
      %p197 = scmp.lt.s32.totalorder %s21, 0
      %s198 = scalar_select %p197, %s21, 0
      %s199 = sadd.s32 %s198, %s196
      %s200 = smul.addr %s199, 8
      %s201 = scalar_lea.vmem %s0, %s200
      %p202 = pneg %p56
      %p203 = pneg %p53
      %s204 = smul.u32 16, %s21
      %p205 = scmp.lt.s32.totalorder %s204, 15
      %s206 = scalar_select %p205, %s204, 15
      %p207 = scmp.lt.s32.totalorder %s20, 0
      %s208 = scalar_select %p207, %s20, 0
      %s209 = sadd.s32 %s208, %s206
      %s210 = smul.addr %s209, 8
      %s211 = scalar_lea.vmem %s1, %s210
      %p212 = pneg %p84
      %p213 = pneg %p81
      %p214 = scmp.lt.s32.totalorder %s20, 0
      %s215 = scalar_select %p214, %s20, 0
      %s216 = scalar_lea.vmem %s2, %s215
      %p217 = pneg %p110
      %p218 = pneg %p107
      %p219 = pneg %p138
      %p220 = pneg %p135
      %s221 = smul.u32 32, %s19
      %p222 = scmp.lt.s32.totalorder %s221, 255
      %s223 = scalar_select %p222, %s221, 255
      %p224 = scmp.lt.s32.totalorder %s20, 0
      %s225 = scalar_select %p224, %s20, 0
      %s226 = sadd.s32 %s225, %s223
      %s227 = smul.addr %s226, 8
      %s228 = scalar_lea.vmem %s3, %s227
      %s229 = smul.u32 32, %s19
      %p230 = scmp.lt.s32.totalorder %s229, 255
      %s231 = scalar_select %p230, %s229, 255
      %p232 = scmp.lt.s32.totalorder %s21, 0
      %s233 = scalar_select %p232, %s21, 0
      %s234 = sadd.s32 %s233, %s231
      %s235 = smul.addr %s234, 8
      %s236 = scalar_lea.vmem %s0, %s235
      %s237 = smul.u32 32, %s19
      %s238 = smul.u32 16, %s21
      %p239 = scmp.lt.s32.totalorder %s238, 15
      %s240 = scalar_select %p239, %s238, 15
      %p241 = scmp.lt.s32.totalorder %s20, 0
      %s242 = scalar_select %p241, %s20, 0
      %s243 = sadd.s32 %s242, %s240
      %s244 = smul.addr %s243, 8
      %s245 = scalar_lea.vmem %s1, %s244
      %s246 = smul.u32 16, %s21
      %p247 = scmp.lt.s32.totalorder %s20, 0
      %s248 = scalar_select %p247, %s20, 0
      %s249 = scalar_lea.vmem %s2, %s248
      %s250 = smul.u32 32, %s19
      %p251 = scmp.lt.s32.totalorder %s250, 255
      %s252 = scalar_select %p251, %s250, 255
      %p253 = scmp.lt.s32.totalorder %s20, 0
      %s254 = scalar_select %p253, %s20, 0
      %s255 = sadd.s32 %s254, %s252
      %s256 = smul.addr %s255, 8
      %s257 = scalar_lea.vmem %s3, %s256
      %s258 = smul.u32 32, %s19
      %p259 = scmp.eq.s32.totalorder %s21, 0
      // Predicated region
      $region33: #{context_encoding_forward.5} parent=31 // pred_check
        %p260 = pneg %p259
      $region34: #{context_encoding_forward.5} parent=31 // pred_check_branch
        %262 = sbr.rel (%p260) target = $region36
      $region35: #{context_encoding_forward.5} parent=31 // pred_region
        %263 = vst [vmem:[#allocation2] sm:$0xff] 0.0
        %264 = vst [vmem:[#allocation2 + $0x8] sm:$0xff] 0.0
        %265 = vst [vmem:[#allocation2 + $0x10] sm:$0xff] 0.0
        %266 = vst [vmem:[#allocation2 + $0x18] sm:$0xff] 0.0
        %267 = vst [vmem:[#allocation2 + $0x20] sm:$0xff] 0.0
        %268 = vst [vmem:[#allocation2 + $0x28] sm:$0xff] 0.0
        %269 = vst [vmem:[#allocation2 + $0x30] sm:$0xff] 0.0
        %270 = vst [vmem:[#allocation2 + $0x38] sm:$0xff] 0.0
        %271 = vst [vmem:[#allocation2 + $0x40] sm:$0xff] 0.0
        %272 = vst [vmem:[#allocation2 + $0x48] sm:$0xff] 0.0
        %273 = vst [vmem:[#allocation2 + $0x50] sm:$0xff] 0.0
        %274 = vst [vmem:[#allocation2 + $0x58] sm:$0xff] 0.0
        %275 = vst [vmem:[#allocation2 + $0x60] sm:$0xff] 0.0
        %276 = vst [vmem:[#allocation2 + $0x68] sm:$0xff] 0.0
        %277 = vst [vmem:[#allocation2 + $0x70] sm:$0xff] 0.0
        %278 = vst [vmem:[#allocation2 + $0x78] sm:$0xff] 0.0
        %279 = vst [vmem:[#allocation2 + $0x80] sm:$0xff] 0.0
        %280 = vst [vmem:[#allocation2 + $0x88] sm:$0xff] 0.0
        %281 = vst [vmem:[#allocation2 + $0x90] sm:$0xff] 0.0
        %282 = vst [vmem:[#allocation2 + $0x98] sm:$0xff] 0.0
        %283 = vst [vmem:[#allocation2 + $0xa0] sm:$0xff] 0.0
        %284 = vst [vmem:[#allocation2 + $0xa8] sm:$0xff] 0.0
        %285 = vst [vmem:[#allocation2 + $0xb0] sm:$0xff] 0.0
        %286 = vst [vmem:[#allocation2 + $0xb8] sm:$0xff] 0.0
        %287 = vst [vmem:[#allocation2 + $0xc0] sm:$0xff] 0.0
        %288 = vst [vmem:[#allocation2 + $0xc8] sm:$0xff] 0.0
        %289 = vst [vmem:[#allocation2 + $0xd0] sm:$0xff] 0.0
        %290 = vst [vmem:[#allocation2 + $0xd8] sm:$0xff] 0.0
        %291 = vst [vmem:[#allocation2 + $0xe0] sm:$0xff] 0.0
        %292 = vst [vmem:[#allocation2 + $0xe8] sm:$0xff] 0.0
        %293 = vst [vmem:[#allocation2 + $0xf0] sm:$0xff] 0.0
        %294 = vst [vmem:[#allocation2 + $0xf8] sm:$0xff] 0.0
      $region36: #{context_encoding_forward.5} parent=31 // pred_fallthru
        _
      %v295 = vld [vmem:[#allocation2] sm:$0xff]
      %v296 = vld [vmem:[#allocation2 + $0x8] sm:$0xff]
      %v297 = vld [vmem:[#allocation2 + $0x10] sm:$0xff]
      %v298 = vld [vmem:[#allocation2 + $0x18] sm:$0xff]
      %v299 = vld [vmem:[#allocation2 + $0x20] sm:$0xff]
      %v300 = vld [vmem:[#allocation2 + $0x28] sm:$0xff]
      %v301 = vld [vmem:[#allocation2 + $0x30] sm:$0xff]
      %v302 = vld [vmem:[#allocation2 + $0x38] sm:$0xff]
      %v303 = vld [vmem:[#allocation2 + $0x40] sm:$0xff]
      %v304 = vld [vmem:[#allocation2 + $0x48] sm:$0xff]
      %v305 = vld [vmem:[#allocation2 + $0x50] sm:$0xff]
      %v306 = vld [vmem:[#allocation2 + $0x58] sm:$0xff]
      %v307 = vld [vmem:[#allocation2 + $0x60] sm:$0xff]
      %v308 = vld [vmem:[#allocation2 + $0x68] sm:$0xff]
      %v309 = vld [vmem:[#allocation2 + $0x70] sm:$0xff]
      %v310 = vld [vmem:[#allocation2 + $0x78] sm:$0xff]
      %v311 = vld [vmem:[#allocation2 + $0x80] sm:$0xff]
      %v312 = vld [vmem:[#allocation2 + $0x88] sm:$0xff]
      %v313 = vld [vmem:[#allocation2 + $0x90] sm:$0xff]
      %v314 = vld [vmem:[#allocation2 + $0x98] sm:$0xff]
      %v315 = vld [vmem:[#allocation2 + $0xa0] sm:$0xff]
      %v316 = vld [vmem:[#allocation2 + $0xa8] sm:$0xff]
      %v317 = vld [vmem:[#allocation2 + $0xb0] sm:$0xff]
      %v318 = vld [vmem:[#allocation2 + $0xb8] sm:$0xff]
      %v319 = vld [vmem:[#allocation2 + $0xc0] sm:$0xff]
      %v320 = vld [vmem:[#allocation2 + $0xc8] sm:$0xff]
      %v321 = vld [vmem:[#allocation2 + $0xd0] sm:$0xff]
      %v322 = vld [vmem:[#allocation2 + $0xd8] sm:$0xff]
      %v323 = vld [vmem:[#allocation2 + $0xe0] sm:$0xff]
      %v324 = vld [vmem:[#allocation2 + $0xe8] sm:$0xff]
      %v325 = vld [vmem:[#allocation2 + $0xf0] sm:$0xff]
      %v326 = vld [vmem:[#allocation2 + $0xf8] sm:$0xff]
      %v327 = vld [vmem:[%s236] sm:$0xff]
      %v328 = vld [vmem:[%s236 + $0x8] sm:$0xff]
      %v329 = vld [vmem:[%s236 + $0x10] sm:$0xff]
      %v330 = vld [vmem:[%s236 + $0x18] sm:$0xff]
      %v331 = vld [vmem:[%s236 + $0x20] sm:$0xff]
      %v332 = vld [vmem:[%s236 + $0x28] sm:$0xff]
      %v333 = vld [vmem:[%s236 + $0x30] sm:$0xff]
      %v334 = vld [vmem:[%s236 + $0x38] sm:$0xff]
      %v335 = vld [vmem:[%s236 + $0x40] sm:$0xff]
      %v336 = vld [vmem:[%s236 + $0x48] sm:$0xff]
      %v337 = vld [vmem:[%s236 + $0x50] sm:$0xff]
      %v338 = vld [vmem:[%s236 + $0x58] sm:$0xff]
      %v339 = vld [vmem:[%s236 + $0x60] sm:$0xff]
      %v340 = vld [vmem:[%s236 + $0x68] sm:$0xff]
      %v341 = vld [vmem:[%s236 + $0x70] sm:$0xff]
      %v342 = vld [vmem:[%s236 + $0x78] sm:$0xff]
      %v343 = vld [vmem:[%s236 + $0x80] sm:$0xff]
      %v344 = vld [vmem:[%s236 + $0x88] sm:$0xff]
      %v345 = vld [vmem:[%s236 + $0x90] sm:$0xff]
      %v346 = vld [vmem:[%s236 + $0x98] sm:$0xff]
      %v347 = vld [vmem:[%s236 + $0xa0] sm:$0xff]
      %v348 = vld [vmem:[%s236 + $0xa8] sm:$0xff]
      %v349 = vld [vmem:[%s236 + $0xb0] sm:$0xff]
      %v350 = vld [vmem:[%s236 + $0xb8] sm:$0xff]
      %v351 = vld [vmem:[%s236 + $0xc0] sm:$0xff]
      %v352 = vld [vmem:[%s236 + $0xc8] sm:$0xff]
      %v353 = vld [vmem:[%s236 + $0xd0] sm:$0xff]
      %v354 = vld [vmem:[%s236 + $0xd8] sm:$0xff]
      %v355 = vld [vmem:[%s236 + $0xe0] sm:$0xff]
      %v356 = vld [vmem:[%s236 + $0xe8] sm:$0xff]
      %v357 = vld [vmem:[%s236 + $0xf0] sm:$0xff]
      %v358 = vld [vmem:[%s236 + $0xf8] sm:$0xff]
      %v359 = vld [vmem:[%s245] sm:$0xff]
      %v360 = vld [vmem:[%s245 + $0x8] sm:$0xff]
      %v361 = vld [vmem:[%s245 + $0x10] sm:$0xff]
      %v362 = vld [vmem:[%s245 + $0x18] sm:$0xff]
      %v363 = vld [vmem:[%s245 + $0x20] sm:$0xff]
      %v364 = vld [vmem:[%s245 + $0x28] sm:$0xff]
      %v365 = vld [vmem:[%s245 + $0x30] sm:$0xff]
      %v366 = vld [vmem:[%s245 + $0x38] sm:$0xff]
      %v367 = vld [vmem:[%s245 + $0x40] sm:$0xff]
      %v368 = vld [vmem:[%s245 + $0x48] sm:$0xff]
      %v369 = vld [vmem:[%s245 + $0x50] sm:$0xff]
      %v370 = vld [vmem:[%s245 + $0x58] sm:$0xff]
      %v371 = vld [vmem:[%s245 + $0x60] sm:$0xff]
      %v372 = vld [vmem:[%s245 + $0x68] sm:$0xff]
      %v373 = vld [vmem:[%s245 + $0x70] sm:$0xff]
      %v374 = vld [vmem:[%s245 + $0x78] sm:$0xff]
      %375 = vmatprep.subr.mxu0 0.0
      %376 = vmatpush1.msra.mxu0 %v359
      %377 = vmatprep.subr.mxu0 0.0
      %378 = vmatpush1.msra.mxu0 %v360
      %379 = vmatprep.subr.mxu0 0.0
      %380 = vmatpush1.msra.mxu0 %v361
      %381 = vmatprep.subr.mxu0 0.0
      %382 = vmatpush1.msra.mxu0 %v362
      %383 = vmatprep.subr.mxu0 0.0
      %384 = vmatpush1.msra.mxu0 %v363
      %385 = vmatprep.subr.mxu0 0.0
      %386 = vmatpush1.msra.mxu0 %v364
      %387 = vmatprep.subr.mxu0 0.0
      %388 = vmatpush1.msra.mxu0 %v365
      %389 = vmatprep.subr.mxu0 0.0
      %390 = vmatpush1.msra.mxu0 %v366
      %391 = vmatprep.subr.mxu0 0.0
      %392 = vmatpush1.msra.mxu0 %v367
      %393 = vmatprep.subr.mxu0 0.0
      %394 = vmatpush1.msra.mxu0 %v368
      %395 = vmatprep.subr.mxu0 0.0
      %396 = vmatpush1.msra.mxu0 %v369
      %397 = vmatprep.subr.mxu0 0.0
      %398 = vmatpush1.msra.mxu0 %v370
      %399 = vmatprep.subr.mxu0 0.0
      %400 = vmatpush1.msra.mxu0 %v371
      %401 = vmatprep.subr.mxu0 0.0
      %402 = vmatpush1.msra.mxu0 %v372
      %403 = vmatprep.subr.mxu0 0.0
      %404 = vmatpush1.msra.mxu0 %v373
      %405 = vmatprep.subr.mxu0 0.0
      %406 = vmatpush1.msra.mxu0 %v374
      %407 = vmatprep.subr.mxu0 0.0
      %408 = vmatpush1.msra.mxu0 0.0
      %409 = vmatprep.subr.mxu0 0.0
      %410 = vmatpush1.msra.mxu0 0.0
      %411 = vmatprep.subr.mxu0 0.0
      %412 = vmatpush1.msra.mxu0 0.0
      %413 = vmatprep.subr.mxu0 0.0
      %414 = vmatpush1.msra.mxu0 0.0
      %415 = vmatprep.subr.mxu0 0.0
      %416 = vmatpush1.msra.mxu0 0.0
      %417 = vmatprep.subr.mxu0 0.0
      %418 = vmatpush1.msra.mxu0 0.0
      %419 = vmatprep.subr.mxu0 0.0
      %420 = vmatpush1.msra.mxu0 0.0
      %421 = vmatprep.subr.mxu0 0.0
      %422 = vmatpush1.msra.mxu0 0.0
      %423 = vmatprep.subr.mxu0 0.0
      %424 = vmatpush1.msra.mxu0 0.0
      %425 = vmatprep.subr.mxu0 0.0
      %426 = vmatpush1.msra.mxu0 0.0
      %427 = vmatprep.subr.mxu0 0.0
      %428 = vmatpush1.msra.mxu0 0.0
      %429 = vmatprep.subr.mxu0 0.0
      %430 = vmatpush1.msra.mxu0 0.0
      %431 = vmatprep.subr.mxu0 0.0
      %432 = vmatpush1.msra.mxu0 0.0
      %433 = vmatprep.subr.mxu0 0.0
      %434 = vmatpush1.msra.mxu0 0.0
      %435 = vmatprep.subr.mxu0 0.0
      %436 = vmatpush1.msra.mxu0 0.0
      %437 = vmatprep.subr.mxu0 0.0
      %438 = vmatpush1.msra.mxu0 0.0
      %439 = vmatprep.mubr.f32.mxu0 0.0
      %440 = vmatmul.mubr.f32.gmra.mrb[0].mxu0 %v327
      %v441 = vpop.f32.mrb[0].mxu0
      %v442 = vadd.f32 0.0, %v441
      %v443 = vpop.f32.mrb[0].mxu0
      %444 = vmatprep.mubr.f32.mxu0 0.0
      %445 = vmatmul.mubr.f32.gmra.mrb[0].mxu0 %v328
      %v446 = vpop.f32.mrb[0].mxu0
      %v447 = vadd.f32 0.0, %v446
      %v448 = vpop.f32.mrb[0].mxu0
      %449 = vmatprep.mubr.f32.mxu0 0.0
      %450 = vmatmul.mubr.f32.gmra.mrb[0].mxu0 %v329
      %v451 = vpop.f32.mrb[0].mxu0
      %v452 = vadd.f32 0.0, %v451
      %v453 = vpop.f32.mrb[0].mxu0
      %454 = vmatprep.mubr.f32.mxu0 0.0
      %455 = vmatmul.mubr.f32.gmra.mrb[0].mxu0 %v330
      %v456 = vpop.f32.mrb[0].mxu0
      %v457 = vadd.f32 0.0, %v456
      %v458 = vpop.f32.mrb[0].mxu0
      %459 = vmatprep.mubr.f32.mxu0 0.0
      %460 = vmatmul.mubr.f32.gmra.mrb[0].mxu0 %v331
      %v461 = vpop.f32.mrb[0].mxu0
      %v462 = vadd.f32 0.0, %v461
      %v463 = vpop.f32.mrb[0].mxu0
      %464 = vmatprep.mubr.f32.mxu0 0.0
      %465 = vmatmul.mubr.f32.gmra.mrb[0].mxu0 %v332
      %v466 = vpop.f32.mrb[0].mxu0
      %v467 = vadd.f32 0.0, %v466
      %v468 = vpop.f32.mrb[0].mxu0
      %469 = vmatprep.mubr.f32.mxu0 0.0
      %470 = vmatmul.mubr.f32.gmra.mrb[0].mxu0 %v333
      %v471 = vpop.f32.mrb[0].mxu0
      %v472 = vadd.f32 0.0, %v471
      %v473 = vpop.f32.mrb[0].mxu0
      %474 = vmatprep.mubr.f32.mxu0 0.0
      %475 = vmatmul.mubr.f32.gmra.mrb[0].mxu0 %v334
      %v476 = vpop.f32.mrb[0].mxu0
      %v477 = vadd.f32 0.0, %v476
      %v478 = vpop.f32.mrb[0].mxu0
      %479 = vmatprep.mubr.f32.mxu0 0.0
      %480 = vmatmul.mubr.f32.gmra.mrb[0].mxu0 %v335
      %v481 = vpop.f32.mrb[0].mxu0
      %v482 = vadd.f32 0.0, %v481
      %v483 = vpop.f32.mrb[0].mxu0
      %484 = vmatprep.mubr.f32.mxu0 0.0
      %485 = vmatmul.mubr.f32.gmra.mrb[0].mxu0 %v336
      %v486 = vpop.f32.mrb[0].mxu0
      %v487 = vadd.f32 0.0, %v486
      %v488 = vpop.f32.mrb[0].mxu0
      %489 = vmatprep.mubr.f32.mxu0 0.0
      %490 = vmatmul.mubr.f32.gmra.mrb[0].mxu0 %v337
      %v491 = vpop.f32.mrb[0].mxu0
      %v492 = vadd.f32 0.0, %v491
      %v493 = vpop.f32.mrb[0].mxu0
      %494 = vmatprep.mubr.f32.mxu0 0.0
      %495 = vmatmul.mubr.f32.gmra.mrb[0].mxu0 %v338
      %v496 = vpop.f32.mrb[0].mxu0
      %v497 = vadd.f32 0.0, %v496
      %v498 = vpop.f32.mrb[0].mxu0
      %499 = vmatprep.mubr.f32.mxu0 0.0
      %500 = vmatmul.mubr.f32.gmra.mrb[0].mxu0 %v339
      %v501 = vpop.f32.mrb[0].mxu0
      %v502 = vadd.f32 0.0, %v501
      %v503 = vpop.f32.mrb[0].mxu0
      %504 = vmatprep.mubr.f32.mxu0 0.0
      %505 = vmatmul.mubr.f32.gmra.mrb[0].mxu0 %v340
      %v506 = vpop.f32.mrb[0].mxu0
      %v507 = vadd.f32 0.0, %v506
      %v508 = vpop.f32.mrb[0].mxu0
      %509 = vmatprep.mubr.f32.mxu0 0.0
      %510 = vmatmul.mubr.f32.gmra.mrb[0].mxu0 %v341
      %v511 = vpop.f32.mrb[0].mxu0
      %v512 = vadd.f32 0.0, %v511
      %v513 = vpop.f32.mrb[0].mxu0
      %514 = vmatprep.mubr.f32.mxu0 0.0
      %515 = vmatmul.mubr.f32.gmra.mrb[0].mxu0 %v342
      %v516 = vpop.f32.mrb[0].mxu0
      %v517 = vadd.f32 0.0, %v516
      %v518 = vpop.f32.mrb[0].mxu0
      %519 = vmatprep.mubr.f32.mxu0 0.0
      %520 = vmatmul.mubr.f32.gmra.mrb[0].mxu0 %v343
      %v521 = vpop.f32.mrb[0].mxu0
      %v522 = vadd.f32 0.0, %v521
      %v523 = vpop.f32.mrb[0].mxu0
      %524 = vmatprep.mubr.f32.mxu0 0.0
      %525 = vmatmul.mubr.f32.gmra.mrb[0].mxu0 %v344
      %v526 = vpop.f32.mrb[0].mxu0
      %v527 = vadd.f32 0.0, %v526
      %v528 = vpop.f32.mrb[0].mxu0
      %529 = vmatprep.mubr.f32.mxu0 0.0
      %530 = vmatmul.mubr.f32.gmra.mrb[0].mxu0 %v345
      %v531 = vpop.f32.mrb[0].mxu0
      %v532 = vadd.f32 0.0, %v531
      %v533 = vpop.f32.mrb[0].mxu0
      %534 = vmatprep.mubr.f32.mxu0 0.0
      %535 = vmatmul.mubr.f32.gmra.mrb[0].mxu0 %v346
      %v536 = vpop.f32.mrb[0].mxu0
      %v537 = vadd.f32 0.0, %v536
      %v538 = vpop.f32.mrb[0].mxu0
      %539 = vmatprep.mubr.f32.mxu0 0.0
      %540 = vmatmul.mubr.f32.gmra.mrb[0].mxu0 %v347
      %v541 = vpop.f32.mrb[0].mxu0
      %v542 = vadd.f32 0.0, %v541
      %v543 = vpop.f32.mrb[0].mxu0
      %544 = vmatprep.mubr.f32.mxu0 0.0
      %545 = vmatmul.mubr.f32.gmra.mrb[0].mxu0 %v348
      %v546 = vpop.f32.mrb[0].mxu0
      %v547 = vadd.f32 0.0, %v546
      %v548 = vpop.f32.mrb[0].mxu0
      %549 = vmatprep.mubr.f32.mxu0 0.0
      %550 = vmatmul.mubr.f32.gmra.mrb[0].mxu0 %v349
      %v551 = vpop.f32.mrb[0].mxu0
      %v552 = vadd.f32 0.0, %v551
      %v553 = vpop.f32.mrb[0].mxu0
      %554 = vmatprep.mubr.f32.mxu0 0.0
      %555 = vmatmul.mubr.f32.gmra.mrb[0].mxu0 %v350
      %v556 = vpop.f32.mrb[0].mxu0
      %v557 = vadd.f32 0.0, %v556
      %v558 = vpop.f32.mrb[0].mxu0
      %559 = vmatprep.mubr.f32.mxu0 0.0
      %560 = vmatmul.mubr.f32.gmra.mrb[0].mxu0 %v351
      %v561 = vpop.f32.mrb[0].mxu0
      %v562 = vadd.f32 0.0, %v561
      %v563 = vpop.f32.mrb[0].mxu0
      %564 = vmatprep.mubr.f32.mxu0 0.0
      %565 = vmatmul.mubr.f32.gmra.mrb[0].mxu0 %v352
      %v566 = vpop.f32.mrb[0].mxu0
      %v567 = vadd.f32 0.0, %v566
      %v568 = vpop.f32.mrb[0].mxu0
      %569 = vmatprep.mubr.f32.mxu0 0.0
      %570 = vmatmul.mubr.f32.gmra.mrb[0].mxu0 %v353
      %v571 = vpop.f32.mrb[0].mxu0
      %v572 = vadd.f32 0.0, %v571
      %v573 = vpop.f32.mrb[0].mxu0
      %574 = vmatprep.mubr.f32.mxu0 0.0
      %575 = vmatmul.mubr.f32.gmra.mrb[0].mxu0 %v354
      %v576 = vpop.f32.mrb[0].mxu0
      %v577 = vadd.f32 0.0, %v576
      %v578 = vpop.f32.mrb[0].mxu0
      %579 = vmatprep.mubr.f32.mxu0 0.0
      %580 = vmatmul.mubr.f32.gmra.mrb[0].mxu0 %v355
      %v581 = vpop.f32.mrb[0].mxu0
      %v582 = vadd.f32 0.0, %v581
      %v583 = vpop.f32.mrb[0].mxu0
      %584 = vmatprep.mubr.f32.mxu0 0.0
      %585 = vmatmul.mubr.f32.gmra.mrb[0].mxu0 %v356
      %v586 = vpop.f32.mrb[0].mxu0
      %v587 = vadd.f32 0.0, %v586
      %v588 = vpop.f32.mrb[0].mxu0
      %589 = vmatprep.mubr.f32.mxu0 0.0
      %590 = vmatmul.mubr.f32.gmra.mrb[0].mxu0 %v357
      %v591 = vpop.f32.mrb[0].mxu0
      %v592 = vadd.f32 0.0, %v591
      %v593 = vpop.f32.mrb[0].mxu0
      %594 = vmatprep.mubr.f32.mxu0 0.0
      %595 = vmatmul.mubr.f32.gmra.mrb[0].mxu0 %v358
      %v596 = vpop.f32.mrb[0].mxu0
      %v597 = vadd.f32 0.0, %v596
      %v598 = vpop.f32.mrb[0].mxu0
      %599 = vdwg.mxu0
      %v600 = vadd.f32 %v295, %v442
      %v601 = vadd.f32 %v296, %v447
      %v602 = vadd.f32 %v297, %v452
      %v603 = vadd.f32 %v298, %v457
      %v604 = vadd.f32 %v299, %v462
      %v605 = vadd.f32 %v300, %v467
      %v606 = vadd.f32 %v301, %v472
      %v607 = vadd.f32 %v302, %v477
      %v608 = vadd.f32 %v303, %v482
      %v609 = vadd.f32 %v304, %v487
      %v610 = vadd.f32 %v305, %v492
      %v611 = vadd.f32 %v306, %v497
      %v612 = vadd.f32 %v307, %v502
      %v613 = vadd.f32 %v308, %v507
      %v614 = vadd.f32 %v309, %v512
      %v615 = vadd.f32 %v310, %v517
      %v616 = vadd.f32 %v311, %v522
      %v617 = vadd.f32 %v312, %v527
      %v618 = vadd.f32 %v313, %v532
      %v619 = vadd.f32 %v314, %v537
      %v620 = vadd.f32 %v315, %v542
      %v621 = vadd.f32 %v316, %v547
      %v622 = vadd.f32 %v317, %v552
      %v623 = vadd.f32 %v318, %v557
      %v624 = vadd.f32 %v319, %v562
      %v625 = vadd.f32 %v320, %v567
      %v626 = vadd.f32 %v321, %v572
      %v627 = vadd.f32 %v322, %v577
      %v628 = vadd.f32 %v323, %v582
      %v629 = vadd.f32 %v324, %v587
      %v630 = vadd.f32 %v325, %v592
      %v631 = vadd.f32 %v326, %v597
      %632 = vst [vmem:[#allocation2] sm:$0xff] %v600
      %633 = vst [vmem:[#allocation2 + $0x8] sm:$0xff] %v601
      %634 = vst [vmem:[#allocation2 + $0x10] sm:$0xff] %v602
      %635 = vst [vmem:[#allocation2 + $0x18] sm:$0xff] %v603
      %636 = vst [vmem:[#allocation2 + $0x20] sm:$0xff] %v604
      %637 = vst [vmem:[#allocation2 + $0x28] sm:$0xff] %v605
      %638 = vst [vmem:[#allocation2 + $0x30] sm:$0xff] %v606
      %639 = vst [vmem:[#allocation2 + $0x38] sm:$0xff] %v607
      %640 = vst [vmem:[#allocation2 + $0x40] sm:$0xff] %v608
      %641 = vst [vmem:[#allocation2 + $0x48] sm:$0xff] %v609
      %642 = vst [vmem:[#allocation2 + $0x50] sm:$0xff] %v610
      %643 = vst [vmem:[#allocation2 + $0x58] sm:$0xff] %v611
      %644 = vst [vmem:[#allocation2 + $0x60] sm:$0xff] %v612
      %645 = vst [vmem:[#allocation2 + $0x68] sm:$0xff] %v613
      %646 = vst [vmem:[#allocation2 + $0x70] sm:$0xff] %v614
      %647 = vst [vmem:[#allocation2 + $0x78] sm:$0xff] %v615
      %648 = vst [vmem:[#allocation2 + $0x80] sm:$0xff] %v616
      %649 = vst [vmem:[#allocation2 + $0x88] sm:$0xff] %v617
      %650 = vst [vmem:[#allocation2 + $0x90] sm:$0xff] %v618
      %651 = vst [vmem:[#allocation2 + $0x98] sm:$0xff] %v619
      %652 = vst [vmem:[#allocation2 + $0xa0] sm:$0xff] %v620
      %653 = vst [vmem:[#allocation2 + $0xa8] sm:$0xff] %v621
      %654 = vst [vmem:[#allocation2 + $0xb0] sm:$0xff] %v622
      %655 = vst [vmem:[#allocation2 + $0xb8] sm:$0xff] %v623
      %656 = vst [vmem:[#allocation2 + $0xc0] sm:$0xff] %v624
      %657 = vst [vmem:[#allocation2 + $0xc8] sm:$0xff] %v625
      %658 = vst [vmem:[#allocation2 + $0xd0] sm:$0xff] %v626
      %659 = vst [vmem:[#allocation2 + $0xd8] sm:$0xff] %v627
      %660 = vst [vmem:[#allocation2 + $0xe0] sm:$0xff] %v628
      %661 = vst [vmem:[#allocation2 + $0xe8] sm:$0xff] %v629
      %662 = vst [vmem:[#allocation2 + $0xf0] sm:$0xff] %v630
      %663 = vst [vmem:[#allocation2 + $0xf8] sm:$0xff] %v631
      // Predicated region
      $region37: #{context_encoding_forward.5} parent=31 // pred_check
        %p664 = pneg %p259
      $region38: #{context_encoding_forward.5} parent=31 // pred_check_branch
        %666 = sbr.rel (%p664) target = $region40
      $region39: #{context_encoding_forward.5} parent=31 // pred_region
        %v667 = vld [vmem:[#allocation2] sm:$0xff]
        %v668 = vld [vmem:[#allocation2 + $0x8] sm:$0xff]
        %v669 = vld [vmem:[#allocation2 + $0x10] sm:$0xff]
        %v670 = vld [vmem:[#allocation2 + $0x18] sm:$0xff]
        %v671 = vld [vmem:[#allocation2 + $0x20] sm:$0xff]
        %v672 = vld [vmem:[#allocation2 + $0x28] sm:$0xff]
        %v673 = vld [vmem:[#allocation2 + $0x30] sm:$0xff]
        %v674 = vld [vmem:[#allocation2 + $0x38] sm:$0xff]
        %v675 = vld [vmem:[#allocation2 + $0x40] sm:$0xff]
        %v676 = vld [vmem:[#allocation2 + $0x48] sm:$0xff]
        %v677 = vld [vmem:[#allocation2 + $0x50] sm:$0xff]
        %v678 = vld [vmem:[#allocation2 + $0x58] sm:$0xff]
        %v679 = vld [vmem:[#allocation2 + $0x60] sm:$0xff]
        %v680 = vld [vmem:[#allocation2 + $0x68] sm:$0xff]
        %v681 = vld [vmem:[#allocation2 + $0x70] sm:$0xff]
        %v682 = vld [vmem:[#allocation2 + $0x78] sm:$0xff]
        %v683 = vld [vmem:[#allocation2 + $0x80] sm:$0xff]
        %v684 = vld [vmem:[#allocation2 + $0x88] sm:$0xff]
        %v685 = vld [vmem:[#allocation2 + $0x90] sm:$0xff]
        %v686 = vld [vmem:[#allocation2 + $0x98] sm:$0xff]
        %v687 = vld [vmem:[#allocation2 + $0xa0] sm:$0xff]
        %v688 = vld [vmem:[#allocation2 + $0xa8] sm:$0xff]
        %v689 = vld [vmem:[#allocation2 + $0xb0] sm:$0xff]
        %v690 = vld [vmem:[#allocation2 + $0xb8] sm:$0xff]
        %v691 = vld [vmem:[#allocation2 + $0xc0] sm:$0xff]
        %v692 = vld [vmem:[#allocation2 + $0xc8] sm:$0xff]
        %v693 = vld [vmem:[#allocation2 + $0xd0] sm:$0xff]
        %v694 = vld [vmem:[#allocation2 + $0xd8] sm:$0xff]
        %v695 = vld [vmem:[#allocation2 + $0xe0] sm:$0xff]
        %v696 = vld [vmem:[#allocation2 + $0xe8] sm:$0xff]
        %v697 = vld [vmem:[#allocation2 + $0xf0] sm:$0xff]
        %v698 = vld [vmem:[#allocation2 + $0xf8] sm:$0xff]
        %v699 = vld [vmem:[%s249] sm:$0x1]
        %v701 = vlaneseq
        %v702 = vshrl.u32 %v701, 7
        %v703 = vsub.s32 0, %v702
        %v704 = vrot.slane %v699, %v703
        %v706 = vadd.f32 %v667, %v704
        %v707 = vadd.f32 %v668, %v704
        %v708 = vadd.f32 %v669, %v704
        %v709 = vadd.f32 %v670, %v704
        %v710 = vadd.f32 %v671, %v704
        %v711 = vadd.f32 %v672, %v704
        %v712 = vadd.f32 %v673, %v704
        %v713 = vadd.f32 %v674, %v704
        %v714 = vadd.f32 %v675, %v704
        %v715 = vadd.f32 %v676, %v704
        %v716 = vadd.f32 %v677, %v704
        %v717 = vadd.f32 %v678, %v704
        %v718 = vadd.f32 %v679, %v704
        %v719 = vadd.f32 %v680, %v704
        %v720 = vadd.f32 %v681, %v704
        %v721 = vadd.f32 %v682, %v704
        %v722 = vadd.f32 %v683, %v704
        %v723 = vadd.f32 %v684, %v704
        %v724 = vadd.f32 %v685, %v704
        %v725 = vadd.f32 %v686, %v704
        %v726 = vadd.f32 %v687, %v704
        %v727 = vadd.f32 %v688, %v704
        %v728 = vadd.f32 %v689, %v704
        %v729 = vadd.f32 %v690, %v704
        %v730 = vadd.f32 %v691, %v704
        %v731 = vadd.f32 %v692, %v704
        %v732 = vadd.f32 %v693, %v704
        %v733 = vadd.f32 %v694, %v704
        %v734 = vadd.f32 %v695, %v704
        %v735 = vadd.f32 %v696, %v704
        %v736 = vadd.f32 %v697, %v704
        %v737 = vadd.f32 %v698, %v704
        %v738 = vmax.f32 %v706, 0.0
        %v739 = vmax.f32 %v707, 0.0
        %v740 = vmax.f32 %v708, 0.0
        %v741 = vmax.f32 %v709, 0.0
        %v742 = vmax.f32 %v710, 0.0
        %v743 = vmax.f32 %v711, 0.0
        %v744 = vmax.f32 %v712, 0.0
        %v745 = vmax.f32 %v713, 0.0
        %v746 = vmax.f32 %v714, 0.0
        %v747 = vmax.f32 %v715, 0.0
        %v748 = vmax.f32 %v716, 0.0
        %v749 = vmax.f32 %v717, 0.0
        %v750 = vmax.f32 %v718, 0.0
        %v751 = vmax.f32 %v719, 0.0
        %v752 = vmax.f32 %v720, 0.0
        %v753 = vmax.f32 %v721, 0.0
        %v754 = vmax.f32 %v722, 0.0
        %v755 = vmax.f32 %v723, 0.0
        %v756 = vmax.f32 %v724, 0.0
        %v757 = vmax.f32 %v725, 0.0
        %v758 = vmax.f32 %v726, 0.0
        %v759 = vmax.f32 %v727, 0.0
        %v760 = vmax.f32 %v728, 0.0
        %v761 = vmax.f32 %v729, 0.0
        %v762 = vmax.f32 %v730, 0.0
        %v763 = vmax.f32 %v731, 0.0
        %v764 = vmax.f32 %v732, 0.0
        %v765 = vmax.f32 %v733, 0.0
        %v766 = vmax.f32 %v734, 0.0
        %v767 = vmax.f32 %v735, 0.0
        %v768 = vmax.f32 %v736, 0.0
        %v769 = vmax.f32 %v737, 0.0
        %770 = vst [vmem:[%s257] sm:$0xff] %v738
        %771 = vst [vmem:[%s257 + $0x8] sm:$0xff] %v739
        %772 = vst [vmem:[%s257 + $0x10] sm:$0xff] %v740
        %773 = vst [vmem:[%s257 + $0x18] sm:$0xff] %v741
        %774 = vst [vmem:[%s257 + $0x20] sm:$0xff] %v742
        %775 = vst [vmem:[%s257 + $0x28] sm:$0xff] %v743
        %776 = vst [vmem:[%s257 + $0x30] sm:$0xff] %v744
        %777 = vst [vmem:[%s257 + $0x38] sm:$0xff] %v745
        %778 = vst [vmem:[%s257 + $0x40] sm:$0xff] %v746
        %779 = vst [vmem:[%s257 + $0x48] sm:$0xff] %v747
        %780 = vst [vmem:[%s257 + $0x50] sm:$0xff] %v748
        %781 = vst [vmem:[%s257 + $0x58] sm:$0xff] %v749
        %782 = vst [vmem:[%s257 + $0x60] sm:$0xff] %v750
        %783 = vst [vmem:[%s257 + $0x68] sm:$0xff] %v751
        %784 = vst [vmem:[%s257 + $0x70] sm:$0xff] %v752
        %785 = vst [vmem:[%s257 + $0x78] sm:$0xff] %v753
        %786 = vst [vmem:[%s257 + $0x80] sm:$0xff] %v754
        %787 = vst [vmem:[%s257 + $0x88] sm:$0xff] %v755
        %788 = vst [vmem:[%s257 + $0x90] sm:$0xff] %v756
        %789 = vst [vmem:[%s257 + $0x98] sm:$0xff] %v757
        %790 = vst [vmem:[%s257 + $0xa0] sm:$0xff] %v758
        %791 = vst [vmem:[%s257 + $0xa8] sm:$0xff] %v759
        %792 = vst [vmem:[%s257 + $0xb0] sm:$0xff] %v760
        %793 = vst [vmem:[%s257 + $0xb8] sm:$0xff] %v761
        %794 = vst [vmem:[%s257 + $0xc0] sm:$0xff] %v762
        %795 = vst [vmem:[%s257 + $0xc8] sm:$0xff] %v763
        %796 = vst [vmem:[%s257 + $0xd0] sm:$0xff] %v764
        %797 = vst [vmem:[%s257 + $0xd8] sm:$0xff] %v765
        %798 = vst [vmem:[%s257 + $0xe0] sm:$0xff] %v766
        %799 = vst [vmem:[%s257 + $0xe8] sm:$0xff] %v767
        %800 = vst [vmem:[%s257 + $0xf0] sm:$0xff] %v768
        %801 = vst [vmem:[%s257 + $0xf8] sm:$0xff] %v769
      $region40: #{context_encoding_forward.5} parent=31 // pred_fallthru
        _
      %s802 = smul.u32 32, %s19
      %p803 = scmp.lt.s32.totalorder %s802, 255
      %s804 = scalar_select %p803, %s802, 255
      %p805 = scmp.lt.s32.totalorder %s20, 0
      %s806 = scalar_select %p805, %s20, 0
      %s807 = sadd.s32 %s806, %s804
      %s808 = smul.addr %s807, 8
      %s809 = scalar_lea.vmem %s3, %s808
      // Predicated region
      $region41: #{context_encoding_forward.5} parent=31 // pred_check
        %p810 = pneg %p135
      $region42: #{context_encoding_forward.5} parent=31 // pred_check_branch
        %812 = sbr.rel (%p810) target = $region44
      $region43: #{context_encoding_forward.5} parent=31 // pred_region
        %s813 = smul.u32 32, %s19
      $region44: #{context_encoding_forward.5} parent=31 // pred_fallthru
        _
    $region32: #{context_encoding_forward.5} parent=5 // pred_fallthru
      _
    %p814 = scmp.le.s32.totalorder 2, %s9
    // Predicated region
    $region45: #{context_encoding_forward.5} parent=5 // pred_check
      %p815 = pneg %p814
    $region46: #{context_encoding_forward.5} parent=5 // pred_check_branch
      %817 = sbr.rel (%p815) target = $region48
    $region47: #{context_encoding_forward.5} parent=5 // pred_region
      %s818 = ssub.s32 %s9, 2
      // Predicated region
      $region49: #{context_encoding_forward.5} parent=47 // pred_check
        %p819 = pneg %p141
      $region50: #{context_encoding_forward.5} parent=47 // pred_check_branch
        %821 = sbr.rel (%p819) target = $region52
      $region51: #{context_encoding_forward.5} parent=47 // pred_region
        %s822 = smul.u32 32, %s22
        %p823 = scmp.lt.s32.totalorder %s822, 255
        %s824 = scalar_select %p823, %s822, 255
        %p825 = scmp.lt.s32.totalorder %s23, 0
        %s826 = scalar_select %p825, %s23, 0
        %s827 = sadd.s32 %s826, %s824
        %s828 = smul.addr %s827, 8
        %s829 = scalar_lea.vmem %s3, %s828
      $region52: #{context_encoding_forward.5} parent=47 // pred_fallthru
        _
    $region48: #{context_encoding_forward.5} parent=5 // pred_fallthru
      _
  $region6: #{context_encoding_forward.5} parent=0 // loop_footer
    %s13 = sadd.s32 1, %s9
  $region7: #{context_encoding_forward.5} parent=0 // loop_footer_branch
    %8 = sbr.rel target = $region3
  $region8: #{context_encoding_forward.5} parent=0 // loop_exit
    _

// kernel: context_encoding_forward.6
$region0: #{context_encoding_forward.6}
  #allocation0 [shape = 'u32[]', space=smem, size = 0x4, offset = 0x4, fixed_abs, tag = 'smem constant byte address 0x4 - core index']
  #allocation1 [shape = 'u32[144,128]{1,0:T(1,128)}', space=vmem, size = 0x12000, scoped, tag = 'internal scratch']
  #allocation2 [shape = 'f32[256,128]{1,0:T(8,128)}', space=vmem, size = 0x20000, scoped, tag = 'scratch operand']
  %s0 = inlined_call_operand.vmem [shape: f32[512,1152], index: 0, kind: input, shape index: {}]
  %s1 = inlined_call_operand.vmem [shape: f32[1152,128], index: 1, kind: input, shape index: {}]
  %s2 = inlined_call_operand.vmem [shape: f32[1,128], index: 2, kind: input, shape index: {}]
  %s3 = inlined_call_operand.vmem [shape: f32[512,128], index: 3, kind: output, shape index: {}]
  %s4 = sld [smem:[#allocation0]]
  $region76: #{context_encoding_forward.6} parent=0
    _
  %s6 = ssub.s32 1, %s4
  %s7 = scalar_select 0, %s6, %s4
  $region1: #{context_encoding_forward.6} parent=0
    #allocation3 [shape = 'u8[786432]{0}', space=vmem, size = 0xc0000, scoped, tag = 'input window, operand 0']
    loop: start=0, step=1, limit=8
    $region2: #{context_encoding_forward.6} parent=1 // loop_pre_header
      _
    $region3: #{context_encoding_forward.6} parent=1 // loop_header
      %s9 = sphi 0, %s13
      %p10 = scmp.ge.s32.totalorder %s9, 8
      %s16 = sphi 0, %s35
      %s17 = sphi 0, %s31
      %s18 = sphi 0, %s27
      %s19 = sphi 0, %s16
      %s20 = sphi 0, %s17
      %s21 = sphi 0, %s18
      %s22 = sphi 0, %s19
      %s23 = sphi 0, %s20
      %s24 = sphi 0, %s21
      %s40 = sphi 0, %s42
      %s43 = sphi 0, %s40
      %s44 = sphi 0, %s43
      %s60 = sphi 0, %s44
      %s68 = sphi 0, %s70
      %s71 = sphi 0, %s68
      %s72 = sphi 0, %s71
      %s88 = sphi 0, %s72
      %s94 = sphi 0, %s96
      %s97 = sphi 0, %s94
      %s98 = sphi 0, %s97
      %s114 = sphi 0, %s98
      %s122 = sphi 0, %s124
      %s125 = sphi 0, %s122
      %s126 = sphi 0, %s125
      %s142 = sphi 0, %s126
    $region4: #{context_encoding_forward.6} parent=1 // loop_header_branch
      %12 = sbr.rel (%p10) target = $region8
    $region5: #{context_encoding_forward.6} parent=1 // loop_body
      %s14 = ssub.s32 %s9, 1
      %s15 = ssub.s32 %s9, 2
      %s25 = sadd.s32 1, %s18
      %p26 = scmp.ge.s32.totalorder %s25, 3
      %s27 = scalar_select %p26, 0, %s25
      %s28 = sadd.s32 1, %s17
      %s29 = scalar_select %p26, %s28, %s17
      %p30 = scmp.ge.s32.totalorder %s29, 1
      %s31 = scalar_select %p30, 0, %s29
      %s32 = sadd.s32 1, %s16
      %s33 = scalar_select %p30, %s32, %s16
      %p34 = scmp.ge.s32.totalorder %s33, 2
      %s35 = scalar_select %p34, 0, %s33
      %s36 = ssub.s32 %s16, %s35
      %s37 = ssub.s32 %s18, %s27
      %s38 = sor.u32 %s36, %s37
      %p39 = scmp.eq.s32.totalorder %s38, 0
      %s41 = sadd.s32 %s40, 1
      %s42 = scalar_select %p39, %s40, %s41
      %p45 = pneg %p39
      %p46 = scmp.eq.s32.totalorder %s9, 5
      %p47 = por %p45, %p46
      %p48 = scmp.ne.s32.totalorder %s40, %s43
      %p49 = scmp.eq.s32.totalorder %s9, 0
      %p50 = por %p48, %p49
      %p51 = scmp.ne.s32.totalorder %s40, %s43
      %p52 = scmp.eq.s32.totalorder %s14, 5
      %p53 = por %p51, %p52
      %p54 = scmp.ne.s32.totalorder %s43, %s44
      %p55 = scmp.eq.s32.totalorder %s14, 0
      %p56 = por %p54, %p55
      %p57 = scmp.ne.s32.totalorder %s43, %s44
      %p58 = scmp.eq.s32.totalorder %s15, 5
      %p59 = por %p57, %p58
      %p61 = scmp.ne.s32.totalorder %s44, %s60
      %p62 = scmp.eq.s32.totalorder %s15, 0
      %p63 = por %p61, %p62
      %s64 = ssub.s32 %s18, %s27
      %s65 = ssub.s32 %s17, %s31
      %s66 = sor.u32 %s64, %s65
      %p67 = scmp.eq.s32.totalorder %s66, 0
      %s69 = sadd.s32 %s68, 1
      %s70 = scalar_select %p67, %s68, %s69
      %p73 = pneg %p67
      %p74 = scmp.eq.s32.totalorder %s9, 5
      %p75 = por %p73, %p74
      %p76 = scmp.ne.s32.totalorder %s68, %s71
      %p77 = scmp.eq.s32.totalorder %s9, 0
      %p78 = por %p76, %p77
      %p79 = scmp.ne.s32.totalorder %s68, %s71
      %p80 = scmp.eq.s32.totalorder %s14, 5
      %p81 = por %p79, %p80
      %p82 = scmp.ne.s32.totalorder %s71, %s72
      %p83 = scmp.eq.s32.totalorder %s14, 0
      %p84 = por %p82, %p83
      %p85 = scmp.ne.s32.totalorder %s71, %s72
      %p86 = scmp.eq.s32.totalorder %s15, 5
      %p87 = por %p85, %p86
      %p89 = scmp.ne.s32.totalorder %s72, %s88
      %p90 = scmp.eq.s32.totalorder %s15, 0
      %p91 = por %p89, %p90
      %s92 = ssub.s32 %s17, %s31
      %p93 = scmp.eq.s32.totalorder %s92, 0
      %s95 = sadd.s32 %s94, 1
      %s96 = scalar_select %p93, %s94, %s95
      %p99 = pneg %p93
      %p100 = scmp.eq.s32.totalorder %s9, 5
      %p101 = por %p99, %p100
      %p102 = scmp.ne.s32.totalorder %s94, %s97
      %p103 = scmp.eq.s32.totalorder %s9, 0
      %p104 = por %p102, %p103
      %p105 = scmp.ne.s32.totalorder %s94, %s97
      %p106 = scmp.eq.s32.totalorder %s14, 5
      %p107 = por %p105, %p106
      %p108 = scmp.ne.s32.totalorder %s97, %s98
      %p109 = scmp.eq.s32.totalorder %s14, 0
      %p110 = por %p108, %p109
      %p111 = scmp.ne.s32.totalorder %s97, %s98
      %p112 = scmp.eq.s32.totalorder %s15, 5
      %p113 = por %p111, %p112
      %p115 = scmp.ne.s32.totalorder %s98, %s114
      %p116 = scmp.eq.s32.totalorder %s15, 0
      %p117 = por %p115, %p116
      %s118 = ssub.s32 %s16, %s35
      %s119 = ssub.s32 %s17, %s31
      %s120 = sor.u32 %s118, %s119
      %p121 = scmp.eq.s32.totalorder %s120, 0
      %s123 = sadd.s32 %s122, 1
      %s124 = scalar_select %p121, %s122, %s123
      %p127 = pneg %p121
      %p128 = scmp.eq.s32.totalorder %s9, 5
      %p129 = por %p127, %p128
      %p130 = scmp.ne.s32.totalorder %s122, %s125
      %p131 = scmp.eq.s32.totalorder %s9, 0
      %p132 = por %p130, %p131
      %p133 = scmp.ne.s32.totalorder %s122, %s125
      %p134 = scmp.eq.s32.totalorder %s14, 5
      %p135 = por %p133, %p134
      %p136 = scmp.ne.s32.totalorder %s125, %s126
      %p137 = scmp.eq.s32.totalorder %s14, 0
      %p138 = por %p136, %p137
      %p139 = scmp.ne.s32.totalorder %s125, %s126
      %p140 = scmp.eq.s32.totalorder %s15, 5
      %p141 = por %p139, %p140
      %p143 = scmp.ne.s32.totalorder %s126, %s142
      %p144 = scmp.eq.s32.totalorder %s15, 0
      %p145 = por %p143, %p144
      %p146 = scmp.le.s32.totalorder 1, %s9
      %p147 = scmp.lt.s32.totalorder %s9, 7
      %p148 = pnand %p146, %p147
      %p149 = pneg %p148
      // Predicated region
      $region9: #{context_encoding_forward.6} parent=5 // pred_check
        _
      $region10: #{context_encoding_forward.6} parent=5 // pred_check_branch
        %151 = sbr.rel (%p148) target = $region12
      $region11: #{context_encoding_forward.6} parent=5 // pred_region
        %s152 = ssub.s32 %s9, 1
        // Predicated region
        $region13: #{context_encoding_forward.6} parent=11 // pred_check
          %p153 = pneg %p110
        $region14: #{context_encoding_forward.6} parent=11 // pred_check_branch
          %155 = sbr.rel (%p153) target = $region16
        $region15: #{context_encoding_forward.6} parent=11 // pred_region
          %p156 = scmp.lt.s32.totalorder %s20, 0
          %s157 = scalar_select %p156, %s20, 0
          %s158 = scalar_lea.vmem %s2, %s157
        $region16: #{context_encoding_forward.6} parent=11 // pred_fallthru
          _
      $region12: #{context_encoding_forward.6} parent=5 // pred_fallthru
        _
      %p159 = scmp.lt.s32.totalorder %s9, 6
      // Predicated region
      $region17: #{context_encoding_forward.6} parent=5 // pred_check
        %p160 = pneg %p159
      $region18: #{context_encoding_forward.6} parent=5 // pred_check_branch
        %162 = sbr.rel (%p160) target = $region20
      $region19: #{context_encoding_forward.6} parent=5 // pred_region
        // Predicated region
        $region21: #{context_encoding_forward.6} parent=19 // pred_check
          %p163 = pneg %p50
        $region22: #{context_encoding_forward.6} parent=19 // pred_check_branch
          %165 = sbr.rel (%p163) target = $region24
        $region23: #{context_encoding_forward.6} parent=19 // pred_region
          %s166 = sand.u32 %s40, 1
          %s167 = sand.u32 %s40, 1
          %s168 = smul.addr %s167, 768
          %s169 = scalar_lea.vmem [#allocation3], %s168
          %s170 = smul.u32 32, %s16
          %s171 = smul.u32 3, %s18
          %s172 = smul.addr %s170, 9
          %s173 = sadd.s32 %s171, %s172
          %s174 = smul.addr %s173, 8
          %s175 = scalar_lea.vmem %s0, %s174
          // Predicated region
          $region25: #{context_encoding_forward.6} parent=23 // pred_check
            _
          $region26: #{context_encoding_forward.6} parent=23 // pred_check_branch
            %177 = sbr.rel (0) target = $region28
          $region27: #{context_encoding_forward.6} parent=23 // pred_region
            // Predicated region
            $region29: #{context_encoding_forward.6} parent=27 // pred_check
              _
            $region30: #{context_encoding_forward.6} parent=27 // pred_check_branch
              %179 = sbr.rel (0) target = $region32
            $region31: #{context_encoding_forward.6} parent=27 // pred_region
              loop: start=0, step=1, limit=1
              $region33: #{context_encoding_forward.6} parent=31 // loop_pre_header
                _
              $region34: #{context_encoding_forward.6} parent=31 // loop_header
                %s181 = sphi 0, %s185
                %p182 = scmp.ge.s32.totalorder %s181, 1
                %s186 = sphi %s175, %s175
                %s187 = sphi %s169, %s169
              $region35: #{context_encoding_forward.6} parent=31 // loop_header_branch
                %184 = sbr.rel (%p182) target = $region39
              $region36: #{context_encoding_forward.6} parent=31 // loop_body
                %v188 = vld [vmem:[%s186] sm:$0xff]
                %189 = vst [vmem:[%s187] sm:$0xff] %v188
                %v190 = vld [vmem:[%s186 + $0x8] sm:$0xff]
                %191 = vst [vmem:[%s187 + $0x8] sm:$0xff] %v190
                %v192 = vld [vmem:[%s186 + $0x10] sm:$0xff]
                %193 = vst [vmem:[%s187 + $0x10] sm:$0xff] %v192
                %v194 = vld [vmem:[%s186 + $0x48] sm:$0xff]
                %195 = vst [vmem:[%s187 + $0x18] sm:$0xff] %v194
                %v196 = vld [vmem:[%s186 + $0x50] sm:$0xff]
                %197 = vst [vmem:[%s187 + $0x20] sm:$0xff] %v196
                %v198 = vld [vmem:[%s186 + $0x58] sm:$0xff]
                %199 = vst [vmem:[%s187 + $0x28] sm:$0xff] %v198
                %v200 = vld [vmem:[%s186 + $0x90] sm:$0xff]
                %201 = vst [vmem:[%s187 + $0x30] sm:$0xff] %v200
                %v202 = vld [vmem:[%s186 + $0x98] sm:$0xff]
                %203 = vst [vmem:[%s187 + $0x38] sm:$0xff] %v202
                %v204 = vld [vmem:[%s186 + $0xa0] sm:$0xff]
                %205 = vst [vmem:[%s187 + $0x40] sm:$0xff] %v204
                %v206 = vld [vmem:[%s186 + $0xd8] sm:$0xff]
                %207 = vst [vmem:[%s187 + $0x48] sm:$0xff] %v206
                %v208 = vld [vmem:[%s186 + $0xe0] sm:$0xff]
                %209 = vst [vmem:[%s187 + $0x50] sm:$0xff] %v208
                %v210 = vld [vmem:[%s186 + $0xe8] sm:$0xff]
                %211 = vst [vmem:[%s187 + $0x58] sm:$0xff] %v210
                %v212 = vld [vmem:[%s186 + $0x120] sm:$0xff]
                %213 = vst [vmem:[%s187 + $0x60] sm:$0xff] %v212
                %v214 = vld [vmem:[%s186 + $0x128] sm:$0xff]
                %215 = vst [vmem:[%s187 + $0x68] sm:$0xff] %v214
                %v216 = vld [vmem:[%s186 + $0x130] sm:$0xff]
                %217 = vst [vmem:[%s187 + $0x70] sm:$0xff] %v216
                %v218 = vld [vmem:[%s186 + $0x168] sm:$0xff]
                %219 = vst [vmem:[%s187 + $0x78] sm:$0xff] %v218
                %v220 = vld [vmem:[%s186 + $0x170] sm:$0xff]
                %221 = vst [vmem:[%s187 + $0x80] sm:$0xff] %v220
                %v222 = vld [vmem:[%s186 + $0x178] sm:$0xff]
                %223 = vst [vmem:[%s187 + $0x88] sm:$0xff] %v222
                %v224 = vld [vmem:[%s186 + $0x1b0] sm:$0xff]
                %225 = vst [vmem:[%s187 + $0x90] sm:$0xff] %v224
                %v226 = vld [vmem:[%s186 + $0x1b8] sm:$0xff]
                %227 = vst [vmem:[%s187 + $0x98] sm:$0xff] %v226
                %v228 = vld [vmem:[%s186 + $0x1c0] sm:$0xff]
                %229 = vst [vmem:[%s187 + $0xa0] sm:$0xff] %v228
                %v230 = vld [vmem:[%s186 + $0x1f8] sm:$0xff]
                %231 = vst [vmem:[%s187 + $0xa8] sm:$0xff] %v230
                %v232 = vld [vmem:[%s186 + $0x200] sm:$0xff]
                %233 = vst [vmem:[%s187 + $0xb0] sm:$0xff] %v232
                %v234 = vld [vmem:[%s186 + $0x208] sm:$0xff]
                %235 = vst [vmem:[%s187 + $0xb8] sm:$0xff] %v234
                %v236 = vld [vmem:[%s186 + $0x240] sm:$0xff]
                %237 = vst [vmem:[%s187 + $0xc0] sm:$0xff] %v236
                %v238 = vld [vmem:[%s186 + $0x248] sm:$0xff]
                %239 = vst [vmem:[%s187 + $0xc8] sm:$0xff] %v238
                %v240 = vld [vmem:[%s186 + $0x250] sm:$0xff]
                %241 = vst [vmem:[%s187 + $0xd0] sm:$0xff] %v240
                %v242 = vld [vmem:[%s186 + $0x288] sm:$0xff]
                %243 = vst [vmem:[%s187 + $0xd8] sm:$0xff] %v242
                %v244 = vld [vmem:[%s186 + $0x290] sm:$0xff]
                %245 = vst [vmem:[%s187 + $0xe0] sm:$0xff] %v244
                %v246 = vld [vmem:[%s186 + $0x298] sm:$0xff]
                %247 = vst [vmem:[%s187 + $0xe8] sm:$0xff] %v246
                %v248 = vld [vmem:[%s186 + $0x2d0] sm:$0xff]
                %249 = vst [vmem:[%s187 + $0xf0] sm:$0xff] %v248
                %v250 = vld [vmem:[%s186 + $0x2d8] sm:$0xff]
                %251 = vst [vmem:[%s187 + $0xf8] sm:$0xff] %v250
                %v252 = vld [vmem:[%s186 + $0x2e0] sm:$0xff]
                %253 = vst [vmem:[%s187 + $0x100] sm:$0xff] %v252
                %v254 = vld [vmem:[%s186 + $0x318] sm:$0xff]
                %255 = vst [vmem:[%s187 + $0x108] sm:$0xff] %v254
                %v256 = vld [vmem:[%s186 + $0x320] sm:$0xff]
                %257 = vst [vmem:[%s187 + $0x110] sm:$0xff] %v256
                %v258 = vld [vmem:[%s186 + $0x328] sm:$0xff]
                %259 = vst [vmem:[%s187 + $0x118] sm:$0xff] %v258
                %v260 = vld [vmem:[%s186 + $0x360] sm:$0xff]
                %261 = vst [vmem:[%s187 + $0x120] sm:$0xff] %v260
                %v262 = vld [vmem:[%s186 + $0x368] sm:$0xff]
                %263 = vst [vmem:[%s187 + $0x128] sm:$0xff] %v262
                %v264 = vld [vmem:[%s186 + $0x370] sm:$0xff]
                %265 = vst [vmem:[%s187 + $0x130] sm:$0xff] %v264
                %v266 = vld [vmem:[%s186 + $0x3a8] sm:$0xff]
                %267 = vst [vmem:[%s187 + $0x138] sm:$0xff] %v266
                %v268 = vld [vmem:[%s186 + $0x3b0] sm:$0xff]
                %269 = vst [vmem:[%s187 + $0x140] sm:$0xff] %v268
                %v270 = vld [vmem:[%s186 + $0x3b8] sm:$0xff]
                %271 = vst [vmem:[%s187 + $0x148] sm:$0xff] %v270
                %v272 = vld [vmem:[%s186 + $0x3f0] sm:$0xff]
                %273 = vst [vmem:[%s187 + $0x150] sm:$0xff] %v272
                %v274 = vld [vmem:[%s186 + $0x3f8] sm:$0xff]
                %275 = vst [vmem:[%s187 + $0x158] sm:$0xff] %v274
                %v276 = vld [vmem:[%s186 + $0x400] sm:$0xff]
                %277 = vst [vmem:[%s187 + $0x160] sm:$0xff] %v276
                %v278 = vld [vmem:[%s186 + $0x438] sm:$0xff]
                %279 = vst [vmem:[%s187 + $0x168] sm:$0xff] %v278
                %v280 = vld [vmem:[%s186 + $0x440] sm:$0xff]
                %281 = vst [vmem:[%s187 + $0x170] sm:$0xff] %v280
                %v282 = vld [vmem:[%s186 + $0x448] sm:$0xff]
                %283 = vst [vmem:[%s187 + $0x178] sm:$0xff] %v282
                %v284 = vld [vmem:[%s186 + $0x480] sm:$0xff]
                %285 = vst [vmem:[%s187 + $0x180] sm:$0xff] %v284
                %v286 = vld [vmem:[%s186 + $0x488] sm:$0xff]
                %287 = vst [vmem:[%s187 + $0x188] sm:$0xff] %v286
                %v288 = vld [vmem:[%s186 + $0x490] sm:$0xff]
                %289 = vst [vmem:[%s187 + $0x190] sm:$0xff] %v288
                %v290 = vld [vmem:[%s186 + $0x4c8] sm:$0xff]
                %291 = vst [vmem:[%s187 + $0x198] sm:$0xff] %v290
                %v292 = vld [vmem:[%s186 + $0x4d0] sm:$0xff]
                %293 = vst [vmem:[%s187 + $0x1a0] sm:$0xff] %v292
                %v294 = vld [vmem:[%s186 + $0x4d8] sm:$0xff]
                %295 = vst [vmem:[%s187 + $0x1a8] sm:$0xff] %v294
                %v296 = vld [vmem:[%s186 + $0x510] sm:$0xff]
                %297 = vst [vmem:[%s187 + $0x1b0] sm:$0xff] %v296
                %v298 = vld [vmem:[%s186 + $0x518] sm:$0xff]
                %299 = vst [vmem:[%s187 + $0x1b8] sm:$0xff] %v298
                %v300 = vld [vmem:[%s186 + $0x520] sm:$0xff]
                %301 = vst [vmem:[%s187 + $0x1c0] sm:$0xff] %v300
                %v302 = vld [vmem:[%s186 + $0x558] sm:$0xff]
                %303 = vst [vmem:[%s187 + $0x1c8] sm:$0xff] %v302
                %v304 = vld [vmem:[%s186 + $0x560] sm:$0xff]
                %305 = vst [vmem:[%s187 + $0x1d0] sm:$0xff] %v304
                %v306 = vld [vmem:[%s186 + $0x568] sm:$0xff]
                %307 = vst [vmem:[%s187 + $0x1d8] sm:$0xff] %v306
                %v308 = vld [vmem:[%s186 + $0x5a0] sm:$0xff]
                %309 = vst [vmem:[%s187 + $0x1e0] sm:$0xff] %v308
                %v310 = vld [vmem:[%s186 + $0x5a8] sm:$0xff]
                %311 = vst [vmem:[%s187 + $0x1e8] sm:$0xff] %v310
                %v312 = vld [vmem:[%s186 + $0x5b0] sm:$0xff]
                %313 = vst [vmem:[%s187 + $0x1f0] sm:$0xff] %v312
                %v314 = vld [vmem:[%s186 + $0x5e8] sm:$0xff]
                %315 = vst [vmem:[%s187 + $0x1f8] sm:$0xff] %v314
                %v316 = vld [vmem:[%s186 + $0x5f0] sm:$0xff]
                %317 = vst [vmem:[%s187 + $0x200] sm:$0xff] %v316
                %v318 = vld [vmem:[%s186 + $0x5f8] sm:$0xff]
                %319 = vst [vmem:[%s187 + $0x208] sm:$0xff] %v318
                %v320 = vld [vmem:[%s186 + $0x630] sm:$0xff]
                %321 = vst [vmem:[%s187 + $0x210] sm:$0xff] %v320
                %v322 = vld [vmem:[%s186 + $0x638] sm:$0xff]
                %323 = vst [vmem:[%s187 + $0x218] sm:$0xff] %v322
                %v324 = vld [vmem:[%s186 + $0x640] sm:$0xff]
                %325 = vst [vmem:[%s187 + $0x220] sm:$0xff] %v324
                %v326 = vld [vmem:[%s186 + $0x678] sm:$0xff]
                %327 = vst [vmem:[%s187 + $0x228] sm:$0xff] %v326
                %v328 = vld [vmem:[%s186 + $0x680] sm:$0xff]
                %329 = vst [vmem:[%s187 + $0x230] sm:$0xff] %v328
                %v330 = vld [vmem:[%s186 + $0x688] sm:$0xff]
                %331 = vst [vmem:[%s187 + $0x238] sm:$0xff] %v330
                %v332 = vld [vmem:[%s186 + $0x6c0] sm:$0xff]
                %333 = vst [vmem:[%s187 + $0x240] sm:$0xff] %v332
                %v334 = vld [vmem:[%s186 + $0x6c8] sm:$0xff]
                %335 = vst [vmem:[%s187 + $0x248] sm:$0xff] %v334
                %v336 = vld [vmem:[%s186 + $0x6d0] sm:$0xff]
                %337 = vst [vmem:[%s187 + $0x250] sm:$0xff] %v336
                %v338 = vld [vmem:[%s186 + $0x708] sm:$0xff]
                %339 = vst [vmem:[%s187 + $0x258] sm:$0xff] %v338
                %v340 = vld [vmem:[%s186 + $0x710] sm:$0xff]
                %341 = vst [vmem:[%s187 + $0x260] sm:$0xff] %v340
                %v342 = vld [vmem:[%s186 + $0x718] sm:$0xff]
                %343 = vst [vmem:[%s187 + $0x268] sm:$0xff] %v342
                %v344 = vld [vmem:[%s186 + $0x750] sm:$0xff]
                %345 = vst [vmem:[%s187 + $0x270] sm:$0xff] %v344
                %v346 = vld [vmem:[%s186 + $0x758] sm:$0xff]
                %347 = vst [vmem:[%s187 + $0x278] sm:$0xff] %v346
                %v348 = vld [vmem:[%s186 + $0x760] sm:$0xff]
                %349 = vst [vmem:[%s187 + $0x280] sm:$0xff] %v348
                %v350 = vld [vmem:[%s186 + $0x798] sm:$0xff]
                %351 = vst [vmem:[%s187 + $0x288] sm:$0xff] %v350
                %v352 = vld [vmem:[%s186 + $0x7a0] sm:$0xff]
                %353 = vst [vmem:[%s187 + $0x290] sm:$0xff] %v352
                %v354 = vld [vmem:[%s186 + $0x7a8] sm:$0xff]
                %355 = vst [vmem:[%s187 + $0x298] sm:$0xff] %v354
                %v356 = vld [vmem:[%s186 + $0x7e0] sm:$0xff]
                %357 = vst [vmem:[%s187 + $0x2a0] sm:$0xff] %v356
                %v358 = vld [vmem:[%s186 + $0x7e8] sm:$0xff]
                %359 = vst [vmem:[%s187 + $0x2a8] sm:$0xff] %v358
                %v360 = vld [vmem:[%s186 + $0x7f0] sm:$0xff]
                %361 = vst [vmem:[%s187 + $0x2b0] sm:$0xff] %v360
                %v362 = vld [vmem:[%s186 + $0x828] sm:$0xff]
                %363 = vst [vmem:[%s187 + $0x2b8] sm:$0xff] %v362
                %v364 = vld [vmem:[%s186 + $0x830] sm:$0xff]
                %365 = vst [vmem:[%s187 + $0x2c0] sm:$0xff] %v364
                %v366 = vld [vmem:[%s186 + $0x838] sm:$0xff]
                %367 = vst [vmem:[%s187 + $0x2c8] sm:$0xff] %v366
                %v368 = vld [vmem:[%s186 + $0x870] sm:$0xff]
                %369 = vst [vmem:[%s187 + $0x2d0] sm:$0xff] %v368
                %v370 = vld [vmem:[%s186 + $0x878] sm:$0xff]
                %371 = vst [vmem:[%s187 + $0x2d8] sm:$0xff] %v370
                %v372 = vld [vmem:[%s186 + $0x880] sm:$0xff]
                %373 = vst [vmem:[%s187 + $0x2e0] sm:$0xff] %v372
                %v374 = vld [vmem:[%s186 + $0x8b8] sm:$0xff]
                %375 = vst [vmem:[%s187 + $0x2e8] sm:$0xff] %v374
                %v376 = vld [vmem:[%s186 + $0x8c0] sm:$0xff]
                %377 = vst [vmem:[%s187 + $0x2f0] sm:$0xff] %v376
                %v378 = vld [vmem:[%s186 + $0x8c8] sm:$0xff]
                %379 = vst [vmem:[%s187 + $0x2f8] sm:$0xff] %v378
              $region37: #{context_encoding_forward.6} parent=31 // loop_footer
                %s185 = sadd.s32 1, %s181
              $region38: #{context_encoding_forward.6} parent=31 // loop_footer_branch
                %180 = sbr.rel target = $region34
              $region39: #{context_encoding_forward.6} parent=31 // loop_exit
                _
            $region32: #{context_encoding_forward.6} parent=27 // pred_fallthru
              _
            // Predicated region
            $region40: #{context_encoding_forward.6} parent=27 // pred_check
              _
            $region41: #{context_encoding_forward.6} parent=27 // pred_check_branch
              %381 = sbr.rel target = $region43
            $region42: #{context_encoding_forward.6} parent=27 // pred_region
              _
            $region43: #{context_encoding_forward.6} parent=27 // pred_fallthru
              _
          $region28: #{context_encoding_forward.6} parent=23 // pred_fallthru
            _
          %382 = vnop
        $region24: #{context_encoding_forward.6} parent=19 // pred_fallthru
          _
        // Predicated region
        $region44: #{context_encoding_forward.6} parent=19 // pred_check
          %p383 = pneg %p78
        $region45: #{context_encoding_forward.6} parent=19 // pred_check_branch
          %385 = sbr.rel (%p383) target = $region47
        $region46: #{context_encoding_forward.6} parent=19 // pred_region
          %s386 = smul.u32 48, %s18
          %p387 = scmp.lt.s32.totalorder %s386, 143
          %s388 = scalar_select %p387, %s386, 143
          %p389 = scmp.lt.s32.totalorder %s17, 0
          %s390 = scalar_select %p389, %s17, 0
          %s391 = sadd.s32 %s390, %s388
          %s392 = smul.addr %s391, 8
          %s393 = scalar_lea.vmem %s1, %s392
          %s394 = smul.u32 48, %s18
        $region47: #{context_encoding_forward.6} parent=19 // pred_fallthru
          _
      $region20: #{context_encoding_forward.6} parent=5 // pred_fallthru
        _
      %p395 = scmp.le.s32.totalorder 1, %s9
      %p396 = scmp.lt.s32.totalorder %s9, 7
      %p397 = pnand %p395, %p396
      %p398 = pneg %p397
      // Predicated region
      $region48: #{context_encoding_forward.6} parent=5 // pred_check
        _
      $region49: #{context_encoding_forward.6} parent=5 // pred_check_branch
        %400 = sbr.rel (%p397) target = $region51
      $region50: #{context_encoding_forward.6} parent=5 // pred_region
        %s401 = ssub.s32 %s9, 1
        %s402 = sand.u32 %s43, 1
        %s403 = sand.u32 %s43, 1
        %s404 = smul.addr %s403, 768
        %s405 = scalar_lea.vmem [#allocation3], %s404
        // Predicated region
        $region52: #{context_encoding_forward.6} parent=50 // pred_check
          %p406 = pneg %p56
        $region53: #{context_encoding_forward.6} parent=50 // pred_check_branch
          %408 = sbr.rel (%p406) target = $region55
        $region54: #{context_encoding_forward.6} parent=50 // pred_region
          _
        $region55: #{context_encoding_forward.6} parent=50 // pred_fallthru
          _
        %s409 = sand.u32 %s43, 1
        %s410 = sand.u32 %s43, 1
        %s411 = smul.addr %s410, 768
        %s412 = scalar_lea.vmem [#allocation3], %s411
        %p413 = pneg %p56
        %p414 = pneg %p53
        %s415 = smul.u32 48, %s21
        %p416 = scmp.lt.s32.totalorder %s415, 143
        %s417 = scalar_select %p416, %s415, 143
        %p418 = scmp.lt.s32.totalorder %s20, 0
        %s419 = scalar_select %p418, %s20, 0
        %s420 = sadd.s32 %s419, %s417
        %s421 = smul.addr %s420, 8
        %s422 = scalar_lea.vmem %s1, %s421
        %p423 = pneg %p84
        %p424 = pneg %p81
        %p425 = scmp.lt.s32.totalorder %s20, 0
        %s426 = scalar_select %p425, %s20, 0
        %s427 = scalar_lea.vmem %s2, %s426
        %p428 = pneg %p110
        %p429 = pneg %p107
        %p430 = pneg %p138
        %p431 = pneg %p135
        %s432 = smul.u32 32, %s19
        %p433 = scmp.lt.s32.totalorder %s432, 63
        %s434 = scalar_select %p433, %s432, 63
        %p435 = scmp.lt.s32.totalorder %s20, 0
        %s436 = scalar_select %p435, %s20, 0
        %s437 = sadd.s32 %s436, %s434
        %s438 = smul.addr %s437, 8
        %s439 = scalar_lea.vmem %s3, %s438
        %s440 = smul.u32 32, %s19
        %s441 = smul.u32 3, %s21
        %s442 = smul.u32 48, %s21
        %p443 = scmp.lt.s32.totalorder %s442, 143
        %s444 = scalar_select %p443, %s442, 143
        %p445 = scmp.lt.s32.totalorder %s20, 0
        %s446 = scalar_select %p445, %s20, 0
        %s447 = sadd.s32 %s446, %s444
        %s448 = smul.addr %s447, 8
        %s449 = scalar_lea.vmem %s1, %s448
        %s450 = smul.u32 48, %s21
        %p451 = scmp.lt.s32.totalorder %s20, 0
        %s452 = scalar_select %p451, %s20, 0
        %s453 = scalar_lea.vmem %s2, %s452
        %s454 = smul.u32 32, %s19
        %p455 = scmp.lt.s32.totalorder %s454, 63
        %s456 = scalar_select %p455, %s454, 63
        %p457 = scmp.lt.s32.totalorder %s20, 0
        %s458 = scalar_select %p457, %s20, 0
        %s459 = sadd.s32 %s458, %s456
        %s460 = smul.addr %s459, 8
        %s461 = scalar_lea.vmem %s3, %s460
        %s462 = smul.u32 32, %s19
        %p463 = scmp.eq.s32.totalorder %s21, 0
        // Predicated region
        $region56: #{context_encoding_forward.6} parent=50 // pred_check
          %p464 = pneg %p463
        $region57: #{context_encoding_forward.6} parent=50 // pred_check_branch
          %466 = sbr.rel (%p464) target = $region59
        $region58: #{context_encoding_forward.6} parent=50 // pred_region
          %467 = vst [vmem:[#allocation2] sm:$0xff] 0.0
          %468 = vst [vmem:[#allocation2 + $0x8] sm:$0xff] 0.0
          %469 = vst [vmem:[#allocation2 + $0x10] sm:$0xff] 0.0
          %470 = vst [vmem:[#allocation2 + $0x18] sm:$0xff] 0.0
          %471 = vst [vmem:[#allocation2 + $0x20] sm:$0xff] 0.0
          %472 = vst [vmem:[#allocation2 + $0x28] sm:$0xff] 0.0
          %473 = vst [vmem:[#allocation2 + $0x30] sm:$0xff] 0.0
          %474 = vst [vmem:[#allocation2 + $0x38] sm:$0xff] 0.0
          %475 = vst [vmem:[#allocation2 + $0x40] sm:$0xff] 0.0
          %476 = vst [vmem:[#allocation2 + $0x48] sm:$0xff] 0.0
          %477 = vst [vmem:[#allocation2 + $0x50] sm:$0xff] 0.0
          %478 = vst [vmem:[#allocation2 + $0x58] sm:$0xff] 0.0
          %479 = vst [vmem:[#allocation2 + $0x60] sm:$0xff] 0.0
          %480 = vst [vmem:[#allocation2 + $0x68] sm:$0xff] 0.0
          %481 = vst [vmem:[#allocation2 + $0x70] sm:$0xff] 0.0
          %482 = vst [vmem:[#allocation2 + $0x78] sm:$0xff] 0.0
          %483 = vst [vmem:[#allocation2 + $0x80] sm:$0xff] 0.0
          %484 = vst [vmem:[#allocation2 + $0x88] sm:$0xff] 0.0
          %485 = vst [vmem:[#allocation2 + $0x90] sm:$0xff] 0.0
          %486 = vst [vmem:[#allocation2 + $0x98] sm:$0xff] 0.0
          %487 = vst [vmem:[#allocation2 + $0xa0] sm:$0xff] 0.0
          %488 = vst [vmem:[#allocation2 + $0xa8] sm:$0xff] 0.0
          %489 = vst [vmem:[#allocation2 + $0xb0] sm:$0xff] 0.0
          %490 = vst [vmem:[#allocation2 + $0xb8] sm:$0xff] 0.0
          %491 = vst [vmem:[#allocation2 + $0xc0] sm:$0xff] 0.0
          %492 = vst [vmem:[#allocation2 + $0xc8] sm:$0xff] 0.0
          %493 = vst [vmem:[#allocation2 + $0xd0] sm:$0xff] 0.0
          %494 = vst [vmem:[#allocation2 + $0xd8] sm:$0xff] 0.0
          %495 = vst [vmem:[#allocation2 + $0xe0] sm:$0xff] 0.0
          %496 = vst [vmem:[#allocation2 + $0xe8] sm:$0xff] 0.0
          %497 = vst [vmem:[#allocation2 + $0xf0] sm:$0xff] 0.0
          %498 = vst [vmem:[#allocation2 + $0xf8] sm:$0xff] 0.0
        $region59: #{context_encoding_forward.6} parent=50 // pred_fallthru
          _
        %v499 = vld [vmem:[#allocation2] sm:$0xff]
        %v500 = vld [vmem:[#allocation2 + $0x8] sm:$0xff]
        %v501 = vld [vmem:[#allocation2 + $0x10] sm:$0xff]
        %v502 = vld [vmem:[#allocation2 + $0x18] sm:$0xff]
        %v503 = vld [vmem:[#allocation2 + $0x20] sm:$0xff]
        %v504 = vld [vmem:[#allocation2 + $0x28] sm:$0xff]
        %v505 = vld [vmem:[#allocation2 + $0x30] sm:$0xff]
        %v506 = vld [vmem:[#allocation2 + $0x38] sm:$0xff]
        %v507 = vld [vmem:[#allocation2 + $0x40] sm:$0xff]
        %v508 = vld [vmem:[#allocation2 + $0x48] sm:$0xff]
        %v509 = vld [vmem:[#allocation2 + $0x50] sm:$0xff]
        %v510 = vld [vmem:[#allocation2 + $0x58] sm:$0xff]
        %v511 = vld [vmem:[#allocation2 + $0x60] sm:$0xff]
        %v512 = vld [vmem:[#allocation2 + $0x68] sm:$0xff]
        %v513 = vld [vmem:[#allocation2 + $0x70] sm:$0xff]
        %v514 = vld [vmem:[#allocation2 + $0x78] sm:$0xff]
        %v515 = vld [vmem:[#allocation2 + $0x80] sm:$0xff]
        %v516 = vld [vmem:[#allocation2 + $0x88] sm:$0xff]
        %v517 = vld [vmem:[#allocation2 + $0x90] sm:$0xff]
        %v518 = vld [vmem:[#allocation2 + $0x98] sm:$0xff]
        %v519 = vld [vmem:[#allocation2 + $0xa0] sm:$0xff]
        %v520 = vld [vmem:[#allocation2 + $0xa8] sm:$0xff]
        %v521 = vld [vmem:[#allocation2 + $0xb0] sm:$0xff]
        %v522 = vld [vmem:[#allocation2 + $0xb8] sm:$0xff]
        %v523 = vld [vmem:[#allocation2 + $0xc0] sm:$0xff]
        %v524 = vld [vmem:[#allocation2 + $0xc8] sm:$0xff]
        %v525 = vld [vmem:[#allocation2 + $0xd0] sm:$0xff]
        %v526 = vld [vmem:[#allocation2 + $0xd8] sm:$0xff]
        %v527 = vld [vmem:[#allocation2 + $0xe0] sm:$0xff]
        %v528 = vld [vmem:[#allocation2 + $0xe8] sm:$0xff]
        %v529 = vld [vmem:[#allocation2 + $0xf0] sm:$0xff]
        %v530 = vld [vmem:[#allocation2 + $0xf8] sm:$0xff]
        %v531 = vld [vmem:[%s405] sm:$0xff]
        %v532 = vld [vmem:[%s405 + $0x8] sm:$0xff]
        %v533 = vld [vmem:[%s405 + $0x10] sm:$0xff]
        %v534 = vld [vmem:[%s405 + $0x18] sm:$0xff]
        %v535 = vld [vmem:[%s405 + $0x20] sm:$0xff]
        %v536 = vld [vmem:[%s405 + $0x28] sm:$0xff]
        %v537 = vld [vmem:[%s405 + $0x30] sm:$0xff]
        %v538 = vld [vmem:[%s405 + $0x38] sm:$0xff]
        %v539 = vld [vmem:[%s405 + $0x40] sm:$0xff]
        %v540 = vld [vmem:[%s405 + $0x48] sm:$0xff]
        %v541 = vld [vmem:[%s405 + $0x50] sm:$0xff]
        %v542 = vld [vmem:[%s405 + $0x58] sm:$0xff]
        %v543 = vld [vmem:[%s405 + $0x60] sm:$0xff]
        %v544 = vld [vmem:[%s405 + $0x68] sm:$0xff]
        %v545 = vld [vmem:[%s405 + $0x70] sm:$0xff]
        %v546 = vld [vmem:[%s405 + $0x78] sm:$0xff]
        %v547 = vld [vmem:[%s405 + $0x80] sm:$0xff]
        %v548 = vld [vmem:[%s405 + $0x88] sm:$0xff]
        %v549 = vld [vmem:[%s405 + $0x90] sm:$0xff]
        %v550 = vld [vmem:[%s405 + $0x98] sm:$0xff]
        %v551 = vld [vmem:[%s405 + $0xa0] sm:$0xff]
        %v552 = vld [vmem:[%s405 + $0xa8] sm:$0xff]
        %v553 = vld [vmem:[%s405 + $0xb0] sm:$0xff]
        %v554 = vld [vmem:[%s405 + $0xb8] sm:$0xff]
        %v555 = vld [vmem:[%s405 + $0xc0] sm:$0xff]
        %v556 = vld [vmem:[%s405 + $0xc8] sm:$0xff]
        %v557 = vld [vmem:[%s405 + $0xd0] sm:$0xff]
        %v558 = vld [vmem:[%s405 + $0xd8] sm:$0xff]
        %v559 = vld [vmem:[%s405 + $0xe0] sm:$0xff]
        %v560 = vld [vmem:[%s405 + $0xe8] sm:$0xff]
        %v561 = vld [vmem:[%s405 + $0xf0] sm:$0xff]
        %v562 = vld [vmem:[%s405 + $0xf8] sm:$0xff]
        %v563 = vld [vmem:[%s405 + $0x100] sm:$0xff]
        %v564 = vld [vmem:[%s405 + $0x108] sm:$0xff]
        %v565 = vld [vmem:[%s405 + $0x110] sm:$0xff]
        %v566 = vld [vmem:[%s405 + $0x118] sm:$0xff]
        %v567 = vld [vmem:[%s405 + $0x120] sm:$0xff]
        %v568 = vld [vmem:[%s405 + $0x128] sm:$0xff]
        %v569 = vld [vmem:[%s405 + $0x130] sm:$0xff]
        %v570 = vld [vmem:[%s405 + $0x138] sm:$0xff]
        %v571 = vld [vmem:[%s405 + $0x140] sm:$0xff]
        %v572 = vld [vmem:[%s405 + $0x148] sm:$0xff]
        %v573 = vld [vmem:[%s405 + $0x150] sm:$0xff]
        %v574 = vld [vmem:[%s405 + $0x158] sm:$0xff]
        %v575 = vld [vmem:[%s405 + $0x160] sm:$0xff]
        %v576 = vld [vmem:[%s405 + $0x168] sm:$0xff]
        %v577 = vld [vmem:[%s405 + $0x170] sm:$0xff]
        %v578 = vld [vmem:[%s405 + $0x178] sm:$0xff]
        %v579 = vld [vmem:[%s405 + $0x180] sm:$0xff]
        %v580 = vld [vmem:[%s405 + $0x188] sm:$0xff]
        %v581 = vld [vmem:[%s405 + $0x190] sm:$0xff]
        %v582 = vld [vmem:[%s405 + $0x198] sm:$0xff]
        %v583 = vld [vmem:[%s405 + $0x1a0] sm:$0xff]
        %v584 = vld [vmem:[%s405 + $0x1a8] sm:$0xff]
        %v585 = vld [vmem:[%s405 + $0x1b0] sm:$0xff]
        %v586 = vld [vmem:[%s405 + $0x1b8] sm:$0xff]
        %v587 = vld [vmem:[%s405 + $0x1c0] sm:$0xff]
        %v588 = vld [vmem:[%s405 + $0x1c8] sm:$0xff]
        %v589 = vld [vmem:[%s405 + $0x1d0] sm:$0xff]
        %v590 = vld [vmem:[%s405 + $0x1d8] sm:$0xff]
        %v591 = vld [vmem:[%s405 + $0x1e0] sm:$0xff]
        %v592 = vld [vmem:[%s405 + $0x1e8] sm:$0xff]
        %v593 = vld [vmem:[%s405 + $0x1f0] sm:$0xff]
        %v594 = vld [vmem:[%s405 + $0x1f8] sm:$0xff]
        %v595 = vld [vmem:[%s405 + $0x200] sm:$0xff]
        %v596 = vld [vmem:[%s405 + $0x208] sm:$0xff]
        %v597 = vld [vmem:[%s405 + $0x210] sm:$0xff]
        %v598 = vld [vmem:[%s405 + $0x218] sm:$0xff]
        %v599 = vld [vmem:[%s405 + $0x220] sm:$0xff]
        %v600 = vld [vmem:[%s405 + $0x228] sm:$0xff]
        %v601 = vld [vmem:[%s405 + $0x230] sm:$0xff]
        %v602 = vld [vmem:[%s405 + $0x238] sm:$0xff]
        %v603 = vld [vmem:[%s405 + $0x240] sm:$0xff]
        %v604 = vld [vmem:[%s405 + $0x248] sm:$0xff]
        %v605 = vld [vmem:[%s405 + $0x250] sm:$0xff]
        %v606 = vld [vmem:[%s405 + $0x258] sm:$0xff]
        %v607 = vld [vmem:[%s405 + $0x260] sm:$0xff]
        %v608 = vld [vmem:[%s405 + $0x268] sm:$0xff]
        %v609 = vld [vmem:[%s405 + $0x270] sm:$0xff]
        %v610 = vld [vmem:[%s405 + $0x278] sm:$0xff]
        %v611 = vld [vmem:[%s405 + $0x280] sm:$0xff]
        %v612 = vld [vmem:[%s405 + $0x288] sm:$0xff]
        %v613 = vld [vmem:[%s405 + $0x290] sm:$0xff]
        %v614 = vld [vmem:[%s405 + $0x298] sm:$0xff]
        %v615 = vld [vmem:[%s405 + $0x2a0] sm:$0xff]
        %v616 = vld [vmem:[%s405 + $0x2a8] sm:$0xff]
        %v617 = vld [vmem:[%s405 + $0x2b0] sm:$0xff]
        %v618 = vld [vmem:[%s405 + $0x2b8] sm:$0xff]
        %v619 = vld [vmem:[%s405 + $0x2c0] sm:$0xff]
        %v620 = vld [vmem:[%s405 + $0x2c8] sm:$0xff]
        %v621 = vld [vmem:[%s405 + $0x2d0] sm:$0xff]
        %v622 = vld [vmem:[%s405 + $0x2d8] sm:$0xff]
        %v623 = vld [vmem:[%s405 + $0x2e0] sm:$0xff]
        %v624 = vld [vmem:[%s405 + $0x2e8] sm:$0xff]
        %v625 = vld [vmem:[%s405 + $0x2f0] sm:$0xff]
        %v626 = vld [vmem:[%s405 + $0x2f8] sm:$0xff]
        %v627 = vld [vmem:[%s449] sm:$0xff]
        %v628 = vld [vmem:[%s449 + $0x8] sm:$0xff]
        %v629 = vld [vmem:[%s449 + $0x10] sm:$0xff]
        %v630 = vld [vmem:[%s449 + $0x18] sm:$0xff]
        %v631 = vld [vmem:[%s449 + $0x20] sm:$0xff]
        %v632 = vld [vmem:[%s449 + $0x28] sm:$0xff]
        %v633 = vld [vmem:[%s449 + $0x30] sm:$0xff]
        %v634 = vld [vmem:[%s449 + $0x38] sm:$0xff]
        %v635 = vld [vmem:[%s449 + $0x40] sm:$0xff]
        %v636 = vld [vmem:[%s449 + $0x48] sm:$0xff]
        %v637 = vld [vmem:[%s449 + $0x50] sm:$0xff]
        %v638 = vld [vmem:[%s449 + $0x58] sm:$0xff]
        %v639 = vld [vmem:[%s449 + $0x60] sm:$0xff]
        %v640 = vld [vmem:[%s449 + $0x68] sm:$0xff]
        %v641 = vld [vmem:[%s449 + $0x70] sm:$0xff]
        %v642 = vld [vmem:[%s449 + $0x78] sm:$0xff]
        %v643 = vld [vmem:[%s449 + $0x80] sm:$0xff]
        %v644 = vld [vmem:[%s449 + $0x88] sm:$0xff]
        %v645 = vld [vmem:[%s449 + $0x90] sm:$0xff]
        %v646 = vld [vmem:[%s449 + $0x98] sm:$0xff]
        %v647 = vld [vmem:[%s449 + $0xa0] sm:$0xff]
        %v648 = vld [vmem:[%s449 + $0xa8] sm:$0xff]
        %v649 = vld [vmem:[%s449 + $0xb0] sm:$0xff]
        %v650 = vld [vmem:[%s449 + $0xb8] sm:$0xff]
        %v651 = vld [vmem:[%s449 + $0xc0] sm:$0xff]
        %v652 = vld [vmem:[%s449 + $0xc8] sm:$0xff]
        %v653 = vld [vmem:[%s449 + $0xd0] sm:$0xff]
        %v654 = vld [vmem:[%s449 + $0xd8] sm:$0xff]
        %v655 = vld [vmem:[%s449 + $0xe0] sm:$0xff]
        %v656 = vld [vmem:[%s449 + $0xe8] sm:$0xff]
        %v657 = vld [vmem:[%s449 + $0xf0] sm:$0xff]
        %v658 = vld [vmem:[%s449 + $0xf8] sm:$0xff]
        %v659 = vld [vmem:[%s449 + $0x100] sm:$0xff]
        %v660 = vld [vmem:[%s449 + $0x108] sm:$0xff]
        %v661 = vld [vmem:[%s449 + $0x110] sm:$0xff]
        %v662 = vld [vmem:[%s449 + $0x118] sm:$0xff]
        %v663 = vld [vmem:[%s449 + $0x120] sm:$0xff]
        %v664 = vld [vmem:[%s449 + $0x128] sm:$0xff]
        %v665 = vld [vmem:[%s449 + $0x130] sm:$0xff]
        %v666 = vld [vmem:[%s449 + $0x138] sm:$0xff]
        %v667 = vld [vmem:[%s449 + $0x140] sm:$0xff]
        %v668 = vld [vmem:[%s449 + $0x148] sm:$0xff]
        %v669 = vld [vmem:[%s449 + $0x150] sm:$0xff]
        %v670 = vld [vmem:[%s449 + $0x158] sm:$0xff]
        %v671 = vld [vmem:[%s449 + $0x160] sm:$0xff]
        %v672 = vld [vmem:[%s449 + $0x168] sm:$0xff]
        %v673 = vld [vmem:[%s449 + $0x170] sm:$0xff]
        %v674 = vld [vmem:[%s449 + $0x178] sm:$0xff]
        %675 = vmatprep.subr.mxu0 0.0
        %676 = vmatpush1.msra.mxu0 %v627
        %677 = vmatprep.subr.mxu0 0.0
        %678 = vmatpush1.msra.mxu0 %v628
        %679 = vmatprep.subr.mxu0 0.0
        %680 = vmatpush1.msra.mxu0 %v629
        %681 = vmatprep.subr.mxu0 0.0
        %682 = vmatpush1.msra.mxu0 %v630
        %683 = vmatprep.subr.mxu0 0.0
        %684 = vmatpush1.msra.mxu0 %v631
        %685 = vmatprep.subr.mxu0 0.0
        %686 = vmatpush1.msra.mxu0 %v632
        %687 = vmatprep.subr.mxu0 0.0
        %688 = vmatpush1.msra.mxu0 %v633
        %689 = vmatprep.subr.mxu0 0.0
        %690 = vmatpush1.msra.mxu0 %v634
        %691 = vmatprep.subr.mxu0 0.0
        %692 = vmatpush1.msra.mxu0 %v635
        %693 = vmatprep.subr.mxu0 0.0
        %694 = vmatpush1.msra.mxu0 %v636
        %695 = vmatprep.subr.mxu0 0.0
        %696 = vmatpush1.msra.mxu0 %v637
        %697 = vmatprep.subr.mxu0 0.0
        %698 = vmatpush1.msra.mxu0 %v638
        %699 = vmatprep.subr.mxu0 0.0
        %700 = vmatpush1.msra.mxu0 %v639
        %701 = vmatprep.subr.mxu0 0.0
        %702 = vmatpush1.msra.mxu0 %v640
        %703 = vmatprep.subr.mxu0 0.0
        %704 = vmatpush1.msra.mxu0 %v641
        %705 = vmatprep.subr.mxu0 0.0
        %706 = vmatpush1.msra.mxu0 %v642
        %707 = vmatprep.subr.mxu0 0.0
        %708 = vmatpush1.msra.mxu0 %v643
        %709 = vmatprep.subr.mxu0 0.0
        %710 = vmatpush1.msra.mxu0 %v644
        %711 = vmatprep.subr.mxu0 0.0
        %712 = vmatpush1.msra.mxu0 %v645
        %713 = vmatprep.subr.mxu0 0.0
        %714 = vmatpush1.msra.mxu0 %v646
        %715 = vmatprep.subr.mxu0 0.0
        %716 = vmatpush1.msra.mxu0 %v647
        %717 = vmatprep.subr.mxu0 0.0
        %718 = vmatpush1.msra.mxu0 %v648
        %719 = vmatprep.subr.mxu0 0.0
        %720 = vmatpush1.msra.mxu0 %v649
        %721 = vmatprep.subr.mxu0 0.0
        %722 = vmatpush1.msra.mxu0 %v650
        %723 = vmatprep.subr.mxu0 0.0
        %724 = vmatpush1.msra.mxu0 %v651
        %725 = vmatprep.subr.mxu0 0.0
        %726 = vmatpush1.msra.mxu0 %v652
        %727 = vmatprep.subr.mxu0 0.0
        %728 = vmatpush1.msra.mxu0 %v653
        %729 = vmatprep.subr.mxu0 0.0
        %730 = vmatpush1.msra.mxu0 %v654
        %731 = vmatprep.subr.mxu0 0.0
        %732 = vmatpush1.msra.mxu0 %v655
        %733 = vmatprep.subr.mxu0 0.0
        %734 = vmatpush1.msra.mxu0 %v656
        %735 = vmatprep.subr.mxu0 0.0
        %736 = vmatpush1.msra.mxu0 %v657
        %737 = vmatprep.subr.mxu0 0.0
        %738 = vmatpush1.msra.mxu0 %v658
        %739 = vmatprep.mubr.f32.mxu0 %v532
        %740 = vmatmul.mubr.f32.gmra.mrb[0].mxu0 %v531
        %v741 = vpop.f32.mrb[0].mxu0
        %v742 = vadd.f32 0.0, %v741
        %v743 = vpop.f32.mrb[0].mxu0
        %744 = vmatprep.mubr.f32.mxu0 %v535
        %745 = vmatmul.mubr.f32.gmra.mrb[0].mxu0 %v534
        %v746 = vpop.f32.mrb[0].mxu0
        %v747 = vadd.f32 0.0, %v746
        %v748 = vpop.f32.mrb[0].mxu0
        %749 = vmatprep.mubr.f32.mxu0 %v538
        %750 = vmatmul.mubr.f32.gmra.mrb[0].mxu0 %v537
        %v751 = vpop.f32.mrb[0].mxu0
        %v752 = vadd.f32 0.0, %v751
        %v753 = vpop.f32.mrb[0].mxu0
        %754 = vmatprep.mubr.f32.mxu0 %v541
        %755 = vmatmul.mubr.f32.gmra.mrb[0].mxu0 %v540
        %v756 = vpop.f32.mrb[0].mxu0
        %v757 = vadd.f32 0.0, %v756
        %v758 = vpop.f32.mrb[0].mxu0
        %759 = vmatprep.mubr.f32.mxu0 %v544
        %760 = vmatmul.mubr.f32.gmra.mrb[0].mxu0 %v543
        %v761 = vpop.f32.mrb[0].mxu0
        %v762 = vadd.f32 0.0, %v761
        %v763 = vpop.f32.mrb[0].mxu0
        %764 = vmatprep.mubr.f32.mxu0 %v547
        %765 = vmatmul.mubr.f32.gmra.mrb[0].mxu0 %v546
        %v766 = vpop.f32.mrb[0].mxu0
        %v767 = vadd.f32 0.0, %v766
        %v768 = vpop.f32.mrb[0].mxu0
        %769 = vmatprep.mubr.f32.mxu0 %v550
        %770 = vmatmul.mubr.f32.gmra.mrb[0].mxu0 %v549
        %v771 = vpop.f32.mrb[0].mxu0
        %v772 = vadd.f32 0.0, %v771
        %v773 = vpop.f32.mrb[0].mxu0
        %774 = vmatprep.mubr.f32.mxu0 %v553
        %775 = vmatmul.mubr.f32.gmra.mrb[0].mxu0 %v552
        %v776 = vpop.f32.mrb[0].mxu0
        %v777 = vadd.f32 0.0, %v776
        %v778 = vpop.f32.mrb[0].mxu0
        %779 = vmatprep.mubr.f32.mxu0 %v556
        %780 = vmatmul.mubr.f32.gmra.mrb[0].mxu0 %v555
        %v781 = vpop.f32.mrb[0].mxu0
        %v782 = vadd.f32 0.0, %v781
        %v783 = vpop.f32.mrb[0].mxu0
        %784 = vmatprep.mubr.f32.mxu0 %v559
        %785 = vmatmul.mubr.f32.gmra.mrb[0].mxu0 %v558
        %v786 = vpop.f32.mrb[0].mxu0
        %v787 = vadd.f32 0.0, %v786
        %v788 = vpop.f32.mrb[0].mxu0
        %789 = vmatprep.mubr.f32.mxu0 %v562
        %790 = vmatmul.mubr.f32.gmra.mrb[0].mxu0 %v561
        %v791 = vpop.f32.mrb[0].mxu0
        %v792 = vadd.f32 0.0, %v791
        %v793 = vpop.f32.mrb[0].mxu0
        %794 = vmatprep.mubr.f32.mxu0 %v565
        %795 = vmatmul.mubr.f32.gmra.mrb[0].mxu0 %v564
        %v796 = vpop.f32.mrb[0].mxu0
        %v797 = vadd.f32 0.0, %v796
        %v798 = vpop.f32.mrb[0].mxu0
        %799 = vmatprep.mubr.f32.mxu0 %v568
        %800 = vmatmul.mubr.f32.gmra.mrb[0].mxu0 %v567
        %v801 = vpop.f32.mrb[0].mxu0
        %v802 = vadd.f32 0.0, %v801
        %v803 = vpop.f32.mrb[0].mxu0
        %804 = vmatprep.mubr.f32.mxu0 %v571
        %805 = vmatmul.mubr.f32.gmra.mrb[0].mxu0 %v570
        %v806 = vpop.f32.mrb[0].mxu0
        %v807 = vadd.f32 0.0, %v806
        %v808 = vpop.f32.mrb[0].mxu0
        %809 = vmatprep.mubr.f32.mxu0 %v574
        %810 = vmatmul.mubr.f32.gmra.mrb[0].mxu0 %v573
        %v811 = vpop.f32.mrb[0].mxu0
        %v812 = vadd.f32 0.0, %v811
        %v813 = vpop.f32.mrb[0].mxu0
        %814 = vmatprep.mubr.f32.mxu0 %v577
        %815 = vmatmul.mubr.f32.gmra.mrb[0].mxu0 %v576
        %v816 = vpop.f32.mrb[0].mxu0
        %v817 = vadd.f32 0.0, %v816
        %v818 = vpop.f32.mrb[0].mxu0
        %819 = vmatprep.mubr.f32.mxu0 %v580
        %820 = vmatmul.mubr.f32.gmra.mrb[0].mxu0 %v579
        %v821 = vpop.f32.mrb[0].mxu0
        %v822 = vadd.f32 0.0, %v821
        %v823 = vpop.f32.mrb[0].mxu0
        %824 = vmatprep.mubr.f32.mxu0 %v583
        %825 = vmatmul.mubr.f32.gmra.mrb[0].mxu0 %v582
        %v826 = vpop.f32.mrb[0].mxu0
        %v827 = vadd.f32 0.0, %v826
        %v828 = vpop.f32.mrb[0].mxu0
        %829 = vmatprep.mubr.f32.mxu0 %v586
        %830 = vmatmul.mubr.f32.gmra.mrb[0].mxu0 %v585
        %v831 = vpop.f32.mrb[0].mxu0
        %v832 = vadd.f32 0.0, %v831
        %v833 = vpop.f32.mrb[0].mxu0
        %834 = vmatprep.mubr.f32.mxu0 %v589
        %835 = vmatmul.mubr.f32.gmra.mrb[0].mxu0 %v588
        %v836 = vpop.f32.mrb[0].mxu0
        %v837 = vadd.f32 0.0, %v836
        %v838 = vpop.f32.mrb[0].mxu0
        %839 = vmatprep.mubr.f32.mxu0 %v592
        %840 = vmatmul.mubr.f32.gmra.mrb[0].mxu0 %v591
        %v841 = vpop.f32.mrb[0].mxu0
        %v842 = vadd.f32 0.0, %v841
        %v843 = vpop.f32.mrb[0].mxu0
        %844 = vmatprep.mubr.f32.mxu0 %v595
        %845 = vmatmul.mubr.f32.gmra.mrb[0].mxu0 %v594
        %v846 = vpop.f32.mrb[0].mxu0
        %v847 = vadd.f32 0.0, %v846
        %v848 = vpop.f32.mrb[0].mxu0
        %849 = vmatprep.mubr.f32.mxu0 %v598
        %850 = vmatmul.mubr.f32.gmra.mrb[0].mxu0 %v597
        %v851 = vpop.f32.mrb[0].mxu0
        %v852 = vadd.f32 0.0, %v851
        %v853 = vpop.f32.mrb[0].mxu0
        %854 = vmatprep.mubr.f32.mxu0 %v601
        %855 = vmatmul.mubr.f32.gmra.mrb[0].mxu0 %v600
        %v856 = vpop.f32.mrb[0].mxu0
        %v857 = vadd.f32 0.0, %v856
        %v858 = vpop.f32.mrb[0].mxu0
        %859 = vmatprep.mubr.f32.mxu0 %v604
        %860 = vmatmul.mubr.f32.gmra.mrb[0].mxu0 %v603
        %v861 = vpop.f32.mrb[0].mxu0
        %v862 = vadd.f32 0.0, %v861
        %v863 = vpop.f32.mrb[0].mxu0
        %864 = vmatprep.mubr.f32.mxu0 %v607
        %865 = vmatmul.mubr.f32.gmra.mrb[0].mxu0 %v606
        %v866 = vpop.f32.mrb[0].mxu0
        %v867 = vadd.f32 0.0, %v866
        %v868 = vpop.f32.mrb[0].mxu0
        %869 = vmatprep.mubr.f32.mxu0 %v610
        %870 = vmatmul.mubr.f32.gmra.mrb[0].mxu0 %v609
        %v871 = vpop.f32.mrb[0].mxu0
        %v872 = vadd.f32 0.0, %v871
        %v873 = vpop.f32.mrb[0].mxu0
        %874 = vmatprep.mubr.f32.mxu0 %v613
        %875 = vmatmul.mubr.f32.gmra.mrb[0].mxu0 %v612
        %v876 = vpop.f32.mrb[0].mxu0
        %v877 = vadd.f32 0.0, %v876
        %v878 = vpop.f32.mrb[0].mxu0
        %879 = vmatprep.mubr.f32.mxu0 %v616
        %880 = vmatmul.mubr.f32.gmra.mrb[0].mxu0 %v615
        %v881 = vpop.f32.mrb[0].mxu0
        %v882 = vadd.f32 0.0, %v881
        %v883 = vpop.f32.mrb[0].mxu0
        %884 = vmatprep.mubr.f32.mxu0 %v619
        %885 = vmatmul.mubr.f32.gmra.mrb[0].mxu0 %v618
        %v886 = vpop.f32.mrb[0].mxu0
        %v887 = vadd.f32 0.0, %v886
        %v888 = vpop.f32.mrb[0].mxu0
        %889 = vmatprep.mubr.f32.mxu0 %v622
        %890 = vmatmul.mubr.f32.gmra.mrb[0].mxu0 %v621
        %v891 = vpop.f32.mrb[0].mxu0
        %v892 = vadd.f32 0.0, %v891
        %v893 = vpop.f32.mrb[0].mxu0
        %894 = vmatprep.mubr.f32.mxu0 %v625
        %895 = vmatmul.mubr.f32.gmra.mrb[0].mxu0 %v624
        %v896 = vpop.f32.mrb[0].mxu0
        %v897 = vadd.f32 0.0, %v896
        %v898 = vpop.f32.mrb[0].mxu0
        %899 = vdwg.mxu0
        %900 = vmatprep.subr.mxu0 0.0
        %901 = vmatpush1.msra.mxu0 %v659
        %902 = vmatprep.subr.mxu0 0.0
        %903 = vmatpush1.msra.mxu0 %v660
        %904 = vmatprep.subr.mxu0 0.0
        %905 = vmatpush1.msra.mxu0 %v661
        %906 = vmatprep.subr.mxu0 0.0
        %907 = vmatpush1.msra.mxu0 %v662
        %908 = vmatprep.subr.mxu0 0.0
        %909 = vmatpush1.msra.mxu0 %v663
        %910 = vmatprep.subr.mxu0 0.0
        %911 = vmatpush1.msra.mxu0 %v664
        %912 = vmatprep.subr.mxu0 0.0
        %913 = vmatpush1.msra.mxu0 %v665
        %914 = vmatprep.subr.mxu0 0.0
        %915 = vmatpush1.msra.mxu0 %v666
        %916 = vmatprep.subr.mxu0 0.0
        %917 = vmatpush1.msra.mxu0 %v667
        %918 = vmatprep.subr.mxu0 0.0
        %919 = vmatpush1.msra.mxu0 %v668
        %920 = vmatprep.subr.mxu0 0.0
        %921 = vmatpush1.msra.mxu0 %v669
        %922 = vmatprep.subr.mxu0 0.0
        %923 = vmatpush1.msra.mxu0 %v670
        %924 = vmatprep.subr.mxu0 0.0
        %925 = vmatpush1.msra.mxu0 %v671
        %926 = vmatprep.subr.mxu0 0.0
        %927 = vmatpush1.msra.mxu0 %v672
        %928 = vmatprep.subr.mxu0 0.0
        %929 = vmatpush1.msra.mxu0 %v673
        %930 = vmatprep.subr.mxu0 0.0
        %931 = vmatpush1.msra.mxu0 %v674
        %932 = vmatprep.subr.mxu0 0.0
        %933 = vmatpush1.msra.mxu0 0.0
        %934 = vmatprep.subr.mxu0 0.0
        %935 = vmatpush1.msra.mxu0 0.0
        %936 = vmatprep.subr.mxu0 0.0
        %937 = vmatpush1.msra.mxu0 0.0
        %938 = vmatprep.subr.mxu0 0.0
        %939 = vmatpush1.msra.mxu0 0.0
        %940 = vmatprep.subr.mxu0 0.0
        %941 = vmatpush1.msra.mxu0 0.0
        %942 = vmatprep.subr.mxu0 0.0
        %943 = vmatpush1.msra.mxu0 0.0
        %944 = vmatprep.subr.mxu0 0.0
        %945 = vmatpush1.msra.mxu0 0.0
        %946 = vmatprep.subr.mxu0 0.0
        %947 = vmatpush1.msra.mxu0 0.0
        %948 = vmatprep.subr.mxu0 0.0
        %949 = vmatpush1.msra.mxu0 0.0
        %950 = vmatprep.subr.mxu0 0.0
        %951 = vmatpush1.msra.mxu0 0.0
        %952 = vmatprep.subr.mxu0 0.0
        %953 = vmatpush1.msra.mxu0 0.0
        %954 = vmatprep.subr.mxu0 0.0
        %955 = vmatpush1.msra.mxu0 0.0
        %956 = vmatprep.subr.mxu0 0.0
        %957 = vmatpush1.msra.mxu0 0.0
        %958 = vmatprep.subr.mxu0 0.0
        %959 = vmatpush1.msra.mxu0 0.0
        %960 = vmatprep.subr.mxu0 0.0
        %961 = vmatpush1.msra.mxu0 0.0
        %962 = vmatprep.subr.mxu0 0.0
        %963 = vmatpush1.msra.mxu0 0.0
        %964 = vmatprep.mubr.f32.mxu0 0.0
        %965 = vmatmul.mubr.f32.gmra.mrb[0].mxu0 %v533
        %v966 = vpop.f32.mrb[0].mxu0
        %v967 = vadd.f32 %v742, %v966
        %v968 = vpop.f32.mrb[0].mxu0
        %969 = vmatprep.mubr.f32.mxu0 0.0
        %970 = vmatmul.mubr.f32.gmra.mrb[0].mxu0 %v536
        %v971 = vpop.f32.mrb[0].mxu0
        %v972 = vadd.f32 %v747, %v971
        %v973 = vpop.f32.mrb[0].mxu0
        %974 = vmatprep.mubr.f32.mxu0 0.0
        %975 = vmatmul.mubr.f32.gmra.mrb[0].mxu0 %v539
        %v976 = vpop.f32.mrb[0].mxu0
        %v977 = vadd.f32 %v752, %v976
        %v978 = vpop.f32.mrb[0].mxu0
        %979 = vmatprep.mubr.f32.mxu0 0.0
        %980 = vmatmul.mubr.f32.gmra.mrb[0].mxu0 %v542
        %v981 = vpop.f32.mrb[0].mxu0
        %v982 = vadd.f32 %v757, %v981
        %v983 = vpop.f32.mrb[0].mxu0
        %984 = vmatprep.mubr.f32.mxu0 0.0
        %985 = vmatmul.mubr.f32.gmra.mrb[0].mxu0 %v545
        %v986 = vpop.f32.mrb[0].mxu0
        %v987 = vadd.f32 %v762, %v986
        %v988 = vpop.f32.mrb[0].mxu0
        %989 = vmatprep.mubr.f32.mxu0 0.0
        %990 = vmatmul.mubr.f32.gmra.mrb[0].mxu0 %v548
        %v991 = vpop.f32.mrb[0].mxu0
        %v992 = vadd.f32 %v767, %v991
        %v993 = vpop.f32.mrb[0].mxu0
        %994 = vmatprep.mubr.f32.mxu0 0.0
        %995 = vmatmul.mubr.f32.gmra.mrb[0].mxu0 %v551
        %v996 = vpop.f32.mrb[0].mxu0
        %v997 = vadd.f32 %v772, %v996
        %v998 = vpop.f32.mrb[0].mxu0
        %999 = vmatprep.mubr.f32.mxu0 0.0
        %1000 = vmatmul.mubr.f32.gmra.mrb[0].mxu0 %v554
        %v1001 = vpop.f32.mrb[0].mxu0
        %v1002 = vadd.f32 %v777, %v1001
        %v1003 = vpop.f32.mrb[0].mxu0
        %1004 = vmatprep.mubr.f32.mxu0 0.0
        %1005 = vmatmul.mubr.f32.gmra.mrb[0].mxu0 %v557
        %v1006 = vpop.f32.mrb[0].mxu0
        %v1007 = vadd.f32 %v782, %v1006
        %v1008 = vpop.f32.mrb[0].mxu0
        %1009 = vmatprep.mubr.f32.mxu0 0.0
        %1010 = vmatmul.mubr.f32.gmra.mrb[0].mxu0 %v560
        %v1011 = vpop.f32.mrb[0].mxu0
        %v1012 = vadd.f32 %v787, %v1011
        %v1013 = vpop.f32.mrb[0].mxu0
        %1014 = vmatprep.mubr.f32.mxu0 0.0
        %1015 = vmatmul.mubr.f32.gmra.mrb[0].mxu0 %v563
        %v1016 = vpop.f32.mrb[0].mxu0
        %v1017 = vadd.f32 %v792, %v1016
        %v1018 = vpop.f32.mrb[0].mxu0
        %1019 = vmatprep.mubr.f32.mxu0 0.0
        %1020 = vmatmul.mubr.f32.gmra.mrb[0].mxu0 %v566
        %v1021 = vpop.f32.mrb[0].mxu0
        %v1022 = vadd.f32 %v797, %v1021
        %v1023 = vpop.f32.mrb[0].mxu0
        %1024 = vmatprep.mubr.f32.mxu0 0.0
        %1025 = vmatmul.mubr.f32.gmra.mrb[0].mxu0 %v569
        %v1026 = vpop.f32.mrb[0].mxu0
        %v1027 = vadd.f32 %v802, %v1026
        %v1028 = vpop.f32.mrb[0].mxu0
        %1029 = vmatprep.mubr.f32.mxu0 0.0
        %1030 = vmatmul.mubr.f32.gmra.mrb[0].mxu0 %v572
        %v1031 = vpop.f32.mrb[0].mxu0
        %v1032 = vadd.f32 %v807, %v1031
        %v1033 = vpop.f32.mrb[0].mxu0
        %1034 = vmatprep.mubr.f32.mxu0 0.0
        %1035 = vmatmul.mubr.f32.gmra.mrb[0].mxu0 %v575
        %v1036 = vpop.f32.mrb[0].mxu0
        %v1037 = vadd.f32 %v812, %v1036
        %v1038 = vpop.f32.mrb[0].mxu0
        %1039 = vmatprep.mubr.f32.mxu0 0.0
        %1040 = vmatmul.mubr.f32.gmra.mrb[0].mxu0 %v578
        %v1041 = vpop.f32.mrb[0].mxu0
        %v1042 = vadd.f32 %v817, %v1041
        %v1043 = vpop.f32.mrb[0].mxu0
        %1044 = vmatprep.mubr.f32.mxu0 0.0
        %1045 = vmatmul.mubr.f32.gmra.mrb[0].mxu0 %v581
        %v1046 = vpop.f32.mrb[0].mxu0
        %v1047 = vadd.f32 %v822, %v1046
        %v1048 = vpop.f32.mrb[0].mxu0
        %1049 = vmatprep.mubr.f32.mxu0 0.0
        %1050 = vmatmul.mubr.f32.gmra.mrb[0].mxu0 %v584
        %v1051 = vpop.f32.mrb[0].mxu0
        %v1052 = vadd.f32 %v827, %v1051
        %v1053 = vpop.f32.mrb[0].mxu0
        %1054 = vmatprep.mubr.f32.mxu0 0.0
        %1055 = vmatmul.mubr.f32.gmra.mrb[0].mxu0 %v587
        %v1056 = vpop.f32.mrb[0].mxu0
        %v1057 = vadd.f32 %v832, %v1056
        %v1058 = vpop.f32.mrb[0].mxu0
        %1059 = vmatprep.mubr.f32.mxu0 0.0
        %1060 = vmatmul.mubr.f32.gmra.mrb[0].mxu0 %v590
        %v1061 = vpop.f32.mrb[0].mxu0
        %v1062 = vadd.f32 %v837, %v1061
        %v1063 = vpop.f32.mrb[0].mxu0
        %1064 = vmatprep.mubr.f32.mxu0 0.0
        %1065 = vmatmul.mubr.f32.gmra.mrb[0].mxu0 %v593
        %v1066 = vpop.f32.mrb[0].mxu0
        %v1067 = vadd.f32 %v842, %v1066
        %v1068 = vpop.f32.mrb[0].mxu0
        %1069 = vmatprep.mubr.f32.mxu0 0.0
        %1070 = vmatmul.mubr.f32.gmra.mrb[0].mxu0 %v596
        %v1071 = vpop.f32.mrb[0].mxu0
        %v1072 = vadd.f32 %v847, %v1071
        %v1073 = vpop.f32.mrb[0].mxu0
        %1074 = vmatprep.mubr.f32.mxu0 0.0
        %1075 = vmatmul.mubr.f32.gmra.mrb[0].mxu0 %v599
        %v1076 = vpop.f32.mrb[0].mxu0
        %v1077 = vadd.f32 %v852, %v1076
        %v1078 = vpop.f32.mrb[0].mxu0
        %1079 = vmatprep.mubr.f32.mxu0 0.0
        %1080 = vmatmul.mubr.f32.gmra.mrb[0].mxu0 %v602
        %v1081 = vpop.f32.mrb[0].mxu0
        %v1082 = vadd.f32 %v857, %v1081
        %v1083 = vpop.f32.mrb[0].mxu0
        %1084 = vmatprep.mubr.f32.mxu0 0.0
        %1085 = vmatmul.mubr.f32.gmra.mrb[0].mxu0 %v605
        %v1086 = vpop.f32.mrb[0].mxu0
        %v1087 = vadd.f32 %v862, %v1086
        %v1088 = vpop.f32.mrb[0].mxu0
        %1089 = vmatprep.mubr.f32.mxu0 0.0
        %1090 = vmatmul.mubr.f32.gmra.mrb[0].mxu0 %v608
        %v1091 = vpop.f32.mrb[0].mxu0
        %v1092 = vadd.f32 %v867, %v1091
        %v1093 = vpop.f32.mrb[0].mxu0
        %1094 = vmatprep.mubr.f32.mxu0 0.0
        %1095 = vmatmul.mubr.f32.gmra.mrb[0].mxu0 %v611
        %v1096 = vpop.f32.mrb[0].mxu0
        %v1097 = vadd.f32 %v872, %v1096
        %v1098 = vpop.f32.mrb[0].mxu0
        %1099 = vmatprep.mubr.f32.mxu0 0.0
        %1100 = vmatmul.mubr.f32.gmra.mrb[0].mxu0 %v614
        %v1101 = vpop.f32.mrb[0].mxu0
        %v1102 = vadd.f32 %v877, %v1101
        %v1103 = vpop.f32.mrb[0].mxu0
        %1104 = vmatprep.mubr.f32.mxu0 0.0
        %1105 = vmatmul.mubr.f32.gmra.mrb[0].mxu0 %v617
        %v1106 = vpop.f32.mrb[0].mxu0
        %v1107 = vadd.f32 %v882, %v1106
        %v1108 = vpop.f32.mrb[0].mxu0
        %1109 = vmatprep.mubr.f32.mxu0 0.0
        %1110 = vmatmul.mubr.f32.gmra.mrb[0].mxu0 %v620
        %v1111 = vpop.f32.mrb[0].mxu0
        %v1112 = vadd.f32 %v887, %v1111
        %v1113 = vpop.f32.mrb[0].mxu0
        %1114 = vmatprep.mubr.f32.mxu0 0.0
        %1115 = vmatmul.mubr.f32.gmra.mrb[0].mxu0 %v623
        %v1116 = vpop.f32.mrb[0].mxu0
        %v1117 = vadd.f32 %v892, %v1116
        %v1118 = vpop.f32.mrb[0].mxu0
        %1119 = vmatprep.mubr.f32.mxu0 0.0
        %1120 = vmatmul.mubr.f32.gmra.mrb[0].mxu0 %v626
        %v1121 = vpop.f32.mrb[0].mxu0
        %v1122 = vadd.f32 %v897, %v1121
        %v1123 = vpop.f32.mrb[0].mxu0
        %1124 = vdwg.mxu0
        %v1125 = vadd.f32 %v499, %v967
        %v1126 = vadd.f32 %v500, %v972
        %v1127 = vadd.f32 %v501, %v977
        %v1128 = vadd.f32 %v502, %v982
        %v1129 = vadd.f32 %v503, %v987
        %v1130 = vadd.f32 %v504, %v992
        %v1131 = vadd.f32 %v505, %v997
        %v1132 = vadd.f32 %v506, %v1002
        %v1133 = vadd.f32 %v507, %v1007
        %v1134 = vadd.f32 %v508, %v1012
        %v1135 = vadd.f32 %v509, %v1017
        %v1136 = vadd.f32 %v510, %v1022
        %v1137 = vadd.f32 %v511, %v1027
        %v1138 = vadd.f32 %v512, %v1032
        %v1139 = vadd.f32 %v513, %v1037
        %v1140 = vadd.f32 %v514, %v1042
        %v1141 = vadd.f32 %v515, %v1047
        %v1142 = vadd.f32 %v516, %v1052
        %v1143 = vadd.f32 %v517, %v1057
        %v1144 = vadd.f32 %v518, %v1062
        %v1145 = vadd.f32 %v519, %v1067
        %v1146 = vadd.f32 %v520, %v1072
        %v1147 = vadd.f32 %v521, %v1077
        %v1148 = vadd.f32 %v522, %v1082
        %v1149 = vadd.f32 %v523, %v1087
        %v1150 = vadd.f32 %v524, %v1092
        %v1151 = vadd.f32 %v525, %v1097
        %v1152 = vadd.f32 %v526, %v1102
        %v1153 = vadd.f32 %v527, %v1107
        %v1154 = vadd.f32 %v528, %v1112
        %v1155 = vadd.f32 %v529, %v1117
        %v1156 = vadd.f32 %v530, %v1122
        %1157 = vst [vmem:[#allocation2] sm:$0xff] %v1125
        %1158 = vst [vmem:[#allocation2 + $0x8] sm:$0xff] %v1126
        %1159 = vst [vmem:[#allocation2 + $0x10] sm:$0xff] %v1127
        %1160 = vst [vmem:[#allocation2 + $0x18] sm:$0xff] %v1128
        %1161 = vst [vmem:[#allocation2 + $0x20] sm:$0xff] %v1129
        %1162 = vst [vmem:[#allocation2 + $0x28] sm:$0xff] %v1130
        %1163 = vst [vmem:[#allocation2 + $0x30] sm:$0xff] %v1131
        %1164 = vst [vmem:[#allocation2 + $0x38] sm:$0xff] %v1132
        %1165 = vst [vmem:[#allocation2 + $0x40] sm:$0xff] %v1133
        %1166 = vst [vmem:[#allocation2 + $0x48] sm:$0xff] %v1134
        %1167 = vst [vmem:[#allocation2 + $0x50] sm:$0xff] %v1135
        %1168 = vst [vmem:[#allocation2 + $0x58] sm:$0xff] %v1136
        %1169 = vst [vmem:[#allocation2 + $0x60] sm:$0xff] %v1137
        %1170 = vst [vmem:[#allocation2 + $0x68] sm:$0xff] %v1138
        %1171 = vst [vmem:[#allocation2 + $0x70] sm:$0xff] %v1139
        %1172 = vst [vmem:[#allocation2 + $0x78] sm:$0xff] %v1140
        %1173 = vst [vmem:[#allocation2 + $0x80] sm:$0xff] %v1141
        %1174 = vst [vmem:[#allocation2 + $0x88] sm:$0xff] %v1142
        %1175 = vst [vmem:[#allocation2 + $0x90] sm:$0xff] %v1143
        %1176 = vst [vmem:[#allocation2 + $0x98] sm:$0xff] %v1144
        %1177 = vst [vmem:[#allocation2 + $0xa0] sm:$0xff] %v1145
        %1178 = vst [vmem:[#allocation2 + $0xa8] sm:$0xff] %v1146
        %1179 = vst [vmem:[#allocation2 + $0xb0] sm:$0xff] %v1147
        %1180 = vst [vmem:[#allocation2 + $0xb8] sm:$0xff] %v1148
        %1181 = vst [vmem:[#allocation2 + $0xc0] sm:$0xff] %v1149
        %1182 = vst [vmem:[#allocation2 + $0xc8] sm:$0xff] %v1150
        %1183 = vst [vmem:[#allocation2 + $0xd0] sm:$0xff] %v1151
        %1184 = vst [vmem:[#allocation2 + $0xd8] sm:$0xff] %v1152
        %1185 = vst [vmem:[#allocation2 + $0xe0] sm:$0xff] %v1153
        %1186 = vst [vmem:[#allocation2 + $0xe8] sm:$0xff] %v1154
        %1187 = vst [vmem:[#allocation2 + $0xf0] sm:$0xff] %v1155
        %1188 = vst [vmem:[#allocation2 + $0xf8] sm:$0xff] %v1156
        %p1189 = scmp.eq.s32.totalorder %s21, 2
        // Predicated region
        $region60: #{context_encoding_forward.6} parent=50 // pred_check
          %p1190 = pneg %p1189
        $region61: #{context_encoding_forward.6} parent=50 // pred_check_branch
          %1192 = sbr.rel (%p1190) target = $region63
        $region62: #{context_encoding_forward.6} parent=50 // pred_region
          %v1193 = vld [vmem:[#allocation2] sm:$0xff]
          %v1194 = vld [vmem:[#allocation2 + $0x8] sm:$0xff]
          %v1195 = vld [vmem:[#allocation2 + $0x10] sm:$0xff]
          %v1196 = vld [vmem:[#allocation2 + $0x18] sm:$0xff]
          %v1197 = vld [vmem:[#allocation2 + $0x20] sm:$0xff]
          %v1198 = vld [vmem:[#allocation2 + $0x28] sm:$0xff]
          %v1199 = vld [vmem:[#allocation2 + $0x30] sm:$0xff]
          %v1200 = vld [vmem:[#allocation2 + $0x38] sm:$0xff]
          %v1201 = vld [vmem:[#allocation2 + $0x40] sm:$0xff]
          %v1202 = vld [vmem:[#allocation2 + $0x48] sm:$0xff]
          %v1203 = vld [vmem:[#allocation2 + $0x50] sm:$0xff]
          %v1204 = vld [vmem:[#allocation2 + $0x58] sm:$0xff]
          %v1205 = vld [vmem:[#allocation2 + $0x60] sm:$0xff]
          %v1206 = vld [vmem:[#allocation2 + $0x68] sm:$0xff]
          %v1207 = vld [vmem:[#allocation2 + $0x70] sm:$0xff]
          %v1208 = vld [vmem:[#allocation2 + $0x78] sm:$0xff]
          %v1209 = vld [vmem:[#allocation2 + $0x80] sm:$0xff]
          %v1210 = vld [vmem:[#allocation2 + $0x88] sm:$0xff]
          %v1211 = vld [vmem:[#allocation2 + $0x90] sm:$0xff]
          %v1212 = vld [vmem:[#allocation2 + $0x98] sm:$0xff]
          %v1213 = vld [vmem:[#allocation2 + $0xa0] sm:$0xff]
          %v1214 = vld [vmem:[#allocation2 + $0xa8] sm:$0xff]
          %v1215 = vld [vmem:[#allocation2 + $0xb0] sm:$0xff]
          %v1216 = vld [vmem:[#allocation2 + $0xb8] sm:$0xff]
          %v1217 = vld [vmem:[#allocation2 + $0xc0] sm:$0xff]
          %v1218 = vld [vmem:[#allocation2 + $0xc8] sm:$0xff]
          %v1219 = vld [vmem:[#allocation2 + $0xd0] sm:$0xff]
          %v1220 = vld [vmem:[#allocation2 + $0xd8] sm:$0xff]
          %v1221 = vld [vmem:[#allocation2 + $0xe0] sm:$0xff]
          %v1222 = vld [vmem:[#allocation2 + $0xe8] sm:$0xff]
          %v1223 = vld [vmem:[#allocation2 + $0xf0] sm:$0xff]
          %v1224 = vld [vmem:[#allocation2 + $0xf8] sm:$0xff]
          %v1225 = vld [vmem:[%s453] sm:$0x1]
          %v1227 = vlaneseq
          %v1228 = vshrl.u32 %v1227, 7
          %v1229 = vsub.s32 0, %v1228
          %v1230 = vrot.slane %v1225, %v1229
          %v1232 = vadd.f32 %v1193, %v1230
          %v1233 = vadd.f32 %v1194, %v1230
          %v1234 = vadd.f32 %v1195, %v1230
          %v1235 = vadd.f32 %v1196, %v1230
          %v1236 = vadd.f32 %v1197, %v1230
          %v1237 = vadd.f32 %v1198, %v1230
          %v1238 = vadd.f32 %v1199, %v1230
          %v1239 = vadd.f32 %v1200, %v1230
          %v1240 = vadd.f32 %v1201, %v1230
          %v1241 = vadd.f32 %v1202, %v1230
          %v1242 = vadd.f32 %v1203, %v1230
          %v1243 = vadd.f32 %v1204, %v1230
          %v1244 = vadd.f32 %v1205, %v1230
          %v1245 = vadd.f32 %v1206, %v1230
          %v1246 = vadd.f32 %v1207, %v1230
          %v1247 = vadd.f32 %v1208, %v1230
          %v1248 = vadd.f32 %v1209, %v1230
          %v1249 = vadd.f32 %v1210, %v1230
          %v1250 = vadd.f32 %v1211, %v1230
          %v1251 = vadd.f32 %v1212, %v1230
          %v1252 = vadd.f32 %v1213, %v1230
          %v1253 = vadd.f32 %v1214, %v1230
          %v1254 = vadd.f32 %v1215, %v1230
          %v1255 = vadd.f32 %v1216, %v1230
          %v1256 = vadd.f32 %v1217, %v1230
          %v1257 = vadd.f32 %v1218, %v1230
          %v1258 = vadd.f32 %v1219, %v1230
          %v1259 = vadd.f32 %v1220, %v1230
          %v1260 = vadd.f32 %v1221, %v1230
          %v1261 = vadd.f32 %v1222, %v1230
          %v1262 = vadd.f32 %v1223, %v1230
          %v1263 = vadd.f32 %v1224, %v1230
          %v1264 = vmax.f32 %v1232, 0.0
          %v1265 = vmax.f32 %v1233, 0.0
          %v1266 = vmax.f32 %v1234, 0.0
          %v1267 = vmax.f32 %v1235, 0.0
          %v1268 = vmax.f32 %v1236, 0.0
          %v1269 = vmax.f32 %v1237, 0.0
          %v1270 = vmax.f32 %v1238, 0.0
          %v1271 = vmax.f32 %v1239, 0.0
          %v1272 = vmax.f32 %v1240, 0.0
          %v1273 = vmax.f32 %v1241, 0.0
          %v1274 = vmax.f32 %v1242, 0.0
          %v1275 = vmax.f32 %v1243, 0.0
          %v1276 = vmax.f32 %v1244, 0.0
          %v1277 = vmax.f32 %v1245, 0.0
          %v1278 = vmax.f32 %v1246, 0.0
          %v1279 = vmax.f32 %v1247, 0.0
          %v1280 = vmax.f32 %v1248, 0.0
          %v1281 = vmax.f32 %v1249, 0.0
          %v1282 = vmax.f32 %v1250, 0.0
          %v1283 = vmax.f32 %v1251, 0.0
          %v1284 = vmax.f32 %v1252, 0.0
          %v1285 = vmax.f32 %v1253, 0.0
          %v1286 = vmax.f32 %v1254, 0.0
          %v1287 = vmax.f32 %v1255, 0.0
          %v1288 = vmax.f32 %v1256, 0.0
          %v1289 = vmax.f32 %v1257, 0.0
          %v1290 = vmax.f32 %v1258, 0.0
          %v1291 = vmax.f32 %v1259, 0.0
          %v1292 = vmax.f32 %v1260, 0.0
          %v1293 = vmax.f32 %v1261, 0.0
          %v1294 = vmax.f32 %v1262, 0.0
          %v1295 = vmax.f32 %v1263, 0.0
          %1296 = vst [vmem:[%s461] sm:$0xff] %v1264
          %1297 = vst [vmem:[%s461 + $0x8] sm:$0xff] %v1265
          %1298 = vst [vmem:[%s461 + $0x10] sm:$0xff] %v1266
          %1299 = vst [vmem:[%s461 + $0x18] sm:$0xff] %v1267
          %1300 = vst [vmem:[%s461 + $0x20] sm:$0xff] %v1268
          %1301 = vst [vmem:[%s461 + $0x28] sm:$0xff] %v1269
          %1302 = vst [vmem:[%s461 + $0x30] sm:$0xff] %v1270
          %1303 = vst [vmem:[%s461 + $0x38] sm:$0xff] %v1271
          %1304 = vst [vmem:[%s461 + $0x40] sm:$0xff] %v1272
          %1305 = vst [vmem:[%s461 + $0x48] sm:$0xff] %v1273
          %1306 = vst [vmem:[%s461 + $0x50] sm:$0xff] %v1274
          %1307 = vst [vmem:[%s461 + $0x58] sm:$0xff] %v1275
          %1308 = vst [vmem:[%s461 + $0x60] sm:$0xff] %v1276
          %1309 = vst [vmem:[%s461 + $0x68] sm:$0xff] %v1277
          %1310 = vst [vmem:[%s461 + $0x70] sm:$0xff] %v1278
          %1311 = vst [vmem:[%s461 + $0x78] sm:$0xff] %v1279
          %1312 = vst [vmem:[%s461 + $0x80] sm:$0xff] %v1280
          %1313 = vst [vmem:[%s461 + $0x88] sm:$0xff] %v1281
          %1314 = vst [vmem:[%s461 + $0x90] sm:$0xff] %v1282
          %1315 = vst [vmem:[%s461 + $0x98] sm:$0xff] %v1283
          %1316 = vst [vmem:[%s461 + $0xa0] sm:$0xff] %v1284
          %1317 = vst [vmem:[%s461 + $0xa8] sm:$0xff] %v1285
          %1318 = vst [vmem:[%s461 + $0xb0] sm:$0xff] %v1286
          %1319 = vst [vmem:[%s461 + $0xb8] sm:$0xff] %v1287
          %1320 = vst [vmem:[%s461 + $0xc0] sm:$0xff] %v1288
          %1321 = vst [vmem:[%s461 + $0xc8] sm:$0xff] %v1289
          %1322 = vst [vmem:[%s461 + $0xd0] sm:$0xff] %v1290
          %1323 = vst [vmem:[%s461 + $0xd8] sm:$0xff] %v1291
          %1324 = vst [vmem:[%s461 + $0xe0] sm:$0xff] %v1292
          %1325 = vst [vmem:[%s461 + $0xe8] sm:$0xff] %v1293
          %1326 = vst [vmem:[%s461 + $0xf0] sm:$0xff] %v1294
          %1327 = vst [vmem:[%s461 + $0xf8] sm:$0xff] %v1295
        $region63: #{context_encoding_forward.6} parent=50 // pred_fallthru
          _
        %s1328 = smul.u32 32, %s19
        %p1329 = scmp.lt.s32.totalorder %s1328, 63
        %s1330 = scalar_select %p1329, %s1328, 63
        %p1331 = scmp.lt.s32.totalorder %s20, 0
        %s1332 = scalar_select %p1331, %s20, 0
        %s1333 = sadd.s32 %s1332, %s1330
        %s1334 = smul.addr %s1333, 8
        %s1335 = scalar_lea.vmem %s3, %s1334
        // Predicated region
        $region64: #{context_encoding_forward.6} parent=50 // pred_check
          %p1336 = pneg %p135
        $region65: #{context_encoding_forward.6} parent=50 // pred_check_branch
          %1338 = sbr.rel (%p1336) target = $region67
        $region66: #{context_encoding_forward.6} parent=50 // pred_region
          %s1339 = smul.u32 32, %s19
        $region67: #{context_encoding_forward.6} parent=50 // pred_fallthru
          _
      $region51: #{context_encoding_forward.6} parent=5 // pred_fallthru
        _
      %p1340 = scmp.le.s32.totalorder 2, %s9
      // Predicated region
      $region68: #{context_encoding_forward.6} parent=5 // pred_check
        %p1341 = pneg %p1340
      $region69: #{context_encoding_forward.6} parent=5 // pred_check_branch
        %1343 = sbr.rel (%p1341) target = $region71
      $region70: #{context_encoding_forward.6} parent=5 // pred_region
        %s1344 = ssub.s32 %s9, 2
        // Predicated region
        $region72: #{context_encoding_forward.6} parent=70 // pred_check
          %p1345 = pneg %p141
        $region73: #{context_encoding_forward.6} parent=70 // pred_check_branch
          %1347 = sbr.rel (%p1345) target = $region75
        $region74: #{context_encoding_forward.6} parent=70 // pred_region
          %s1348 = smul.u32 32, %s22
          %p1349 = scmp.lt.s32.totalorder %s1348, 63
          %s1350 = scalar_select %p1349, %s1348, 63
          %p1351 = scmp.lt.s32.totalorder %s23, 0
          %s1352 = scalar_select %p1351, %s23, 0
          %s1353 = sadd.s32 %s1352, %s1350
          %s1354 = smul.addr %s1353, 8
          %s1355 = scalar_lea.vmem %s3, %s1354
        $region75: #{context_encoding_forward.6} parent=70 // pred_fallthru
          _
      $region71: #{context_encoding_forward.6} parent=5 // pred_fallthru
        _
    $region6: #{context_encoding_forward.6} parent=1 // loop_footer
      %s13 = sadd.s32 1, %s9
    $region7: #{context_encoding_forward.6} parent=1 // loop_footer_branch
      %8 = sbr.rel target = $region3
    $region8: #{context_encoding_forward.6} parent=1 // loop_exit
      _

// kernel: context_encoding_forward.7
$region0: #{context_encoding_forward.7}
  #allocation0 [shape = 'u32[]', space=smem, size = 0x4, offset = 0x4, fixed_abs, tag = 'smem constant byte address 0x4 - core index']
  #allocation1 [shape = 'u32[144,128]{1,0:T(1,128)}', space=vmem, size = 0x12000, scoped, tag = 'internal scratch']
  #allocation2 [shape = 'f32[128,256]{1,0:T(8,128)}', space=vmem, size = 0x20000, scoped, tag = 'scratch operand']
  %s0 = inlined_call_operand.vmem [shape: f32[128,1152], index: 0, kind: input, shape index: {}]
  %s1 = inlined_call_operand.vmem [shape: f32[1152,256], index: 1, kind: input, shape index: {}]
  %s2 = inlined_call_operand.vmem [shape: f32[1,256], index: 2, kind: input, shape index: {}]
  %s3 = inlined_call_operand.vmem [shape: f32[128,256], index: 3, kind: output, shape index: {}]
  %s4 = sld [smem:[#allocation0]]
  $region76: #{context_encoding_forward.7} parent=0
    _
  %s6 = ssub.s32 1, %s4
  %s7 = scalar_select 0, %s6, %s4
  $region1: #{context_encoding_forward.7} parent=0
    #allocation3 [shape = 'u8[393216]{0}', space=vmem, size = 0x60000, scoped, tag = 'input window, operand 0']
    loop: start=0, step=1, limit=5
    $region2: #{context_encoding_forward.7} parent=1 // loop_pre_header
      _
    $region3: #{context_encoding_forward.7} parent=1 // loop_header
      %s9 = sphi 0, %s13
      %p10 = scmp.ge.s32.totalorder %s9, 5
      %s16 = sphi 0, %s35
      %s17 = sphi 0, %s31
      %s18 = sphi 0, %s27
      %s19 = sphi 0, %s16
      %s20 = sphi 0, %s17
      %s21 = sphi 0, %s18
      %s22 = sphi 0, %s19
      %s23 = sphi 0, %s20
      %s24 = sphi 0, %s21
      %s40 = sphi 0, %s42
      %s43 = sphi 0, %s40
      %s44 = sphi 0, %s43
      %s60 = sphi 0, %s44
      %s68 = sphi 0, %s70
      %s71 = sphi 0, %s68
      %s72 = sphi 0, %s71
      %s88 = sphi 0, %s72
      %s94 = sphi 0, %s96
      %s97 = sphi 0, %s94
      %s98 = sphi 0, %s97
      %s114 = sphi 0, %s98
      %s122 = sphi 0, %s124
      %s125 = sphi 0, %s122
      %s126 = sphi 0, %s125
      %s142 = sphi 0, %s126
    $region4: #{context_encoding_forward.7} parent=1 // loop_header_branch
      %12 = sbr.rel (%p10) target = $region8
    $region5: #{context_encoding_forward.7} parent=1 // loop_body
      %s14 = ssub.s32 %s9, 1
      %s15 = ssub.s32 %s9, 2
      %s25 = sadd.s32 1, %s18
      %p26 = scmp.ge.s32.totalorder %s25, 3
      %s27 = scalar_select %p26, 0, %s25
      %s28 = sadd.s32 1, %s17
      %s29 = scalar_select %p26, %s28, %s17
      %p30 = scmp.ge.s32.totalorder %s29, 1
      %s31 = scalar_select %p30, 0, %s29
      %s32 = sadd.s32 1, %s16
      %s33 = scalar_select %p30, %s32, %s16
      %p34 = scmp.ge.s32.totalorder %s33, 1
      %s35 = scalar_select %p34, 0, %s33
      %s36 = ssub.s32 %s16, %s35
      %s37 = ssub.s32 %s18, %s27
      %s38 = sor.u32 %s36, %s37
      %p39 = scmp.eq.s32.totalorder %s38, 0
      %s41 = sadd.s32 %s40, 1
      %s42 = scalar_select %p39, %s40, %s41
      %p45 = pneg %p39
      %p46 = scmp.eq.s32.totalorder %s9, 2
      %p47 = por %p45, %p46
      %p48 = scmp.ne.s32.totalorder %s40, %s43
      %p49 = scmp.eq.s32.totalorder %s9, 0
      %p50 = por %p48, %p49
      %p51 = scmp.ne.s32.totalorder %s40, %s43
      %p52 = scmp.eq.s32.totalorder %s14, 2
      %p53 = por %p51, %p52
      %p54 = scmp.ne.s32.totalorder %s43, %s44
      %p55 = scmp.eq.s32.totalorder %s14, 0
      %p56 = por %p54, %p55
      %p57 = scmp.ne.s32.totalorder %s43, %s44
      %p58 = scmp.eq.s32.totalorder %s15, 2
      %p59 = por %p57, %p58
      %p61 = scmp.ne.s32.totalorder %s44, %s60
      %p62 = scmp.eq.s32.totalorder %s15, 0
      %p63 = por %p61, %p62
      %s64 = ssub.s32 %s18, %s27
      %s65 = ssub.s32 %s17, %s31
      %s66 = sor.u32 %s64, %s65
      %p67 = scmp.eq.s32.totalorder %s66, 0
      %s69 = sadd.s32 %s68, 1
      %s70 = scalar_select %p67, %s68, %s69
      %p73 = pneg %p67
      %p74 = scmp.eq.s32.totalorder %s9, 2
      %p75 = por %p73, %p74
      %p76 = scmp.ne.s32.totalorder %s68, %s71
      %p77 = scmp.eq.s32.totalorder %s9, 0
      %p78 = por %p76, %p77
      %p79 = scmp.ne.s32.totalorder %s68, %s71
      %p80 = scmp.eq.s32.totalorder %s14, 2
      %p81 = por %p79, %p80
      %p82 = scmp.ne.s32.totalorder %s71, %s72
      %p83 = scmp.eq.s32.totalorder %s14, 0
      %p84 = por %p82, %p83
      %p85 = scmp.ne.s32.totalorder %s71, %s72
      %p86 = scmp.eq.s32.totalorder %s15, 2
      %p87 = por %p85, %p86
      %p89 = scmp.ne.s32.totalorder %s72, %s88
      %p90 = scmp.eq.s32.totalorder %s15, 0
      %p91 = por %p89, %p90
      %s92 = ssub.s32 %s17, %s31
      %p93 = scmp.eq.s32.totalorder %s92, 0
      %s95 = sadd.s32 %s94, 1
      %s96 = scalar_select %p93, %s94, %s95
      %p99 = pneg %p93
      %p100 = scmp.eq.s32.totalorder %s9, 2
      %p101 = por %p99, %p100
      %p102 = scmp.ne.s32.totalorder %s94, %s97
      %p103 = scmp.eq.s32.totalorder %s9, 0
      %p104 = por %p102, %p103
      %p105 = scmp.ne.s32.totalorder %s94, %s97
      %p106 = scmp.eq.s32.totalorder %s14, 2
      %p107 = por %p105, %p106
      %p108 = scmp.ne.s32.totalorder %s97, %s98
      %p109 = scmp.eq.s32.totalorder %s14, 0
      %p110 = por %p108, %p109
      %p111 = scmp.ne.s32.totalorder %s97, %s98
      %p112 = scmp.eq.s32.totalorder %s15, 2
      %p113 = por %p111, %p112
      %p115 = scmp.ne.s32.totalorder %s98, %s114
      %p116 = scmp.eq.s32.totalorder %s15, 0
      %p117 = por %p115, %p116
      %s118 = ssub.s32 %s16, %s35
      %s119 = ssub.s32 %s17, %s31
      %s120 = sor.u32 %s118, %s119
      %p121 = scmp.eq.s32.totalorder %s120, 0
      %s123 = sadd.s32 %s122, 1
      %s124 = scalar_select %p121, %s122, %s123
      %p127 = pneg %p121
      %p128 = scmp.eq.s32.totalorder %s9, 2
      %p129 = por %p127, %p128
      %p130 = scmp.ne.s32.totalorder %s122, %s125
      %p131 = scmp.eq.s32.totalorder %s9, 0
      %p132 = por %p130, %p131
      %p133 = scmp.ne.s32.totalorder %s122, %s125
      %p134 = scmp.eq.s32.totalorder %s14, 2
      %p135 = por %p133, %p134
      %p136 = scmp.ne.s32.totalorder %s125, %s126
      %p137 = scmp.eq.s32.totalorder %s14, 0
      %p138 = por %p136, %p137
      %p139 = scmp.ne.s32.totalorder %s125, %s126
      %p140 = scmp.eq.s32.totalorder %s15, 2
      %p141 = por %p139, %p140
      %p143 = scmp.ne.s32.totalorder %s126, %s142
      %p144 = scmp.eq.s32.totalorder %s15, 0
      %p145 = por %p143, %p144
      %p146 = scmp.le.s32.totalorder 1, %s9
      %p147 = scmp.lt.s32.totalorder %s9, 4
      %p148 = pnand %p146, %p147
      %p149 = pneg %p148
      // Predicated region
      $region9: #{context_encoding_forward.7} parent=5 // pred_check
        _
      $region10: #{context_encoding_forward.7} parent=5 // pred_check_branch
        %151 = sbr.rel (%p148) target = $region12
      $region11: #{context_encoding_forward.7} parent=5 // pred_region
        %s152 = ssub.s32 %s9, 1
        // Predicated region
        $region13: #{context_encoding_forward.7} parent=11 // pred_check
          %p153 = pneg %p110
        $region14: #{context_encoding_forward.7} parent=11 // pred_check_branch
          %155 = sbr.rel (%p153) target = $region16
        $region15: #{context_encoding_forward.7} parent=11 // pred_region
          %s156 = smul.u32 2, %s20
          %p157 = scmp.lt.s32.totalorder %s156, 1
          %s158 = scalar_select %p157, %s156, 1
          %s159 = scalar_lea.vmem %s2, %s158
          %s160 = smul.u32 2, %s20
        $region16: #{context_encoding_forward.7} parent=11 // pred_fallthru
          _
      $region12: #{context_encoding_forward.7} parent=5 // pred_fallthru
        _
      %p161 = scmp.lt.s32.totalorder %s9, 3
      // Predicated region
      $region17: #{context_encoding_forward.7} parent=5 // pred_check
        %p162 = pneg %p161
      $region18: #{context_encoding_forward.7} parent=5 // pred_check_branch
        %164 = sbr.rel (%p162) target = $region20
      $region19: #{context_encoding_forward.7} parent=5 // pred_region
        // Predicated region
        $region21: #{context_encoding_forward.7} parent=19 // pred_check
          %p165 = pneg %p50
        $region22: #{context_encoding_forward.7} parent=19 // pred_check_branch
          %167 = sbr.rel (%p165) target = $region24
        $region23: #{context_encoding_forward.7} parent=19 // pred_region
          %s168 = sand.u32 %s40, 1
          %s169 = sand.u32 %s40, 1
          %s170 = smul.addr %s169, 384
          %s171 = scalar_lea.vmem [#allocation3], %s170
          %s172 = smul.u32 16, %s16
          %s173 = smul.u32 3, %s18
          %s174 = smul.addr %s172, 9
          %s175 = sadd.s32 %s173, %s174
          %s176 = smul.addr %s175, 8
          %s177 = scalar_lea.vmem %s0, %s176
          // Predicated region
          $region25: #{context_encoding_forward.7} parent=23 // pred_check
            _
          $region26: #{context_encoding_forward.7} parent=23 // pred_check_branch
            %179 = sbr.rel (0) target = $region28
          $region27: #{context_encoding_forward.7} parent=23 // pred_region
            // Predicated region
            $region29: #{context_encoding_forward.7} parent=27 // pred_check
              _
            $region30: #{context_encoding_forward.7} parent=27 // pred_check_branch
              %181 = sbr.rel (0) target = $region32
            $region31: #{context_encoding_forward.7} parent=27 // pred_region
              loop: start=0, step=1, limit=1
              $region33: #{context_encoding_forward.7} parent=31 // loop_pre_header
                _
              $region34: #{context_encoding_forward.7} parent=31 // loop_header
                %s183 = sphi 0, %s187
                %p184 = scmp.ge.s32.totalorder %s183, 1
                %s188 = sphi %s177, %s177
                %s189 = sphi %s171, %s171
              $region35: #{context_encoding_forward.7} parent=31 // loop_header_branch
                %186 = sbr.rel (%p184) target = $region39
              $region36: #{context_encoding_forward.7} parent=31 // loop_body
                %v190 = vld [vmem:[%s188] sm:$0xff]
                %191 = vst [vmem:[%s189] sm:$0xff] %v190
                %v192 = vld [vmem:[%s188 + $0x8] sm:$0xff]
                %193 = vst [vmem:[%s189 + $0x8] sm:$0xff] %v192
                %v194 = vld [vmem:[%s188 + $0x10] sm:$0xff]
                %195 = vst [vmem:[%s189 + $0x10] sm:$0xff] %v194
                %v196 = vld [vmem:[%s188 + $0x48] sm:$0xff]
                %197 = vst [vmem:[%s189 + $0x18] sm:$0xff] %v196
                %v198 = vld [vmem:[%s188 + $0x50] sm:$0xff]
                %199 = vst [vmem:[%s189 + $0x20] sm:$0xff] %v198
                %v200 = vld [vmem:[%s188 + $0x58] sm:$0xff]
                %201 = vst [vmem:[%s189 + $0x28] sm:$0xff] %v200
                %v202 = vld [vmem:[%s188 + $0x90] sm:$0xff]
                %203 = vst [vmem:[%s189 + $0x30] sm:$0xff] %v202
                %v204 = vld [vmem:[%s188 + $0x98] sm:$0xff]
                %205 = vst [vmem:[%s189 + $0x38] sm:$0xff] %v204
                %v206 = vld [vmem:[%s188 + $0xa0] sm:$0xff]
                %207 = vst [vmem:[%s189 + $0x40] sm:$0xff] %v206
                %v208 = vld [vmem:[%s188 + $0xd8] sm:$0xff]
                %209 = vst [vmem:[%s189 + $0x48] sm:$0xff] %v208
                %v210 = vld [vmem:[%s188 + $0xe0] sm:$0xff]
                %211 = vst [vmem:[%s189 + $0x50] sm:$0xff] %v210
                %v212 = vld [vmem:[%s188 + $0xe8] sm:$0xff]
                %213 = vst [vmem:[%s189 + $0x58] sm:$0xff] %v212
                %v214 = vld [vmem:[%s188 + $0x120] sm:$0xff]
                %215 = vst [vmem:[%s189 + $0x60] sm:$0xff] %v214
                %v216 = vld [vmem:[%s188 + $0x128] sm:$0xff]
                %217 = vst [vmem:[%s189 + $0x68] sm:$0xff] %v216
                %v218 = vld [vmem:[%s188 + $0x130] sm:$0xff]
                %219 = vst [vmem:[%s189 + $0x70] sm:$0xff] %v218
                %v220 = vld [vmem:[%s188 + $0x168] sm:$0xff]
                %221 = vst [vmem:[%s189 + $0x78] sm:$0xff] %v220
                %v222 = vld [vmem:[%s188 + $0x170] sm:$0xff]
                %223 = vst [vmem:[%s189 + $0x80] sm:$0xff] %v222
                %v224 = vld [vmem:[%s188 + $0x178] sm:$0xff]
                %225 = vst [vmem:[%s189 + $0x88] sm:$0xff] %v224
                %v226 = vld [vmem:[%s188 + $0x1b0] sm:$0xff]
                %227 = vst [vmem:[%s189 + $0x90] sm:$0xff] %v226
                %v228 = vld [vmem:[%s188 + $0x1b8] sm:$0xff]
                %229 = vst [vmem:[%s189 + $0x98] sm:$0xff] %v228
                %v230 = vld [vmem:[%s188 + $0x1c0] sm:$0xff]
                %231 = vst [vmem:[%s189 + $0xa0] sm:$0xff] %v230
                %v232 = vld [vmem:[%s188 + $0x1f8] sm:$0xff]
                %233 = vst [vmem:[%s189 + $0xa8] sm:$0xff] %v232
                %v234 = vld [vmem:[%s188 + $0x200] sm:$0xff]
                %235 = vst [vmem:[%s189 + $0xb0] sm:$0xff] %v234
                %v236 = vld [vmem:[%s188 + $0x208] sm:$0xff]
                %237 = vst [vmem:[%s189 + $0xb8] sm:$0xff] %v236
                %v238 = vld [vmem:[%s188 + $0x240] sm:$0xff]
                %239 = vst [vmem:[%s189 + $0xc0] sm:$0xff] %v238
                %v240 = vld [vmem:[%s188 + $0x248] sm:$0xff]
                %241 = vst [vmem:[%s189 + $0xc8] sm:$0xff] %v240
                %v242 = vld [vmem:[%s188 + $0x250] sm:$0xff]
                %243 = vst [vmem:[%s189 + $0xd0] sm:$0xff] %v242
                %v244 = vld [vmem:[%s188 + $0x288] sm:$0xff]
                %245 = vst [vmem:[%s189 + $0xd8] sm:$0xff] %v244
                %v246 = vld [vmem:[%s188 + $0x290] sm:$0xff]
                %247 = vst [vmem:[%s189 + $0xe0] sm:$0xff] %v246
                %v248 = vld [vmem:[%s188 + $0x298] sm:$0xff]
                %249 = vst [vmem:[%s189 + $0xe8] sm:$0xff] %v248
                %v250 = vld [vmem:[%s188 + $0x2d0] sm:$0xff]
                %251 = vst [vmem:[%s189 + $0xf0] sm:$0xff] %v250
                %v252 = vld [vmem:[%s188 + $0x2d8] sm:$0xff]
                %253 = vst [vmem:[%s189 + $0xf8] sm:$0xff] %v252
                %v254 = vld [vmem:[%s188 + $0x2e0] sm:$0xff]
                %255 = vst [vmem:[%s189 + $0x100] sm:$0xff] %v254
                %v256 = vld [vmem:[%s188 + $0x318] sm:$0xff]
                %257 = vst [vmem:[%s189 + $0x108] sm:$0xff] %v256
                %v258 = vld [vmem:[%s188 + $0x320] sm:$0xff]
                %259 = vst [vmem:[%s189 + $0x110] sm:$0xff] %v258
                %v260 = vld [vmem:[%s188 + $0x328] sm:$0xff]
                %261 = vst [vmem:[%s189 + $0x118] sm:$0xff] %v260
                %v262 = vld [vmem:[%s188 + $0x360] sm:$0xff]
                %263 = vst [vmem:[%s189 + $0x120] sm:$0xff] %v262
                %v264 = vld [vmem:[%s188 + $0x368] sm:$0xff]
                %265 = vst [vmem:[%s189 + $0x128] sm:$0xff] %v264
                %v266 = vld [vmem:[%s188 + $0x370] sm:$0xff]
                %267 = vst [vmem:[%s189 + $0x130] sm:$0xff] %v266
                %v268 = vld [vmem:[%s188 + $0x3a8] sm:$0xff]
                %269 = vst [vmem:[%s189 + $0x138] sm:$0xff] %v268
                %v270 = vld [vmem:[%s188 + $0x3b0] sm:$0xff]
                %271 = vst [vmem:[%s189 + $0x140] sm:$0xff] %v270
                %v272 = vld [vmem:[%s188 + $0x3b8] sm:$0xff]
                %273 = vst [vmem:[%s189 + $0x148] sm:$0xff] %v272
                %v274 = vld [vmem:[%s188 + $0x3f0] sm:$0xff]
                %275 = vst [vmem:[%s189 + $0x150] sm:$0xff] %v274
                %v276 = vld [vmem:[%s188 + $0x3f8] sm:$0xff]
                %277 = vst [vmem:[%s189 + $0x158] sm:$0xff] %v276
                %v278 = vld [vmem:[%s188 + $0x400] sm:$0xff]
                %279 = vst [vmem:[%s189 + $0x160] sm:$0xff] %v278
                %v280 = vld [vmem:[%s188 + $0x438] sm:$0xff]
                %281 = vst [vmem:[%s189 + $0x168] sm:$0xff] %v280
                %v282 = vld [vmem:[%s188 + $0x440] sm:$0xff]
                %283 = vst [vmem:[%s189 + $0x170] sm:$0xff] %v282
                %v284 = vld [vmem:[%s188 + $0x448] sm:$0xff]
                %285 = vst [vmem:[%s189 + $0x178] sm:$0xff] %v284
              $region37: #{context_encoding_forward.7} parent=31 // loop_footer
                %s187 = sadd.s32 1, %s183
              $region38: #{context_encoding_forward.7} parent=31 // loop_footer_branch
                %182 = sbr.rel target = $region34
              $region39: #{context_encoding_forward.7} parent=31 // loop_exit
                _
            $region32: #{context_encoding_forward.7} parent=27 // pred_fallthru
              _
            // Predicated region
            $region40: #{context_encoding_forward.7} parent=27 // pred_check
              _
            $region41: #{context_encoding_forward.7} parent=27 // pred_check_branch
              %287 = sbr.rel target = $region43
            $region42: #{context_encoding_forward.7} parent=27 // pred_region
              _
            $region43: #{context_encoding_forward.7} parent=27 // pred_fallthru
              _
          $region28: #{context_encoding_forward.7} parent=23 // pred_fallthru
            _
          %288 = vnop
        $region24: #{context_encoding_forward.7} parent=19 // pred_fallthru
          _
        // Predicated region
        $region44: #{context_encoding_forward.7} parent=19 // pred_check
          %p289 = pneg %p78
        $region45: #{context_encoding_forward.7} parent=19 // pred_check_branch
          %291 = sbr.rel (%p289) target = $region47
        $region46: #{context_encoding_forward.7} parent=19 // pred_region
          %s292 = smul.u32 48, %s18
          %s293 = smul.u32 2, %s17
          %p294 = scmp.lt.s32.totalorder %s292, 143
          %s295 = scalar_select %p294, %s292, 143
          %p296 = scmp.lt.s32.totalorder %s293, 1
          %s297 = scalar_select %p296, %s293, 1
          %s298 = smul.addr %s295, 2
          %s299 = sadd.s32 %s297, %s298
          %s300 = smul.addr %s299, 8
          %s301 = scalar_lea.vmem %s1, %s300
          %s302 = smul.u32 48, %s18
          %s303 = smul.u32 2, %s17
        $region47: #{context_encoding_forward.7} parent=19 // pred_fallthru
          _
      $region20: #{context_encoding_forward.7} parent=5 // pred_fallthru
        _
      %p304 = scmp.le.s32.totalorder 1, %s9
      %p305 = scmp.lt.s32.totalorder %s9, 4
      %p306 = pnand %p304, %p305
      %p307 = pneg %p306
      // Predicated region
      $region48: #{context_encoding_forward.7} parent=5 // pred_check
        _
      $region49: #{context_encoding_forward.7} parent=5 // pred_check_branch
        %309 = sbr.rel (%p306) target = $region51
      $region50: #{context_encoding_forward.7} parent=5 // pred_region
        %s310 = ssub.s32 %s9, 1
        %s311 = sand.u32 %s43, 1
        %s312 = sand.u32 %s43, 1
        %s313 = smul.addr %s312, 384
        %s314 = scalar_lea.vmem [#allocation3], %s313
        // Predicated region
        $region52: #{context_encoding_forward.7} parent=50 // pred_check
          %p315 = pneg %p56
        $region53: #{context_encoding_forward.7} parent=50 // pred_check_branch
          %317 = sbr.rel (%p315) target = $region55
        $region54: #{context_encoding_forward.7} parent=50 // pred_region
          _
        $region55: #{context_encoding_forward.7} parent=50 // pred_fallthru
          _
        %s318 = sand.u32 %s43, 1
        %s319 = sand.u32 %s43, 1
        %s320 = smul.addr %s319, 384
        %s321 = scalar_lea.vmem [#allocation3], %s320
        %p322 = pneg %p56
        %p323 = pneg %p53
        %s324 = smul.u32 48, %s21
        %s325 = smul.u32 2, %s20
        %p326 = scmp.lt.s32.totalorder %s324, 143
        %s327 = scalar_select %p326, %s324, 143
        %p328 = scmp.lt.s32.totalorder %s325, 1
        %s329 = scalar_select %p328, %s325, 1
        %s330 = smul.addr %s327, 2
        %s331 = sadd.s32 %s329, %s330
        %s332 = smul.addr %s331, 8
        %s333 = scalar_lea.vmem %s1, %s332
        %p334 = pneg %p84
        %p335 = pneg %p81
        %s336 = smul.u32 2, %s20
        %p337 = scmp.lt.s32.totalorder %s336, 1
        %s338 = scalar_select %p337, %s336, 1
        %s339 = scalar_lea.vmem %s2, %s338
        %p340 = pneg %p110
        %p341 = pneg %p107
        %p342 = pneg %p138
        %p343 = pneg %p135
        %s344 = smul.u32 16, %s19
        %s345 = smul.u32 2, %s20
        %p346 = scmp.lt.s32.totalorder %s344, 15
        %s347 = scalar_select %p346, %s344, 15
        %p348 = scmp.lt.s32.totalorder %s345, 1
        %s349 = scalar_select %p348, %s345, 1
        %s350 = smul.addr %s347, 2
        %s351 = sadd.s32 %s349, %s350
        %s352 = smul.addr %s351, 8
        %s353 = scalar_lea.vmem %s3, %s352
        %s354 = smul.u32 16, %s19
        %s355 = smul.u32 3, %s21
        %s356 = smul.u32 48, %s21
        %s357 = smul.u32 2, %s20
        %p358 = scmp.lt.s32.totalorder %s356, 143
        %s359 = scalar_select %p358, %s356, 143
        %p360 = scmp.lt.s32.totalorder %s357, 1
        %s361 = scalar_select %p360, %s357, 1
        %s362 = smul.addr %s359, 2
        %s363 = sadd.s32 %s361, %s362
        %s364 = smul.addr %s363, 8
        %s365 = scalar_lea.vmem %s1, %s364
        %s366 = smul.u32 48, %s21
        %s367 = smul.u32 2, %s20
        %s368 = smul.u32 2, %s20
        %p369 = scmp.lt.s32.totalorder %s368, 1
        %s370 = scalar_select %p369, %s368, 1
        %s371 = scalar_lea.vmem %s2, %s370
        %s372 = smul.u32 2, %s20
        %s373 = smul.u32 16, %s19
        %s374 = smul.u32 2, %s20
        %p375 = scmp.lt.s32.totalorder %s373, 15
        %s376 = scalar_select %p375, %s373, 15
        %p377 = scmp.lt.s32.totalorder %s374, 1
        %s378 = scalar_select %p377, %s374, 1
        %s379 = smul.addr %s376, 2
        %s380 = sadd.s32 %s378, %s379
        %s381 = smul.addr %s380, 8
        %s382 = scalar_lea.vmem %s3, %s381
        %s383 = smul.u32 16, %s19
        %s384 = smul.u32 2, %s20
        %p385 = scmp.eq.s32.totalorder %s21, 0
        // Predicated region
        $region56: #{context_encoding_forward.7} parent=50 // pred_check
          %p386 = pneg %p385
        $region57: #{context_encoding_forward.7} parent=50 // pred_check_branch
          %388 = sbr.rel (%p386) target = $region59
        $region58: #{context_encoding_forward.7} parent=50 // pred_region
          %389 = vst [vmem:[#allocation2] sm:$0xff] 0.0
          %390 = vst [vmem:[#allocation2 + $0x8] sm:$0xff] 0.0
          %391 = vst [vmem:[#allocation2 + $0x10] sm:$0xff] 0.0
          %392 = vst [vmem:[#allocation2 + $0x18] sm:$0xff] 0.0
          %393 = vst [vmem:[#allocation2 + $0x20] sm:$0xff] 0.0
          %394 = vst [vmem:[#allocation2 + $0x28] sm:$0xff] 0.0
          %395 = vst [vmem:[#allocation2 + $0x30] sm:$0xff] 0.0
          %396 = vst [vmem:[#allocation2 + $0x38] sm:$0xff] 0.0
          %397 = vst [vmem:[#allocation2 + $0x40] sm:$0xff] 0.0
          %398 = vst [vmem:[#allocation2 + $0x48] sm:$0xff] 0.0
          %399 = vst [vmem:[#allocation2 + $0x50] sm:$0xff] 0.0
          %400 = vst [vmem:[#allocation2 + $0x58] sm:$0xff] 0.0
          %401 = vst [vmem:[#allocation2 + $0x60] sm:$0xff] 0.0
          %402 = vst [vmem:[#allocation2 + $0x68] sm:$0xff] 0.0
          %403 = vst [vmem:[#allocation2 + $0x70] sm:$0xff] 0.0
          %404 = vst [vmem:[#allocation2 + $0x78] sm:$0xff] 0.0
          %405 = vst [vmem:[#allocation2 + $0x80] sm:$0xff] 0.0
          %406 = vst [vmem:[#allocation2 + $0x88] sm:$0xff] 0.0
          %407 = vst [vmem:[#allocation2 + $0x90] sm:$0xff] 0.0
          %408 = vst [vmem:[#allocation2 + $0x98] sm:$0xff] 0.0
          %409 = vst [vmem:[#allocation2 + $0xa0] sm:$0xff] 0.0
          %410 = vst [vmem:[#allocation2 + $0xa8] sm:$0xff] 0.0
          %411 = vst [vmem:[#allocation2 + $0xb0] sm:$0xff] 0.0
          %412 = vst [vmem:[#allocation2 + $0xb8] sm:$0xff] 0.0
          %413 = vst [vmem:[#allocation2 + $0xc0] sm:$0xff] 0.0
          %414 = vst [vmem:[#allocation2 + $0xc8] sm:$0xff] 0.0
          %415 = vst [vmem:[#allocation2 + $0xd0] sm:$0xff] 0.0
          %416 = vst [vmem:[#allocation2 + $0xd8] sm:$0xff] 0.0
          %417 = vst [vmem:[#allocation2 + $0xe0] sm:$0xff] 0.0
          %418 = vst [vmem:[#allocation2 + $0xe8] sm:$0xff] 0.0
          %419 = vst [vmem:[#allocation2 + $0xf0] sm:$0xff] 0.0
          %420 = vst [vmem:[#allocation2 + $0xf8] sm:$0xff] 0.0
        $region59: #{context_encoding_forward.7} parent=50 // pred_fallthru
          _
        %v421 = vld [vmem:[#allocation2] sm:$0xff]
        %v422 = vld [vmem:[#allocation2 + $0x8] sm:$0xff]
        %v423 = vld [vmem:[#allocation2 + $0x10] sm:$0xff]
        %v424 = vld [vmem:[#allocation2 + $0x18] sm:$0xff]
        %v425 = vld [vmem:[#allocation2 + $0x20] sm:$0xff]
        %v426 = vld [vmem:[#allocation2 + $0x28] sm:$0xff]
        %v427 = vld [vmem:[#allocation2 + $0x30] sm:$0xff]
        %v428 = vld [vmem:[#allocation2 + $0x38] sm:$0xff]
        %v429 = vld [vmem:[#allocation2 + $0x40] sm:$0xff]
        %v430 = vld [vmem:[#allocation2 + $0x48] sm:$0xff]
        %v431 = vld [vmem:[#allocation2 + $0x50] sm:$0xff]
        %v432 = vld [vmem:[#allocation2 + $0x58] sm:$0xff]
        %v433 = vld [vmem:[#allocation2 + $0x60] sm:$0xff]
        %v434 = vld [vmem:[#allocation2 + $0x68] sm:$0xff]
        %v435 = vld [vmem:[#allocation2 + $0x70] sm:$0xff]
        %v436 = vld [vmem:[#allocation2 + $0x78] sm:$0xff]
        %v437 = vld [vmem:[#allocation2 + $0x80] sm:$0xff]
        %v438 = vld [vmem:[#allocation2 + $0x88] sm:$0xff]
        %v439 = vld [vmem:[#allocation2 + $0x90] sm:$0xff]
        %v440 = vld [vmem:[#allocation2 + $0x98] sm:$0xff]
        %v441 = vld [vmem:[#allocation2 + $0xa0] sm:$0xff]
        %v442 = vld [vmem:[#allocation2 + $0xa8] sm:$0xff]
        %v443 = vld [vmem:[#allocation2 + $0xb0] sm:$0xff]
        %v444 = vld [vmem:[#allocation2 + $0xb8] sm:$0xff]
        %v445 = vld [vmem:[#allocation2 + $0xc0] sm:$0xff]
        %v446 = vld [vmem:[#allocation2 + $0xc8] sm:$0xff]
        %v447 = vld [vmem:[#allocation2 + $0xd0] sm:$0xff]
        %v448 = vld [vmem:[#allocation2 + $0xd8] sm:$0xff]
        %v449 = vld [vmem:[#allocation2 + $0xe0] sm:$0xff]
        %v450 = vld [vmem:[#allocation2 + $0xe8] sm:$0xff]
        %v451 = vld [vmem:[#allocation2 + $0xf0] sm:$0xff]
        %v452 = vld [vmem:[#allocation2 + $0xf8] sm:$0xff]
        %v453 = vld [vmem:[%s314] sm:$0xff]
        %v454 = vld [vmem:[%s314 + $0x8] sm:$0xff]
        %v455 = vld [vmem:[%s314 + $0x10] sm:$0xff]
        %v456 = vld [vmem:[%s314 + $0x18] sm:$0xff]
        %v457 = vld [vmem:[%s314 + $0x20] sm:$0xff]
        %v458 = vld [vmem:[%s314 + $0x28] sm:$0xff]
        %v459 = vld [vmem:[%s314 + $0x30] sm:$0xff]
        %v460 = vld [vmem:[%s314 + $0x38] sm:$0xff]
        %v461 = vld [vmem:[%s314 + $0x40] sm:$0xff]
        %v462 = vld [vmem:[%s314 + $0x48] sm:$0xff]
        %v463 = vld [vmem:[%s314 + $0x50] sm:$0xff]
        %v464 = vld [vmem:[%s314 + $0x58] sm:$0xff]
        %v465 = vld [vmem:[%s314 + $0x60] sm:$0xff]
        %v466 = vld [vmem:[%s314 + $0x68] sm:$0xff]
        %v467 = vld [vmem:[%s314 + $0x70] sm:$0xff]
        %v468 = vld [vmem:[%s314 + $0x78] sm:$0xff]
        %v469 = vld [vmem:[%s314 + $0x80] sm:$0xff]
        %v470 = vld [vmem:[%s314 + $0x88] sm:$0xff]
        %v471 = vld [vmem:[%s314 + $0x90] sm:$0xff]
        %v472 = vld [vmem:[%s314 + $0x98] sm:$0xff]
        %v473 = vld [vmem:[%s314 + $0xa0] sm:$0xff]
        %v474 = vld [vmem:[%s314 + $0xa8] sm:$0xff]
        %v475 = vld [vmem:[%s314 + $0xb0] sm:$0xff]
        %v476 = vld [vmem:[%s314 + $0xb8] sm:$0xff]
        %v477 = vld [vmem:[%s314 + $0xc0] sm:$0xff]
        %v478 = vld [vmem:[%s314 + $0xc8] sm:$0xff]
        %v479 = vld [vmem:[%s314 + $0xd0] sm:$0xff]
        %v480 = vld [vmem:[%s314 + $0xd8] sm:$0xff]
        %v481 = vld [vmem:[%s314 + $0xe0] sm:$0xff]
        %v482 = vld [vmem:[%s314 + $0xe8] sm:$0xff]
        %v483 = vld [vmem:[%s314 + $0xf0] sm:$0xff]
        %v484 = vld [vmem:[%s314 + $0xf8] sm:$0xff]
        %v485 = vld [vmem:[%s314 + $0x100] sm:$0xff]
        %v486 = vld [vmem:[%s314 + $0x108] sm:$0xff]
        %v487 = vld [vmem:[%s314 + $0x110] sm:$0xff]
        %v488 = vld [vmem:[%s314 + $0x118] sm:$0xff]
        %v489 = vld [vmem:[%s314 + $0x120] sm:$0xff]
        %v490 = vld [vmem:[%s314 + $0x128] sm:$0xff]
        %v491 = vld [vmem:[%s314 + $0x130] sm:$0xff]
        %v492 = vld [vmem:[%s314 + $0x138] sm:$0xff]
        %v493 = vld [vmem:[%s314 + $0x140] sm:$0xff]
        %v494 = vld [vmem:[%s314 + $0x148] sm:$0xff]
        %v495 = vld [vmem:[%s314 + $0x150] sm:$0xff]
        %v496 = vld [vmem:[%s314 + $0x158] sm:$0xff]
        %v497 = vld [vmem:[%s314 + $0x160] sm:$0xff]
        %v498 = vld [vmem:[%s314 + $0x168] sm:$0xff]
        %v499 = vld [vmem:[%s314 + $0x170] sm:$0xff]
        %v500 = vld [vmem:[%s314 + $0x178] sm:$0xff]
        %v501 = vld [vmem:[%s365] sm:$0xff]
        %v502 = vld [vmem:[%s365 + $0x8] sm:$0xff]
        %v503 = vld [vmem:[%s365 + $0x10] sm:$0xff]
        %v504 = vld [vmem:[%s365 + $0x18] sm:$0xff]
        %v505 = vld [vmem:[%s365 + $0x20] sm:$0xff]
        %v506 = vld [vmem:[%s365 + $0x28] sm:$0xff]
        %v507 = vld [vmem:[%s365 + $0x30] sm:$0xff]
        %v508 = vld [vmem:[%s365 + $0x38] sm:$0xff]
        %v509 = vld [vmem:[%s365 + $0x40] sm:$0xff]
        %v510 = vld [vmem:[%s365 + $0x48] sm:$0xff]
        %v511 = vld [vmem:[%s365 + $0x50] sm:$0xff]
        %v512 = vld [vmem:[%s365 + $0x58] sm:$0xff]
        %v513 = vld [vmem:[%s365 + $0x60] sm:$0xff]
        %v514 = vld [vmem:[%s365 + $0x68] sm:$0xff]
        %v515 = vld [vmem:[%s365 + $0x70] sm:$0xff]
        %v516 = vld [vmem:[%s365 + $0x78] sm:$0xff]
        %v517 = vld [vmem:[%s365 + $0x80] sm:$0xff]
        %v518 = vld [vmem:[%s365 + $0x88] sm:$0xff]
        %v519 = vld [vmem:[%s365 + $0x90] sm:$0xff]
        %v520 = vld [vmem:[%s365 + $0x98] sm:$0xff]
        %v521 = vld [vmem:[%s365 + $0xa0] sm:$0xff]
        %v522 = vld [vmem:[%s365 + $0xa8] sm:$0xff]
        %v523 = vld [vmem:[%s365 + $0xb0] sm:$0xff]
        %v524 = vld [vmem:[%s365 + $0xb8] sm:$0xff]
        %v525 = vld [vmem:[%s365 + $0xc0] sm:$0xff]
        %v526 = vld [vmem:[%s365 + $0xc8] sm:$0xff]
        %v527 = vld [vmem:[%s365 + $0xd0] sm:$0xff]
        %v528 = vld [vmem:[%s365 + $0xd8] sm:$0xff]
        %v529 = vld [vmem:[%s365 + $0xe0] sm:$0xff]
        %v530 = vld [vmem:[%s365 + $0xe8] sm:$0xff]
        %v531 = vld [vmem:[%s365 + $0xf0] sm:$0xff]
        %v532 = vld [vmem:[%s365 + $0xf8] sm:$0xff]
        %v533 = vld [vmem:[%s365 + $0x100] sm:$0xff]
        %v534 = vld [vmem:[%s365 + $0x108] sm:$0xff]
        %v535 = vld [vmem:[%s365 + $0x110] sm:$0xff]
        %v536 = vld [vmem:[%s365 + $0x118] sm:$0xff]
        %v537 = vld [vmem:[%s365 + $0x120] sm:$0xff]
        %v538 = vld [vmem:[%s365 + $0x128] sm:$0xff]
        %v539 = vld [vmem:[%s365 + $0x130] sm:$0xff]
        %v540 = vld [vmem:[%s365 + $0x138] sm:$0xff]
        %v541 = vld [vmem:[%s365 + $0x140] sm:$0xff]
        %v542 = vld [vmem:[%s365 + $0x148] sm:$0xff]
        %v543 = vld [vmem:[%s365 + $0x150] sm:$0xff]
        %v544 = vld [vmem:[%s365 + $0x158] sm:$0xff]
        %v545 = vld [vmem:[%s365 + $0x160] sm:$0xff]
        %v546 = vld [vmem:[%s365 + $0x168] sm:$0xff]
        %v547 = vld [vmem:[%s365 + $0x170] sm:$0xff]
        %v548 = vld [vmem:[%s365 + $0x178] sm:$0xff]
        %v549 = vld [vmem:[%s365 + $0x180] sm:$0xff]
        %v550 = vld [vmem:[%s365 + $0x188] sm:$0xff]
        %v551 = vld [vmem:[%s365 + $0x190] sm:$0xff]
        %v552 = vld [vmem:[%s365 + $0x198] sm:$0xff]
        %v553 = vld [vmem:[%s365 + $0x1a0] sm:$0xff]
        %v554 = vld [vmem:[%s365 + $0x1a8] sm:$0xff]
        %v555 = vld [vmem:[%s365 + $0x1b0] sm:$0xff]
        %v556 = vld [vmem:[%s365 + $0x1b8] sm:$0xff]
        %v557 = vld [vmem:[%s365 + $0x1c0] sm:$0xff]
        %v558 = vld [vmem:[%s365 + $0x1c8] sm:$0xff]
        %v559 = vld [vmem:[%s365 + $0x1d0] sm:$0xff]
        %v560 = vld [vmem:[%s365 + $0x1d8] sm:$0xff]
        %v561 = vld [vmem:[%s365 + $0x1e0] sm:$0xff]
        %v562 = vld [vmem:[%s365 + $0x1e8] sm:$0xff]
        %v563 = vld [vmem:[%s365 + $0x1f0] sm:$0xff]
        %v564 = vld [vmem:[%s365 + $0x1f8] sm:$0xff]
        %v565 = vld [vmem:[%s365 + $0x200] sm:$0xff]
        %v566 = vld [vmem:[%s365 + $0x208] sm:$0xff]
        %v567 = vld [vmem:[%s365 + $0x210] sm:$0xff]
        %v568 = vld [vmem:[%s365 + $0x218] sm:$0xff]
        %v569 = vld [vmem:[%s365 + $0x220] sm:$0xff]
        %v570 = vld [vmem:[%s365 + $0x228] sm:$0xff]
        %v571 = vld [vmem:[%s365 + $0x230] sm:$0xff]
        %v572 = vld [vmem:[%s365 + $0x238] sm:$0xff]
        %v573 = vld [vmem:[%s365 + $0x240] sm:$0xff]
        %v574 = vld [vmem:[%s365 + $0x248] sm:$0xff]
        %v575 = vld [vmem:[%s365 + $0x250] sm:$0xff]
        %v576 = vld [vmem:[%s365 + $0x258] sm:$0xff]
        %v577 = vld [vmem:[%s365 + $0x260] sm:$0xff]
        %v578 = vld [vmem:[%s365 + $0x268] sm:$0xff]
        %v579 = vld [vmem:[%s365 + $0x270] sm:$0xff]
        %v580 = vld [vmem:[%s365 + $0x278] sm:$0xff]
        %v581 = vld [vmem:[%s365 + $0x280] sm:$0xff]
        %v582 = vld [vmem:[%s365 + $0x288] sm:$0xff]
        %v583 = vld [vmem:[%s365 + $0x290] sm:$0xff]
        %v584 = vld [vmem:[%s365 + $0x298] sm:$0xff]
        %v585 = vld [vmem:[%s365 + $0x2a0] sm:$0xff]
        %v586 = vld [vmem:[%s365 + $0x2a8] sm:$0xff]
        %v587 = vld [vmem:[%s365 + $0x2b0] sm:$0xff]
        %v588 = vld [vmem:[%s365 + $0x2b8] sm:$0xff]
        %v589 = vld [vmem:[%s365 + $0x2c0] sm:$0xff]
        %v590 = vld [vmem:[%s365 + $0x2c8] sm:$0xff]
        %v591 = vld [vmem:[%s365 + $0x2d0] sm:$0xff]
        %v592 = vld [vmem:[%s365 + $0x2d8] sm:$0xff]
        %v593 = vld [vmem:[%s365 + $0x2e0] sm:$0xff]
        %v594 = vld [vmem:[%s365 + $0x2e8] sm:$0xff]
        %v595 = vld [vmem:[%s365 + $0x2f0] sm:$0xff]
        %v596 = vld [vmem:[%s365 + $0x2f8] sm:$0xff]
        %597 = vmatprep.subr.mxu0 %v502
        %598 = vmatpush1.msra.mxu0 %v501
        %599 = vmatprep.subr.mxu0 %v504
        %600 = vmatpush1.msra.mxu0 %v503
        %601 = vmatprep.subr.mxu0 %v506
        %602 = vmatpush1.msra.mxu0 %v505
        %603 = vmatprep.subr.mxu0 %v508
        %604 = vmatpush1.msra.mxu0 %v507
        %605 = vmatprep.subr.mxu0 %v510
        %606 = vmatpush1.msra.mxu0 %v509
        %607 = vmatprep.subr.mxu0 %v512
        %608 = vmatpush1.msra.mxu0 %v511
        %609 = vmatprep.subr.mxu0 %v514
        %610 = vmatpush1.msra.mxu0 %v513
        %611 = vmatprep.subr.mxu0 %v516
        %612 = vmatpush1.msra.mxu0 %v515
        %613 = vmatprep.subr.mxu0 %v518
        %614 = vmatpush1.msra.mxu0 %v517
        %615 = vmatprep.subr.mxu0 %v520
        %616 = vmatpush1.msra.mxu0 %v519
        %617 = vmatprep.subr.mxu0 %v522
        %618 = vmatpush1.msra.mxu0 %v521
        %619 = vmatprep.subr.mxu0 %v524
        %620 = vmatpush1.msra.mxu0 %v523
        %621 = vmatprep.subr.mxu0 %v526
        %622 = vmatpush1.msra.mxu0 %v525
        %623 = vmatprep.subr.mxu0 %v528
        %624 = vmatpush1.msra.mxu0 %v527
        %625 = vmatprep.subr.mxu0 %v530
        %626 = vmatpush1.msra.mxu0 %v529
        %627 = vmatprep.subr.mxu0 %v532
        %628 = vmatpush1.msra.mxu0 %v531
        %629 = vmatprep.subr.mxu0 %v534
        %630 = vmatpush1.msra.mxu0 %v533
        %631 = vmatprep.subr.mxu0 %v536
        %632 = vmatpush1.msra.mxu0 %v535
        %633 = vmatprep.subr.mxu0 %v538
        %634 = vmatpush1.msra.mxu0 %v537
        %635 = vmatprep.subr.mxu0 %v540
        %636 = vmatpush1.msra.mxu0 %v539
        %637 = vmatprep.subr.mxu0 %v542
        %638 = vmatpush1.msra.mxu0 %v541
        %639 = vmatprep.subr.mxu0 %v544
        %640 = vmatpush1.msra.mxu0 %v543
        %641 = vmatprep.subr.mxu0 %v546
        %642 = vmatpush1.msra.mxu0 %v545
        %643 = vmatprep.subr.mxu0 %v548
        %644 = vmatpush1.msra.mxu0 %v547
        %645 = vmatprep.subr.mxu0 %v550
        %646 = vmatpush1.msra.mxu0 %v549
        %647 = vmatprep.subr.mxu0 %v552
        %648 = vmatpush1.msra.mxu0 %v551
        %649 = vmatprep.subr.mxu0 %v554
        %650 = vmatpush1.msra.mxu0 %v553
        %651 = vmatprep.subr.mxu0 %v556
        %652 = vmatpush1.msra.mxu0 %v555
        %653 = vmatprep.subr.mxu0 %v558
        %654 = vmatpush1.msra.mxu0 %v557
        %655 = vmatprep.subr.mxu0 %v560
        %656 = vmatpush1.msra.mxu0 %v559
        %657 = vmatprep.subr.mxu0 %v562
        %658 = vmatpush1.msra.mxu0 %v561
        %659 = vmatprep.subr.mxu0 %v564
        %660 = vmatpush1.msra.mxu0 %v563
        %661 = vmatprep.mubr.f32.mxu0 %v454
        %662 = vmatmul.mubr.f32.gmra.mrb[0].mxu0 %v453
        %v663 = vpop.f32.mrb[0].mxu0
        %v664 = vadd.f32 0.0, %v663
        %v665 = vpop.f32.mrb[0].mxu0
        %v666 = vadd.f32 0.0, %v665
        %667 = vmatprep.mubr.f32.mxu0 %v457
        %668 = vmatmul.mubr.f32.gmra.mrb[0].mxu0 %v456
        %v669 = vpop.f32.mrb[0].mxu0
        %v670 = vadd.f32 0.0, %v669
        %v671 = vpop.f32.mrb[0].mxu0
        %v672 = vadd.f32 0.0, %v671
        %673 = vmatprep.mubr.f32.mxu0 %v460
        %674 = vmatmul.mubr.f32.gmra.mrb[0].mxu0 %v459
        %v675 = vpop.f32.mrb[0].mxu0
        %v676 = vadd.f32 0.0, %v675
        %v677 = vpop.f32.mrb[0].mxu0
        %v678 = vadd.f32 0.0, %v677
        %679 = vmatprep.mubr.f32.mxu0 %v463
        %680 = vmatmul.mubr.f32.gmra.mrb[0].mxu0 %v462
        %v681 = vpop.f32.mrb[0].mxu0
        %v682 = vadd.f32 0.0, %v681
        %v683 = vpop.f32.mrb[0].mxu0
        %v684 = vadd.f32 0.0, %v683
        %685 = vmatprep.mubr.f32.mxu0 %v466
        %686 = vmatmul.mubr.f32.gmra.mrb[0].mxu0 %v465
        %v687 = vpop.f32.mrb[0].mxu0
        %v688 = vadd.f32 0.0, %v687
        %v689 = vpop.f32.mrb[0].mxu0
        %v690 = vadd.f32 0.0, %v689
        %691 = vmatprep.mubr.f32.mxu0 %v469
        %692 = vmatmul.mubr.f32.gmra.mrb[0].mxu0 %v468
        %v693 = vpop.f32.mrb[0].mxu0
        %v694 = vadd.f32 0.0, %v693
        %v695 = vpop.f32.mrb[0].mxu0
        %v696 = vadd.f32 0.0, %v695
        %697 = vmatprep.mubr.f32.mxu0 %v472
        %698 = vmatmul.mubr.f32.gmra.mrb[0].mxu0 %v471
        %v699 = vpop.f32.mrb[0].mxu0
        %v700 = vadd.f32 0.0, %v699
        %v701 = vpop.f32.mrb[0].mxu0
        %v702 = vadd.f32 0.0, %v701
        %703 = vmatprep.mubr.f32.mxu0 %v475
        %704 = vmatmul.mubr.f32.gmra.mrb[0].mxu0 %v474
        %v705 = vpop.f32.mrb[0].mxu0
        %v706 = vadd.f32 0.0, %v705
        %v707 = vpop.f32.mrb[0].mxu0
        %v708 = vadd.f32 0.0, %v707
        %709 = vmatprep.mubr.f32.mxu0 %v478
        %710 = vmatmul.mubr.f32.gmra.mrb[0].mxu0 %v477
        %v711 = vpop.f32.mrb[0].mxu0
        %v712 = vadd.f32 0.0, %v711
        %v713 = vpop.f32.mrb[0].mxu0
        %v714 = vadd.f32 0.0, %v713
        %715 = vmatprep.mubr.f32.mxu0 %v481
        %716 = vmatmul.mubr.f32.gmra.mrb[0].mxu0 %v480
        %v717 = vpop.f32.mrb[0].mxu0
        %v718 = vadd.f32 0.0, %v717
        %v719 = vpop.f32.mrb[0].mxu0
        %v720 = vadd.f32 0.0, %v719
        %721 = vmatprep.mubr.f32.mxu0 %v484
        %722 = vmatmul.mubr.f32.gmra.mrb[0].mxu0 %v483
        %v723 = vpop.f32.mrb[0].mxu0
        %v724 = vadd.f32 0.0, %v723
        %v725 = vpop.f32.mrb[0].mxu0
        %v726 = vadd.f32 0.0, %v725
        %727 = vmatprep.mubr.f32.mxu0 %v487
        %728 = vmatmul.mubr.f32.gmra.mrb[0].mxu0 %v486
        %v729 = vpop.f32.mrb[0].mxu0
        %v730 = vadd.f32 0.0, %v729
        %v731 = vpop.f32.mrb[0].mxu0
        %v732 = vadd.f32 0.0, %v731
        %733 = vmatprep.mubr.f32.mxu0 %v490
        %734 = vmatmul.mubr.f32.gmra.mrb[0].mxu0 %v489
        %v735 = vpop.f32.mrb[0].mxu0
        %v736 = vadd.f32 0.0, %v735
        %v737 = vpop.f32.mrb[0].mxu0
        %v738 = vadd.f32 0.0, %v737
        %739 = vmatprep.mubr.f32.mxu0 %v493
        %740 = vmatmul.mubr.f32.gmra.mrb[0].mxu0 %v492
        %v741 = vpop.f32.mrb[0].mxu0
        %v742 = vadd.f32 0.0, %v741
        %v743 = vpop.f32.mrb[0].mxu0
        %v744 = vadd.f32 0.0, %v743
        %745 = vmatprep.mubr.f32.mxu0 %v496
        %746 = vmatmul.mubr.f32.gmra.mrb[0].mxu0 %v495
        %v747 = vpop.f32.mrb[0].mxu0
        %v748 = vadd.f32 0.0, %v747
        %v749 = vpop.f32.mrb[0].mxu0
        %v750 = vadd.f32 0.0, %v749
        %751 = vmatprep.mubr.f32.mxu0 %v499
        %752 = vmatmul.mubr.f32.gmra.mrb[0].mxu0 %v498
        %v753 = vpop.f32.mrb[0].mxu0
        %v754 = vadd.f32 0.0, %v753
        %v755 = vpop.f32.mrb[0].mxu0
        %v756 = vadd.f32 0.0, %v755
        %757 = vdwg.mxu0
        %758 = vmatprep.subr.mxu0 %v566
        %759 = vmatpush1.msra.mxu0 %v565
        %760 = vmatprep.subr.mxu0 %v568
        %761 = vmatpush1.msra.mxu0 %v567
        %762 = vmatprep.subr.mxu0 %v570
        %763 = vmatpush1.msra.mxu0 %v569
        %764 = vmatprep.subr.mxu0 %v572
        %765 = vmatpush1.msra.mxu0 %v571
        %766 = vmatprep.subr.mxu0 %v574
        %767 = vmatpush1.msra.mxu0 %v573
        %768 = vmatprep.subr.mxu0 %v576
        %769 = vmatpush1.msra.mxu0 %v575
        %770 = vmatprep.subr.mxu0 %v578
        %771 = vmatpush1.msra.mxu0 %v577
        %772 = vmatprep.subr.mxu0 %v580
        %773 = vmatpush1.msra.mxu0 %v579
        %774 = vmatprep.subr.mxu0 %v582
        %775 = vmatpush1.msra.mxu0 %v581
        %776 = vmatprep.subr.mxu0 %v584
        %777 = vmatpush1.msra.mxu0 %v583
        %778 = vmatprep.subr.mxu0 %v586
        %779 = vmatpush1.msra.mxu0 %v585
        %780 = vmatprep.subr.mxu0 %v588
        %781 = vmatpush1.msra.mxu0 %v587
        %782 = vmatprep.subr.mxu0 %v590
        %783 = vmatpush1.msra.mxu0 %v589
        %784 = vmatprep.subr.mxu0 %v592
        %785 = vmatpush1.msra.mxu0 %v591
        %786 = vmatprep.subr.mxu0 %v594
        %787 = vmatpush1.msra.mxu0 %v593
        %788 = vmatprep.subr.mxu0 %v596
        %789 = vmatpush1.msra.mxu0 %v595
        %790 = vmatprep.subr.mxu0 0.0
        %791 = vmatpush1.msra.mxu0 0.0
        %792 = vmatprep.subr.mxu0 0.0
        %793 = vmatpush1.msra.mxu0 0.0
        %794 = vmatprep.subr.mxu0 0.0
        %795 = vmatpush1.msra.mxu0 0.0
        %796 = vmatprep.subr.mxu0 0.0
        %797 = vmatpush1.msra.mxu0 0.0
        %798 = vmatprep.subr.mxu0 0.0
        %799 = vmatpush1.msra.mxu0 0.0
        %800 = vmatprep.subr.mxu0 0.0
        %801 = vmatpush1.msra.mxu0 0.0
        %802 = vmatprep.subr.mxu0 0.0
        %803 = vmatpush1.msra.mxu0 0.0
        %804 = vmatprep.subr.mxu0 0.0
        %805 = vmatpush1.msra.mxu0 0.0
        %806 = vmatprep.subr.mxu0 0.0
        %807 = vmatpush1.msra.mxu0 0.0
        %808 = vmatprep.subr.mxu0 0.0
        %809 = vmatpush1.msra.mxu0 0.0
        %810 = vmatprep.subr.mxu0 0.0
        %811 = vmatpush1.msra.mxu0 0.0
        %812 = vmatprep.subr.mxu0 0.0
        %813 = vmatpush1.msra.mxu0 0.0
        %814 = vmatprep.subr.mxu0 0.0
        %815 = vmatpush1.msra.mxu0 0.0
        %816 = vmatprep.subr.mxu0 0.0
        %817 = vmatpush1.msra.mxu0 0.0
        %818 = vmatprep.subr.mxu0 0.0
        %819 = vmatpush1.msra.mxu0 0.0
        %820 = vmatprep.subr.mxu0 0.0
        %821 = vmatpush1.msra.mxu0 0.0
        %822 = vmatprep.mubr.f32.mxu0 0.0
        %823 = vmatmul.mubr.f32.gmra.mrb[0].mxu0 %v455
        %v824 = vpop.f32.mrb[0].mxu0
        %v825 = vadd.f32 %v664, %v824
        %v826 = vpop.f32.mrb[0].mxu0
        %v827 = vadd.f32 %v666, %v826
        %828 = vmatprep.mubr.f32.mxu0 0.0
        %829 = vmatmul.mubr.f32.gmra.mrb[0].mxu0 %v458
        %v830 = vpop.f32.mrb[0].mxu0
        %v831 = vadd.f32 %v670, %v830
        %v832 = vpop.f32.mrb[0].mxu0
        %v833 = vadd.f32 %v672, %v832
        %834 = vmatprep.mubr.f32.mxu0 0.0
        %835 = vmatmul.mubr.f32.gmra.mrb[0].mxu0 %v461
        %v836 = vpop.f32.mrb[0].mxu0
        %v837 = vadd.f32 %v676, %v836
        %v838 = vpop.f32.mrb[0].mxu0
        %v839 = vadd.f32 %v678, %v838
        %840 = vmatprep.mubr.f32.mxu0 0.0
        %841 = vmatmul.mubr.f32.gmra.mrb[0].mxu0 %v464
        %v842 = vpop.f32.mrb[0].mxu0
        %v843 = vadd.f32 %v682, %v842
        %v844 = vpop.f32.mrb[0].mxu0
        %v845 = vadd.f32 %v684, %v844
        %846 = vmatprep.mubr.f32.mxu0 0.0
        %847 = vmatmul.mubr.f32.gmra.mrb[0].mxu0 %v467
        %v848 = vpop.f32.mrb[0].mxu0
        %v849 = vadd.f32 %v688, %v848
        %v850 = vpop.f32.mrb[0].mxu0
        %v851 = vadd.f32 %v690, %v850
        %852 = vmatprep.mubr.f32.mxu0 0.0
        %853 = vmatmul.mubr.f32.gmra.mrb[0].mxu0 %v470
        %v854 = vpop.f32.mrb[0].mxu0
        %v855 = vadd.f32 %v694, %v854
        %v856 = vpop.f32.mrb[0].mxu0
        %v857 = vadd.f32 %v696, %v856
        %858 = vmatprep.mubr.f32.mxu0 0.0
        %859 = vmatmul.mubr.f32.gmra.mrb[0].mxu0 %v473
        %v860 = vpop.f32.mrb[0].mxu0
        %v861 = vadd.f32 %v700, %v860
        %v862 = vpop.f32.mrb[0].mxu0
        %v863 = vadd.f32 %v702, %v862
        %864 = vmatprep.mubr.f32.mxu0 0.0
        %865 = vmatmul.mubr.f32.gmra.mrb[0].mxu0 %v476
        %v866 = vpop.f32.mrb[0].mxu0
        %v867 = vadd.f32 %v706, %v866
        %v868 = vpop.f32.mrb[0].mxu0
        %v869 = vadd.f32 %v708, %v868
        %870 = vmatprep.mubr.f32.mxu0 0.0
        %871 = vmatmul.mubr.f32.gmra.mrb[0].mxu0 %v479
        %v872 = vpop.f32.mrb[0].mxu0
        %v873 = vadd.f32 %v712, %v872
        %v874 = vpop.f32.mrb[0].mxu0
        %v875 = vadd.f32 %v714, %v874
        %876 = vmatprep.mubr.f32.mxu0 0.0
        %877 = vmatmul.mubr.f32.gmra.mrb[0].mxu0 %v482
        %v878 = vpop.f32.mrb[0].mxu0
        %v879 = vadd.f32 %v718, %v878
        %v880 = vpop.f32.mrb[0].mxu0
        %v881 = vadd.f32 %v720, %v880
        %882 = vmatprep.mubr.f32.mxu0 0.0
        %883 = vmatmul.mubr.f32.gmra.mrb[0].mxu0 %v485
        %v884 = vpop.f32.mrb[0].mxu0
        %v885 = vadd.f32 %v724, %v884
        %v886 = vpop.f32.mrb[0].mxu0
        %v887 = vadd.f32 %v726, %v886
        %888 = vmatprep.mubr.f32.mxu0 0.0
        %889 = vmatmul.mubr.f32.gmra.mrb[0].mxu0 %v488
        %v890 = vpop.f32.mrb[0].mxu0
        %v891 = vadd.f32 %v730, %v890
        %v892 = vpop.f32.mrb[0].mxu0
        %v893 = vadd.f32 %v732, %v892
        %894 = vmatprep.mubr.f32.mxu0 0.0
        %895 = vmatmul.mubr.f32.gmra.mrb[0].mxu0 %v491
        %v896 = vpop.f32.mrb[0].mxu0
        %v897 = vadd.f32 %v736, %v896
        %v898 = vpop.f32.mrb[0].mxu0
        %v899 = vadd.f32 %v738, %v898
        %900 = vmatprep.mubr.f32.mxu0 0.0
        %901 = vmatmul.mubr.f32.gmra.mrb[0].mxu0 %v494
        %v902 = vpop.f32.mrb[0].mxu0
        %v903 = vadd.f32 %v742, %v902
        %v904 = vpop.f32.mrb[0].mxu0
        %v905 = vadd.f32 %v744, %v904
        %906 = vmatprep.mubr.f32.mxu0 0.0
        %907 = vmatmul.mubr.f32.gmra.mrb[0].mxu0 %v497
        %v908 = vpop.f32.mrb[0].mxu0
        %v909 = vadd.f32 %v748, %v908
        %v910 = vpop.f32.mrb[0].mxu0
        %v911 = vadd.f32 %v750, %v910
        %912 = vmatprep.mubr.f32.mxu0 0.0
        %913 = vmatmul.mubr.f32.gmra.mrb[0].mxu0 %v500
        %v914 = vpop.f32.mrb[0].mxu0
        %v915 = vadd.f32 %v754, %v914
        %v916 = vpop.f32.mrb[0].mxu0
        %v917 = vadd.f32 %v756, %v916
        %918 = vdwg.mxu0
        %v919 = vadd.f32 %v421, %v825
        %v920 = vadd.f32 %v422, %v827
        %v921 = vadd.f32 %v423, %v831
        %v922 = vadd.f32 %v424, %v833
        %v923 = vadd.f32 %v425, %v837
        %v924 = vadd.f32 %v426, %v839
        %v925 = vadd.f32 %v427, %v843
        %v926 = vadd.f32 %v428, %v845
        %v927 = vadd.f32 %v429, %v849
        %v928 = vadd.f32 %v430, %v851
        %v929 = vadd.f32 %v431, %v855
        %v930 = vadd.f32 %v432, %v857
        %v931 = vadd.f32 %v433, %v861
        %v932 = vadd.f32 %v434, %v863
        %v933 = vadd.f32 %v435, %v867
        %v934 = vadd.f32 %v436, %v869
        %v935 = vadd.f32 %v437, %v873
        %v936 = vadd.f32 %v438, %v875
        %v937 = vadd.f32 %v439, %v879
        %v938 = vadd.f32 %v440, %v881
        %v939 = vadd.f32 %v441, %v885
        %v940 = vadd.f32 %v442, %v887
        %v941 = vadd.f32 %v443, %v891
        %v942 = vadd.f32 %v444, %v893
        %v943 = vadd.f32 %v445, %v897
        %v944 = vadd.f32 %v446, %v899
        %v945 = vadd.f32 %v447, %v903
        %v946 = vadd.f32 %v448, %v905
        %v947 = vadd.f32 %v449, %v909
        %v948 = vadd.f32 %v450, %v911
        %v949 = vadd.f32 %v451, %v915
        %v950 = vadd.f32 %v452, %v917
        %951 = vst [vmem:[#allocation2] sm:$0xff] %v919
        %952 = vst [vmem:[#allocation2 + $0x8] sm:$0xff] %v920
        %953 = vst [vmem:[#allocation2 + $0x10] sm:$0xff] %v921
        %954 = vst [vmem:[#allocation2 + $0x18] sm:$0xff] %v922
        %955 = vst [vmem:[#allocation2 + $0x20] sm:$0xff] %v923
        %956 = vst [vmem:[#allocation2 + $0x28] sm:$0xff] %v924
        %957 = vst [vmem:[#allocation2 + $0x30] sm:$0xff] %v925
        %958 = vst [vmem:[#allocation2 + $0x38] sm:$0xff] %v926
        %959 = vst [vmem:[#allocation2 + $0x40] sm:$0xff] %v927
        %960 = vst [vmem:[#allocation2 + $0x48] sm:$0xff] %v928
        %961 = vst [vmem:[#allocation2 + $0x50] sm:$0xff] %v929
        %962 = vst [vmem:[#allocation2 + $0x58] sm:$0xff] %v930
        %963 = vst [vmem:[#allocation2 + $0x60] sm:$0xff] %v931
        %964 = vst [vmem:[#allocation2 + $0x68] sm:$0xff] %v932
        %965 = vst [vmem:[#allocation2 + $0x70] sm:$0xff] %v933
        %966 = vst [vmem:[#allocation2 + $0x78] sm:$0xff] %v934
        %967 = vst [vmem:[#allocation2 + $0x80] sm:$0xff] %v935
        %968 = vst [vmem:[#allocation2 + $0x88] sm:$0xff] %v936
        %969 = vst [vmem:[#allocation2 + $0x90] sm:$0xff] %v937
        %970 = vst [vmem:[#allocation2 + $0x98] sm:$0xff] %v938
        %971 = vst [vmem:[#allocation2 + $0xa0] sm:$0xff] %v939
        %972 = vst [vmem:[#allocation2 + $0xa8] sm:$0xff] %v940
        %973 = vst [vmem:[#allocation2 + $0xb0] sm:$0xff] %v941
        %974 = vst [vmem:[#allocation2 + $0xb8] sm:$0xff] %v942
        %975 = vst [vmem:[#allocation2 + $0xc0] sm:$0xff] %v943
        %976 = vst [vmem:[#allocation2 + $0xc8] sm:$0xff] %v944
        %977 = vst [vmem:[#allocation2 + $0xd0] sm:$0xff] %v945
        %978 = vst [vmem:[#allocation2 + $0xd8] sm:$0xff] %v946
        %979 = vst [vmem:[#allocation2 + $0xe0] sm:$0xff] %v947
        %980 = vst [vmem:[#allocation2 + $0xe8] sm:$0xff] %v948
        %981 = vst [vmem:[#allocation2 + $0xf0] sm:$0xff] %v949
        %982 = vst [vmem:[#allocation2 + $0xf8] sm:$0xff] %v950
        %p983 = scmp.eq.s32.totalorder %s21, 2
        // Predicated region
        $region60: #{context_encoding_forward.7} parent=50 // pred_check
          %p984 = pneg %p983
        $region61: #{context_encoding_forward.7} parent=50 // pred_check_branch
          %986 = sbr.rel (%p984) target = $region63
        $region62: #{context_encoding_forward.7} parent=50 // pred_region
          %v987 = vld [vmem:[#allocation2] sm:$0xff]
          %v988 = vld [vmem:[#allocation2 + $0x8] sm:$0xff]
          %v989 = vld [vmem:[#allocation2 + $0x10] sm:$0xff]
          %v990 = vld [vmem:[#allocation2 + $0x18] sm:$0xff]
          %v991 = vld [vmem:[#allocation2 + $0x20] sm:$0xff]
          %v992 = vld [vmem:[#allocation2 + $0x28] sm:$0xff]
          %v993 = vld [vmem:[#allocation2 + $0x30] sm:$0xff]
          %v994 = vld [vmem:[#allocation2 + $0x38] sm:$0xff]
          %v995 = vld [vmem:[#allocation2 + $0x40] sm:$0xff]
          %v996 = vld [vmem:[#allocation2 + $0x48] sm:$0xff]
          %v997 = vld [vmem:[#allocation2 + $0x50] sm:$0xff]
          %v998 = vld [vmem:[#allocation2 + $0x58] sm:$0xff]
          %v999 = vld [vmem:[#allocation2 + $0x60] sm:$0xff]
          %v1000 = vld [vmem:[#allocation2 + $0x68] sm:$0xff]
          %v1001 = vld [vmem:[#allocation2 + $0x70] sm:$0xff]
          %v1002 = vld [vmem:[#allocation2 + $0x78] sm:$0xff]
          %v1003 = vld [vmem:[#allocation2 + $0x80] sm:$0xff]
          %v1004 = vld [vmem:[#allocation2 + $0x88] sm:$0xff]
          %v1005 = vld [vmem:[#allocation2 + $0x90] sm:$0xff]
          %v1006 = vld [vmem:[#allocation2 + $0x98] sm:$0xff]
          %v1007 = vld [vmem:[#allocation2 + $0xa0] sm:$0xff]
          %v1008 = vld [vmem:[#allocation2 + $0xa8] sm:$0xff]
          %v1009 = vld [vmem:[#allocation2 + $0xb0] sm:$0xff]
          %v1010 = vld [vmem:[#allocation2 + $0xb8] sm:$0xff]
          %v1011 = vld [vmem:[#allocation2 + $0xc0] sm:$0xff]
          %v1012 = vld [vmem:[#allocation2 + $0xc8] sm:$0xff]
          %v1013 = vld [vmem:[#allocation2 + $0xd0] sm:$0xff]
          %v1014 = vld [vmem:[#allocation2 + $0xd8] sm:$0xff]
          %v1015 = vld [vmem:[#allocation2 + $0xe0] sm:$0xff]
          %v1016 = vld [vmem:[#allocation2 + $0xe8] sm:$0xff]
          %v1017 = vld [vmem:[#allocation2 + $0xf0] sm:$0xff]
          %v1018 = vld [vmem:[#allocation2 + $0xf8] sm:$0xff]
          %v1019 = vld [vmem:[%s371] sm:$0x3]
          %v1021 = vlaneseq
          %v1022 = vshrl.u32 %v1021, 7
          %v1023 = vsub.s32 0, %v1022
          %v1024 = vrot.slane %v1019, %v1023
          %v1025 = vlaneseq
          %v1026 = vshrl.u32 %v1025, 7
          %v1027 = vsub.s32 1, %v1026
          %v1028 = vrot.slane %v1019, %v1027
          %v1031 = vadd.f32 %v987, %v1024
          %v1032 = vadd.f32 %v988, %v1028
          %v1033 = vadd.f32 %v989, %v1024
          %v1034 = vadd.f32 %v990, %v1028
          %v1035 = vadd.f32 %v991, %v1024
          %v1036 = vadd.f32 %v992, %v1028
          %v1037 = vadd.f32 %v993, %v1024
          %v1038 = vadd.f32 %v994, %v1028
          %v1039 = vadd.f32 %v995, %v1024
          %v1040 = vadd.f32 %v996, %v1028
          %v1041 = vadd.f32 %v997, %v1024
          %v1042 = vadd.f32 %v998, %v1028
          %v1043 = vadd.f32 %v999, %v1024
          %v1044 = vadd.f32 %v1000, %v1028
          %v1045 = vadd.f32 %v1001, %v1024
          %v1046 = vadd.f32 %v1002, %v1028
          %v1047 = vadd.f32 %v1003, %v1024
          %v1048 = vadd.f32 %v1004, %v1028
          %v1049 = vadd.f32 %v1005, %v1024
          %v1050 = vadd.f32 %v1006, %v1028
          %v1051 = vadd.f32 %v1007, %v1024
          %v1052 = vadd.f32 %v1008, %v1028
          %v1053 = vadd.f32 %v1009, %v1024
          %v1054 = vadd.f32 %v1010, %v1028
          %v1055 = vadd.f32 %v1011, %v1024
          %v1056 = vadd.f32 %v1012, %v1028
          %v1057 = vadd.f32 %v1013, %v1024
          %v1058 = vadd.f32 %v1014, %v1028
          %v1059 = vadd.f32 %v1015, %v1024
          %v1060 = vadd.f32 %v1016, %v1028
          %v1061 = vadd.f32 %v1017, %v1024
          %v1062 = vadd.f32 %v1018, %v1028
          %v1063 = vmax.f32 %v1031, 0.0
          %v1064 = vmax.f32 %v1032, 0.0
          %v1065 = vmax.f32 %v1033, 0.0
          %v1066 = vmax.f32 %v1034, 0.0
          %v1067 = vmax.f32 %v1035, 0.0
          %v1068 = vmax.f32 %v1036, 0.0
          %v1069 = vmax.f32 %v1037, 0.0
          %v1070 = vmax.f32 %v1038, 0.0
          %v1071 = vmax.f32 %v1039, 0.0
          %v1072 = vmax.f32 %v1040, 0.0
          %v1073 = vmax.f32 %v1041, 0.0
          %v1074 = vmax.f32 %v1042, 0.0
          %v1075 = vmax.f32 %v1043, 0.0
          %v1076 = vmax.f32 %v1044, 0.0
          %v1077 = vmax.f32 %v1045, 0.0
          %v1078 = vmax.f32 %v1046, 0.0
          %v1079 = vmax.f32 %v1047, 0.0
          %v1080 = vmax.f32 %v1048, 0.0
          %v1081 = vmax.f32 %v1049, 0.0
          %v1082 = vmax.f32 %v1050, 0.0
          %v1083 = vmax.f32 %v1051, 0.0
          %v1084 = vmax.f32 %v1052, 0.0
          %v1085 = vmax.f32 %v1053, 0.0
          %v1086 = vmax.f32 %v1054, 0.0
          %v1087 = vmax.f32 %v1055, 0.0
          %v1088 = vmax.f32 %v1056, 0.0
          %v1089 = vmax.f32 %v1057, 0.0
          %v1090 = vmax.f32 %v1058, 0.0
          %v1091 = vmax.f32 %v1059, 0.0
          %v1092 = vmax.f32 %v1060, 0.0
          %v1093 = vmax.f32 %v1061, 0.0
          %v1094 = vmax.f32 %v1062, 0.0
          %1095 = vst [vmem:[%s382] sm:$0xff] %v1063
          %1096 = vst [vmem:[%s382 + $0x8] sm:$0xff] %v1064
          %1097 = vst [vmem:[%s382 + $0x10] sm:$0xff] %v1065
          %1098 = vst [vmem:[%s382 + $0x18] sm:$0xff] %v1066
          %1099 = vst [vmem:[%s382 + $0x20] sm:$0xff] %v1067
          %1100 = vst [vmem:[%s382 + $0x28] sm:$0xff] %v1068
          %1101 = vst [vmem:[%s382 + $0x30] sm:$0xff] %v1069
          %1102 = vst [vmem:[%s382 + $0x38] sm:$0xff] %v1070
          %1103 = vst [vmem:[%s382 + $0x40] sm:$0xff] %v1071
          %1104 = vst [vmem:[%s382 + $0x48] sm:$0xff] %v1072
          %1105 = vst [vmem:[%s382 + $0x50] sm:$0xff] %v1073
          %1106 = vst [vmem:[%s382 + $0x58] sm:$0xff] %v1074
          %1107 = vst [vmem:[%s382 + $0x60] sm:$0xff] %v1075
          %1108 = vst [vmem:[%s382 + $0x68] sm:$0xff] %v1076
          %1109 = vst [vmem:[%s382 + $0x70] sm:$0xff] %v1077
          %1110 = vst [vmem:[%s382 + $0x78] sm:$0xff] %v1078
          %1111 = vst [vmem:[%s382 + $0x80] sm:$0xff] %v1079
          %1112 = vst [vmem:[%s382 + $0x88] sm:$0xff] %v1080
          %1113 = vst [vmem:[%s382 + $0x90] sm:$0xff] %v1081
          %1114 = vst [vmem:[%s382 + $0x98] sm:$0xff] %v1082
          %1115 = vst [vmem:[%s382 + $0xa0] sm:$0xff] %v1083
          %1116 = vst [vmem:[%s382 + $0xa8] sm:$0xff] %v1084
          %1117 = vst [vmem:[%s382 + $0xb0] sm:$0xff] %v1085
          %1118 = vst [vmem:[%s382 + $0xb8] sm:$0xff] %v1086
          %1119 = vst [vmem:[%s382 + $0xc0] sm:$0xff] %v1087
          %1120 = vst [vmem:[%s382 + $0xc8] sm:$0xff] %v1088
          %1121 = vst [vmem:[%s382 + $0xd0] sm:$0xff] %v1089
          %1122 = vst [vmem:[%s382 + $0xd8] sm:$0xff] %v1090
          %1123 = vst [vmem:[%s382 + $0xe0] sm:$0xff] %v1091
          %1124 = vst [vmem:[%s382 + $0xe8] sm:$0xff] %v1092
          %1125 = vst [vmem:[%s382 + $0xf0] sm:$0xff] %v1093
          %1126 = vst [vmem:[%s382 + $0xf8] sm:$0xff] %v1094
        $region63: #{context_encoding_forward.7} parent=50 // pred_fallthru
          _
        %s1127 = smul.u32 16, %s19
        %s1128 = smul.u32 2, %s20
        %p1129 = scmp.lt.s32.totalorder %s1127, 15
        %s1130 = scalar_select %p1129, %s1127, 15
        %p1131 = scmp.lt.s32.totalorder %s1128, 1
        %s1132 = scalar_select %p1131, %s1128, 1
        %s1133 = smul.addr %s1130, 2
        %s1134 = sadd.s32 %s1132, %s1133
        %s1135 = smul.addr %s1134, 8
        %s1136 = scalar_lea.vmem %s3, %s1135
        // Predicated region
        $region64: #{context_encoding_forward.7} parent=50 // pred_check
          %p1137 = pneg %p135
        $region65: #{context_encoding_forward.7} parent=50 // pred_check_branch
          %1139 = sbr.rel (%p1137) target = $region67
        $region66: #{context_encoding_forward.7} parent=50 // pred_region
          %s1140 = smul.u32 16, %s19
          %s1141 = smul.u32 2, %s20
        $region67: #{context_encoding_forward.7} parent=50 // pred_fallthru
          _
        // Predicated region
        $region68: #{context_encoding_forward.7} parent=50 // pred_check
          %p1142 = pneg %p135
        $region69: #{context_encoding_forward.7} parent=50 // pred_check_branch
          %1144 = sbr.rel (%p1142) target = $region71
        $region70: #{context_encoding_forward.7} parent=50 // pred_region
          %s1145 = smul.u32 16, %s19
          %s1146 = smul.u32 2, %s20
          %p1147 = scmp.lt.s32.totalorder %s1145, 15
          %s1148 = scalar_select %p1147, %s1145, 15
          %p1149 = scmp.lt.s32.totalorder %s1146, 1
          %s1150 = scalar_select %p1149, %s1146, 1
          %s1151 = smul.addr %s1148, 2
          %s1152 = sadd.s32 %s1150, %s1151
          %s1153 = smul.addr %s1152, 8
          %s1154 = scalar_lea.vmem %s3, %s1153
        $region71: #{context_encoding_forward.7} parent=50 // pred_fallthru
          _
      $region51: #{context_encoding_forward.7} parent=5 // pred_fallthru
        _
      %p1155 = scmp.le.s32.totalorder 2, %s9
      // Predicated region
      $region72: #{context_encoding_forward.7} parent=5 // pred_check
        %p1156 = pneg %p1155
      $region73: #{context_encoding_forward.7} parent=5 // pred_check_branch
        %1158 = sbr.rel (%p1156) target = $region75
      $region74: #{context_encoding_forward.7} parent=5 // pred_region
        %s1159 = ssub.s32 %s9, 2
      $region75: #{context_encoding_forward.7} parent=5 // pred_fallthru
        _
    $region6: #{context_encoding_forward.7} parent=1 // loop_footer
      %s13 = sadd.s32 1, %s9
    $region7: #{context_encoding_forward.7} parent=1 // loop_footer_branch
      %8 = sbr.rel target = $region3
    $region8: #{context_encoding_forward.7} parent=1 // loop_exit
      _

// kernel: context_encoding_forward.8
$region0: #{context_encoding_forward.8}
  #allocation0 [shape = 'u32[]', space=smem, size = 0x4, offset = 0x4, fixed_abs, tag = 'smem constant byte address 0x4 - core index']
  #allocation1 [shape = 'u32[144,128]{1,0:T(1,128)}', space=vmem, size = 0x12000, scoped, tag = 'internal scratch']
  #allocation2 [shape = 'f32[2,256]{1,0:T(2,128)}', space=vmem, size = 0x800, scoped, tag = 'scratch operand']
  %s0 = inlined_call_operand.vmem [shape: f32[2,4096], index: 0, kind: input, shape index: {}]
  %s1 = inlined_call_operand.vmem [shape: f32[4096,512], index: 1, kind: input, shape index: {}]
  %s2 = inlined_call_operand.vmem [shape: f32[1,512], index: 2, kind: input, shape index: {}]
  %s3 = inlined_call_operand.vmem [shape: f32[2,512], index: 3, kind: output, shape index: {}]
  %s4 = sld [smem:[#allocation0]]
  $region76: #{context_encoding_forward.8} parent=0
    _
  %s6 = ssub.s32 1, %s4
  %s7 = scalar_select 0, %s6, %s4
  $region1: #{context_encoding_forward.8} parent=0
    #allocation3 [shape = 'u8[1048576]{0}', space=vmem, size = 0x100000, scoped, tag = 'input window, operand 1']
    loop: start=0, step=1, limit=18
    $region2: #{context_encoding_forward.8} parent=1 // loop_pre_header
      _
    $region3: #{context_encoding_forward.8} parent=1 // loop_header
      %s9 = sphi 0, %s13
      %p10 = scmp.ge.s32.totalorder %s9, 18
      %s16 = sphi 0, %s35
      %s17 = sphi 0, %s31
      %s18 = sphi 0, %s27
      %s19 = sphi 0, %s16
      %s20 = sphi 0, %s17
      %s21 = sphi 0, %s18
      %s22 = sphi 0, %s19
      %s23 = sphi 0, %s20
      %s24 = sphi 0, %s21
      %s40 = sphi 0, %s42
      %s43 = sphi 0, %s40
      %s44 = sphi 0, %s43
      %s60 = sphi 0, %s44
      %s68 = sphi 0, %s70
      %s71 = sphi 0, %s68
      %s72 = sphi 0, %s71
      %s88 = sphi 0, %s72
      %s94 = sphi 0, %s96
      %s97 = sphi 0, %s94
      %s98 = sphi 0, %s97
      %s114 = sphi 0, %s98
      %s122 = sphi 0, %s124
      %s125 = sphi 0, %s122
      %s126 = sphi 0, %s125
      %s142 = sphi 0, %s126
    $region4: #{context_encoding_forward.8} parent=1 // loop_header_branch
      %12 = sbr.rel (%p10) target = $region8
    $region5: #{context_encoding_forward.8} parent=1 // loop_body
      %s14 = ssub.s32 %s9, 1
      %s15 = ssub.s32 %s9, 2
      %s25 = sadd.s32 1, %s18
      %p26 = scmp.ge.s32.totalorder %s25, 8
      %s27 = scalar_select %p26, 0, %s25
      %s28 = sadd.s32 1, %s17
      %s29 = scalar_select %p26, %s28, %s17
      %p30 = scmp.ge.s32.totalorder %s29, 2
      %s31 = scalar_select %p30, 0, %s29
      %s32 = sadd.s32 1, %s16
      %s33 = scalar_select %p30, %s32, %s16
      %p34 = scmp.ge.s32.totalorder %s33, 1
      %s35 = scalar_select %p34, 0, %s33
      %s36 = ssub.s32 %s16, %s35
      %s37 = ssub.s32 %s18, %s27
      %s38 = sor.u32 %s36, %s37
      %p39 = scmp.eq.s32.totalorder %s38, 0
      %s41 = sadd.s32 %s40, 1
      %s42 = scalar_select %p39, %s40, %s41
      %p45 = pneg %p39
      %p46 = scmp.eq.s32.totalorder %s9, 15
      %p47 = por %p45, %p46
      %p48 = scmp.ne.s32.totalorder %s40, %s43
      %p49 = scmp.eq.s32.totalorder %s9, 0
      %p50 = por %p48, %p49
      %p51 = scmp.ne.s32.totalorder %s40, %s43
      %p52 = scmp.eq.s32.totalorder %s14, 15
      %p53 = por %p51, %p52
      %p54 = scmp.ne.s32.totalorder %s43, %s44
      %p55 = scmp.eq.s32.totalorder %s14, 0
      %p56 = por %p54, %p55
      %p57 = scmp.ne.s32.totalorder %s43, %s44
      %p58 = scmp.eq.s32.totalorder %s15, 15
      %p59 = por %p57, %p58
      %p61 = scmp.ne.s32.totalorder %s44, %s60
      %p62 = scmp.eq.s32.totalorder %s15, 0
      %p63 = por %p61, %p62
      %s64 = ssub.s32 %s18, %s27
      %s65 = ssub.s32 %s17, %s31
      %s66 = sor.u32 %s64, %s65
      %p67 = scmp.eq.s32.totalorder %s66, 0
      %s69 = sadd.s32 %s68, 1
      %s70 = scalar_select %p67, %s68, %s69
      %p73 = pneg %p67
      %p74 = scmp.eq.s32.totalorder %s9, 15
      %p75 = por %p73, %p74
      %p76 = scmp.ne.s32.totalorder %s68, %s71
      %p77 = scmp.eq.s32.totalorder %s9, 0
      %p78 = por %p76, %p77
      %p79 = scmp.ne.s32.totalorder %s68, %s71
      %p80 = scmp.eq.s32.totalorder %s14, 15
      %p81 = por %p79, %p80
      %p82 = scmp.ne.s32.totalorder %s71, %s72
      %p83 = scmp.eq.s32.totalorder %s14, 0
      %p84 = por %p82, %p83
      %p85 = scmp.ne.s32.totalorder %s71, %s72
      %p86 = scmp.eq.s32.totalorder %s15, 15
      %p87 = por %p85, %p86
      %p89 = scmp.ne.s32.totalorder %s72, %s88
      %p90 = scmp.eq.s32.totalorder %s15, 0
      %p91 = por %p89, %p90
      %s92 = ssub.s32 %s17, %s31
      %p93 = scmp.eq.s32.totalorder %s92, 0
      %s95 = sadd.s32 %s94, 1
      %s96 = scalar_select %p93, %s94, %s95
      %p99 = pneg %p93
      %p100 = scmp.eq.s32.totalorder %s9, 15
      %p101 = por %p99, %p100
      %p102 = scmp.ne.s32.totalorder %s94, %s97
      %p103 = scmp.eq.s32.totalorder %s9, 0
      %p104 = por %p102, %p103
      %p105 = scmp.ne.s32.totalorder %s94, %s97
      %p106 = scmp.eq.s32.totalorder %s14, 15
      %p107 = por %p105, %p106
      %p108 = scmp.ne.s32.totalorder %s97, %s98
      %p109 = scmp.eq.s32.totalorder %s14, 0
      %p110 = por %p108, %p109
      %p111 = scmp.ne.s32.totalorder %s97, %s98
      %p112 = scmp.eq.s32.totalorder %s15, 15
      %p113 = por %p111, %p112
      %p115 = scmp.ne.s32.totalorder %s98, %s114
      %p116 = scmp.eq.s32.totalorder %s15, 0
      %p117 = por %p115, %p116
      %s118 = ssub.s32 %s16, %s35
      %s119 = ssub.s32 %s17, %s31
      %s120 = sor.u32 %s118, %s119
      %p121 = scmp.eq.s32.totalorder %s120, 0
      %s123 = sadd.s32 %s122, 1
      %s124 = scalar_select %p121, %s122, %s123
      %p127 = pneg %p121
      %p128 = scmp.eq.s32.totalorder %s9, 15
      %p129 = por %p127, %p128
      %p130 = scmp.ne.s32.totalorder %s122, %s125
      %p131 = scmp.eq.s32.totalorder %s9, 0
      %p132 = por %p130, %p131
      %p133 = scmp.ne.s32.totalorder %s122, %s125
      %p134 = scmp.eq.s32.totalorder %s14, 15
      %p135 = por %p133, %p134
      %p136 = scmp.ne.s32.totalorder %s125, %s126
      %p137 = scmp.eq.s32.totalorder %s14, 0
      %p138 = por %p136, %p137
      %p139 = scmp.ne.s32.totalorder %s125, %s126
      %p140 = scmp.eq.s32.totalorder %s15, 15
      %p141 = por %p139, %p140
      %p143 = scmp.ne.s32.totalorder %s126, %s142
      %p144 = scmp.eq.s32.totalorder %s15, 0
      %p145 = por %p143, %p144
      %p146 = scmp.le.s32.totalorder 1, %s9
      %p147 = scmp.lt.s32.totalorder %s9, 17
      %p148 = pnand %p146, %p147
      %p149 = pneg %p148
      // Predicated region
      $region9: #{context_encoding_forward.8} parent=5 // pred_check
        _
      $region10: #{context_encoding_forward.8} parent=5 // pred_check_branch
        %151 = sbr.rel (%p148) target = $region12
      $region11: #{context_encoding_forward.8} parent=5 // pred_region
        %s152 = ssub.s32 %s9, 1
      $region12: #{context_encoding_forward.8} parent=5 // pred_fallthru
        _
      %p153 = scmp.lt.s32.totalorder %s9, 16
      // Predicated region
      $region13: #{context_encoding_forward.8} parent=5 // pred_check
        %p154 = pneg %p153
      $region14: #{context_encoding_forward.8} parent=5 // pred_check_branch
        %156 = sbr.rel (%p154) target = $region16
      $region15: #{context_encoding_forward.8} parent=5 // pred_region
        // Predicated region
        $region17: #{context_encoding_forward.8} parent=15 // pred_check
          %p157 = pneg %p50
        $region18: #{context_encoding_forward.8} parent=15 // pred_check_branch
          %159 = sbr.rel (%p157) target = $region20
        $region19: #{context_encoding_forward.8} parent=15 // pred_region
          %s160 = smul.u32 4, %s18
          %p161 = scmp.lt.s32.totalorder %s16, 0
          %s162 = scalar_select %p161, %s16, 0
          %p163 = scmp.lt.s32.totalorder %s160, 31
          %s164 = scalar_select %p163, %s160, 31
          %s165 = smul.addr %s162, 32
          %s166 = sadd.s32 %s164, %s165
          %s167 = smul.addr %s166, 2
          %s168 = scalar_lea.vmem %s0, %s167
          %s169 = smul.u32 4, %s18
        $region20: #{context_encoding_forward.8} parent=15 // pred_fallthru
          _
        // Predicated region
        $region21: #{context_encoding_forward.8} parent=15 // pred_check
          %p170 = pneg %p78
        $region22: #{context_encoding_forward.8} parent=15 // pred_check_branch
          %172 = sbr.rel (%p170) target = $region24
        $region23: #{context_encoding_forward.8} parent=15 // pred_region
          %s173 = sand.u32 %s68, 1
          %s174 = sand.u32 %s68, 1
          %s175 = smul.addr %s174, 1024
          %s176 = scalar_lea.vmem [#allocation3], %s175
          %s177 = smul.u32 64, %s18
          %s178 = smul.u32 2, %s17
          %s179 = smul.addr %s177, 4
          %s180 = sadd.s32 %s178, %s179
          %s181 = smul.addr %s180, 8
          %s182 = scalar_lea.vmem %s1, %s181
          // Predicated region
          $region25: #{context_encoding_forward.8} parent=23 // pred_check
            _
          $region26: #{context_encoding_forward.8} parent=23 // pred_check_branch
            %184 = sbr.rel (0) target = $region28
          $region27: #{context_encoding_forward.8} parent=23 // pred_region
            // Predicated region
            $region29: #{context_encoding_forward.8} parent=27 // pred_check
              _
            $region30: #{context_encoding_forward.8} parent=27 // pred_check_branch
              %186 = sbr.rel (0) target = $region32
            $region31: #{context_encoding_forward.8} parent=27 // pred_region
              loop: start=0, step=1, limit=1
              $region33: #{context_encoding_forward.8} parent=31 // loop_pre_header
                _
              $region34: #{context_encoding_forward.8} parent=31 // loop_header
                %s188 = sphi 0, %s192
                %p189 = scmp.ge.s32.totalorder %s188, 1
                %s193 = sphi %s182, %s182
                %s194 = sphi %s176, %s176
              $region35: #{context_encoding_forward.8} parent=31 // loop_header_branch
                %191 = sbr.rel (%p189) target = $region39
              $region36: #{context_encoding_forward.8} parent=31 // loop_body
                %v195 = vld [vmem:[%s193] sm:$0xff]
                %196 = vst [vmem:[%s194] sm:$0xff] %v195
                %v197 = vld [vmem:[%s193 + $0x8] sm:$0xff]
                %198 = vst [vmem:[%s194 + $0x8] sm:$0xff] %v197
                %v199 = vld [vmem:[%s193 + $0x20] sm:$0xff]
                %200 = vst [vmem:[%s194 + $0x10] sm:$0xff] %v199
                %v201 = vld [vmem:[%s193 + $0x28] sm:$0xff]
                %202 = vst [vmem:[%s194 + $0x18] sm:$0xff] %v201
                %v203 = vld [vmem:[%s193 + $0x40] sm:$0xff]
                %204 = vst [vmem:[%s194 + $0x20] sm:$0xff] %v203
                %v205 = vld [vmem:[%s193 + $0x48] sm:$0xff]
                %206 = vst [vmem:[%s194 + $0x28] sm:$0xff] %v205
                %v207 = vld [vmem:[%s193 + $0x60] sm:$0xff]
                %208 = vst [vmem:[%s194 + $0x30] sm:$0xff] %v207
                %v209 = vld [vmem:[%s193 + $0x68] sm:$0xff]
                %210 = vst [vmem:[%s194 + $0x38] sm:$0xff] %v209
                %v211 = vld [vmem:[%s193 + $0x80] sm:$0xff]
                %212 = vst [vmem:[%s194 + $0x40] sm:$0xff] %v211
                %v213 = vld [vmem:[%s193 + $0x88] sm:$0xff]
                %214 = vst [vmem:[%s194 + $0x48] sm:$0xff] %v213
                %v215 = vld [vmem:[%s193 + $0xa0] sm:$0xff]
                %216 = vst [vmem:[%s194 + $0x50] sm:$0xff] %v215
                %v217 = vld [vmem:[%s193 + $0xa8] sm:$0xff]
                %218 = vst [vmem:[%s194 + $0x58] sm:$0xff] %v217
                %v219 = vld [vmem:[%s193 + $0xc0] sm:$0xff]
                %220 = vst [vmem:[%s194 + $0x60] sm:$0xff] %v219
                %v221 = vld [vmem:[%s193 + $0xc8] sm:$0xff]
                %222 = vst [vmem:[%s194 + $0x68] sm:$0xff] %v221
                %v223 = vld [vmem:[%s193 + $0xe0] sm:$0xff]
                %224 = vst [vmem:[%s194 + $0x70] sm:$0xff] %v223
                %v225 = vld [vmem:[%s193 + $0xe8] sm:$0xff]
                %226 = vst [vmem:[%s194 + $0x78] sm:$0xff] %v225
                %v227 = vld [vmem:[%s193 + $0x100] sm:$0xff]
                %228 = vst [vmem:[%s194 + $0x80] sm:$0xff] %v227
                %v229 = vld [vmem:[%s193 + $0x108] sm:$0xff]
                %230 = vst [vmem:[%s194 + $0x88] sm:$0xff] %v229
                %v231 = vld [vmem:[%s193 + $0x120] sm:$0xff]
                %232 = vst [vmem:[%s194 + $0x90] sm:$0xff] %v231
                %v233 = vld [vmem:[%s193 + $0x128] sm:$0xff]
                %234 = vst [vmem:[%s194 + $0x98] sm:$0xff] %v233
                %v235 = vld [vmem:[%s193 + $0x140] sm:$0xff]
                %236 = vst [vmem:[%s194 + $0xa0] sm:$0xff] %v235
                %v237 = vld [vmem:[%s193 + $0x148] sm:$0xff]
                %238 = vst [vmem:[%s194 + $0xa8] sm:$0xff] %v237
                %v239 = vld [vmem:[%s193 + $0x160] sm:$0xff]
                %240 = vst [vmem:[%s194 + $0xb0] sm:$0xff] %v239
                %v241 = vld [vmem:[%s193 + $0x168] sm:$0xff]
                %242 = vst [vmem:[%s194 + $0xb8] sm:$0xff] %v241
                %v243 = vld [vmem:[%s193 + $0x180] sm:$0xff]
                %244 = vst [vmem:[%s194 + $0xc0] sm:$0xff] %v243
                %v245 = vld [vmem:[%s193 + $0x188] sm:$0xff]
                %246 = vst [vmem:[%s194 + $0xc8] sm:$0xff] %v245
                %v247 = vld [vmem:[%s193 + $0x1a0] sm:$0xff]
                %248 = vst [vmem:[%s194 + $0xd0] sm:$0xff] %v247
                %v249 = vld [vmem:[%s193 + $0x1a8] sm:$0xff]
                %250 = vst [vmem:[%s194 + $0xd8] sm:$0xff] %v249
                %v251 = vld [vmem:[%s193 + $0x1c0] sm:$0xff]
                %252 = vst [vmem:[%s194 + $0xe0] sm:$0xff] %v251
                %v253 = vld [vmem:[%s193 + $0x1c8] sm:$0xff]
                %254 = vst [vmem:[%s194 + $0xe8] sm:$0xff] %v253
                %v255 = vld [vmem:[%s193 + $0x1e0] sm:$0xff]
                %256 = vst [vmem:[%s194 + $0xf0] sm:$0xff] %v255
                %v257 = vld [vmem:[%s193 + $0x1e8] sm:$0xff]
                %258 = vst [vmem:[%s194 + $0xf8] sm:$0xff] %v257
                %v259 = vld [vmem:[%s193 + $0x200] sm:$0xff]
                %260 = vst [vmem:[%s194 + $0x100] sm:$0xff] %v259
                %v261 = vld [vmem:[%s193 + $0x208] sm:$0xff]
                %262 = vst [vmem:[%s194 + $0x108] sm:$0xff] %v261
                %v263 = vld [vmem:[%s193 + $0x220] sm:$0xff]
                %264 = vst [vmem:[%s194 + $0x110] sm:$0xff] %v263
                %v265 = vld [vmem:[%s193 + $0x228] sm:$0xff]
                %266 = vst [vmem:[%s194 + $0x118] sm:$0xff] %v265
                %v267 = vld [vmem:[%s193 + $0x240] sm:$0xff]
                %268 = vst [vmem:[%s194 + $0x120] sm:$0xff] %v267
                %v269 = vld [vmem:[%s193 + $0x248] sm:$0xff]
                %270 = vst [vmem:[%s194 + $0x128] sm:$0xff] %v269
                %v271 = vld [vmem:[%s193 + $0x260] sm:$0xff]
                %272 = vst [vmem:[%s194 + $0x130] sm:$0xff] %v271
                %v273 = vld [vmem:[%s193 + $0x268] sm:$0xff]
                %274 = vst [vmem:[%s194 + $0x138] sm:$0xff] %v273
                %v275 = vld [vmem:[%s193 + $0x280] sm:$0xff]
                %276 = vst [vmem:[%s194 + $0x140] sm:$0xff] %v275
                %v277 = vld [vmem:[%s193 + $0x288] sm:$0xff]
                %278 = vst [vmem:[%s194 + $0x148] sm:$0xff] %v277
                %v279 = vld [vmem:[%s193 + $0x2a0] sm:$0xff]
                %280 = vst [vmem:[%s194 + $0x150] sm:$0xff] %v279
                %v281 = vld [vmem:[%s193 + $0x2a8] sm:$0xff]
                %282 = vst [vmem:[%s194 + $0x158] sm:$0xff] %v281
                %v283 = vld [vmem:[%s193 + $0x2c0] sm:$0xff]
                %284 = vst [vmem:[%s194 + $0x160] sm:$0xff] %v283
                %v285 = vld [vmem:[%s193 + $0x2c8] sm:$0xff]
                %286 = vst [vmem:[%s194 + $0x168] sm:$0xff] %v285
                %v287 = vld [vmem:[%s193 + $0x2e0] sm:$0xff]
                %288 = vst [vmem:[%s194 + $0x170] sm:$0xff] %v287
                %v289 = vld [vmem:[%s193 + $0x2e8] sm:$0xff]
                %290 = vst [vmem:[%s194 + $0x178] sm:$0xff] %v289
                %v291 = vld [vmem:[%s193 + $0x300] sm:$0xff]
                %292 = vst [vmem:[%s194 + $0x180] sm:$0xff] %v291
                %v293 = vld [vmem:[%s193 + $0x308] sm:$0xff]
                %294 = vst [vmem:[%s194 + $0x188] sm:$0xff] %v293
                %v295 = vld [vmem:[%s193 + $0x320] sm:$0xff]
                %296 = vst [vmem:[%s194 + $0x190] sm:$0xff] %v295
                %v297 = vld [vmem:[%s193 + $0x328] sm:$0xff]
                %298 = vst [vmem:[%s194 + $0x198] sm:$0xff] %v297
                %v299 = vld [vmem:[%s193 + $0x340] sm:$0xff]
                %300 = vst [vmem:[%s194 + $0x1a0] sm:$0xff] %v299
                %v301 = vld [vmem:[%s193 + $0x348] sm:$0xff]
                %302 = vst [vmem:[%s194 + $0x1a8] sm:$0xff] %v301
                %v303 = vld [vmem:[%s193 + $0x360] sm:$0xff]
                %304 = vst [vmem:[%s194 + $0x1b0] sm:$0xff] %v303
                %v305 = vld [vmem:[%s193 + $0x368] sm:$0xff]
                %306 = vst [vmem:[%s194 + $0x1b8] sm:$0xff] %v305
                %v307 = vld [vmem:[%s193 + $0x380] sm:$0xff]
                %308 = vst [vmem:[%s194 + $0x1c0] sm:$0xff] %v307
                %v309 = vld [vmem:[%s193 + $0x388] sm:$0xff]
                %310 = vst [vmem:[%s194 + $0x1c8] sm:$0xff] %v309
                %v311 = vld [vmem:[%s193 + $0x3a0] sm:$0xff]
                %312 = vst [vmem:[%s194 + $0x1d0] sm:$0xff] %v311
                %v313 = vld [vmem:[%s193 + $0x3a8] sm:$0xff]
                %314 = vst [vmem:[%s194 + $0x1d8] sm:$0xff] %v313
                %v315 = vld [vmem:[%s193 + $0x3c0] sm:$0xff]
                %316 = vst [vmem:[%s194 + $0x1e0] sm:$0xff] %v315
                %v317 = vld [vmem:[%s193 + $0x3c8] sm:$0xff]
                %318 = vst [vmem:[%s194 + $0x1e8] sm:$0xff] %v317
                %v319 = vld [vmem:[%s193 + $0x3e0] sm:$0xff]
                %320 = vst [vmem:[%s194 + $0x1f0] sm:$0xff] %v319
                %v321 = vld [vmem:[%s193 + $0x3e8] sm:$0xff]
                %322 = vst [vmem:[%s194 + $0x1f8] sm:$0xff] %v321
                %v323 = vld [vmem:[%s193 + $0x400] sm:$0xff]
                %324 = vst [vmem:[%s194 + $0x200] sm:$0xff] %v323
                %v325 = vld [vmem:[%s193 + $0x408] sm:$0xff]
                %326 = vst [vmem:[%s194 + $0x208] sm:$0xff] %v325
                %v327 = vld [vmem:[%s193 + $0x420] sm:$0xff]
                %328 = vst [vmem:[%s194 + $0x210] sm:$0xff] %v327
                %v329 = vld [vmem:[%s193 + $0x428] sm:$0xff]
                %330 = vst [vmem:[%s194 + $0x218] sm:$0xff] %v329
                %v331 = vld [vmem:[%s193 + $0x440] sm:$0xff]
                %332 = vst [vmem:[%s194 + $0x220] sm:$0xff] %v331
                %v333 = vld [vmem:[%s193 + $0x448] sm:$0xff]
                %334 = vst [vmem:[%s194 + $0x228] sm:$0xff] %v333
                %v335 = vld [vmem:[%s193 + $0x460] sm:$0xff]
                %336 = vst [vmem:[%s194 + $0x230] sm:$0xff] %v335
                %v337 = vld [vmem:[%s193 + $0x468] sm:$0xff]
                %338 = vst [vmem:[%s194 + $0x238] sm:$0xff] %v337
                %v339 = vld [vmem:[%s193 + $0x480] sm:$0xff]
                %340 = vst [vmem:[%s194 + $0x240] sm:$0xff] %v339
                %v341 = vld [vmem:[%s193 + $0x488] sm:$0xff]
                %342 = vst [vmem:[%s194 + $0x248] sm:$0xff] %v341
                %v343 = vld [vmem:[%s193 + $0x4a0] sm:$0xff]
                %344 = vst [vmem:[%s194 + $0x250] sm:$0xff] %v343
                %v345 = vld [vmem:[%s193 + $0x4a8] sm:$0xff]
                %346 = vst [vmem:[%s194 + $0x258] sm:$0xff] %v345
                %v347 = vld [vmem:[%s193 + $0x4c0] sm:$0xff]
                %348 = vst [vmem:[%s194 + $0x260] sm:$0xff] %v347
                %v349 = vld [vmem:[%s193 + $0x4c8] sm:$0xff]
                %350 = vst [vmem:[%s194 + $0x268] sm:$0xff] %v349
                %v351 = vld [vmem:[%s193 + $0x4e0] sm:$0xff]
                %352 = vst [vmem:[%s194 + $0x270] sm:$0xff] %v351
                %v353 = vld [vmem:[%s193 + $0x4e8] sm:$0xff]
                %354 = vst [vmem:[%s194 + $0x278] sm:$0xff] %v353
                %v355 = vld [vmem:[%s193 + $0x500] sm:$0xff]
                %356 = vst [vmem:[%s194 + $0x280] sm:$0xff] %v355
                %v357 = vld [vmem:[%s193 + $0x508] sm:$0xff]
                %358 = vst [vmem:[%s194 + $0x288] sm:$0xff] %v357
                %v359 = vld [vmem:[%s193 + $0x520] sm:$0xff]
                %360 = vst [vmem:[%s194 + $0x290] sm:$0xff] %v359
                %v361 = vld [vmem:[%s193 + $0x528] sm:$0xff]
                %362 = vst [vmem:[%s194 + $0x298] sm:$0xff] %v361
                %v363 = vld [vmem:[%s193 + $0x540] sm:$0xff]
                %364 = vst [vmem:[%s194 + $0x2a0] sm:$0xff] %v363
                %v365 = vld [vmem:[%s193 + $0x548] sm:$0xff]
                %366 = vst [vmem:[%s194 + $0x2a8] sm:$0xff] %v365
                %v367 = vld [vmem:[%s193 + $0x560] sm:$0xff]
                %368 = vst [vmem:[%s194 + $0x2b0] sm:$0xff] %v367
                %v369 = vld [vmem:[%s193 + $0x568] sm:$0xff]
                %370 = vst [vmem:[%s194 + $0x2b8] sm:$0xff] %v369
                %v371 = vld [vmem:[%s193 + $0x580] sm:$0xff]
                %372 = vst [vmem:[%s194 + $0x2c0] sm:$0xff] %v371
                %v373 = vld [vmem:[%s193 + $0x588] sm:$0xff]
                %374 = vst [vmem:[%s194 + $0x2c8] sm:$0xff] %v373
                %v375 = vld [vmem:[%s193 + $0x5a0] sm:$0xff]
                %376 = vst [vmem:[%s194 + $0x2d0] sm:$0xff] %v375
                %v377 = vld [vmem:[%s193 + $0x5a8] sm:$0xff]
                %378 = vst [vmem:[%s194 + $0x2d8] sm:$0xff] %v377
                %v379 = vld [vmem:[%s193 + $0x5c0] sm:$0xff]
                %380 = vst [vmem:[%s194 + $0x2e0] sm:$0xff] %v379
                %v381 = vld [vmem:[%s193 + $0x5c8] sm:$0xff]
                %382 = vst [vmem:[%s194 + $0x2e8] sm:$0xff] %v381
                %v383 = vld [vmem:[%s193 + $0x5e0] sm:$0xff]
                %384 = vst [vmem:[%s194 + $0x2f0] sm:$0xff] %v383
                %v385 = vld [vmem:[%s193 + $0x5e8] sm:$0xff]
                %386 = vst [vmem:[%s194 + $0x2f8] sm:$0xff] %v385
                %v387 = vld [vmem:[%s193 + $0x600] sm:$0xff]
                %388 = vst [vmem:[%s194 + $0x300] sm:$0xff] %v387
                %v389 = vld [vmem:[%s193 + $0x608] sm:$0xff]
                %390 = vst [vmem:[%s194 + $0x308] sm:$0xff] %v389
                %v391 = vld [vmem:[%s193 + $0x620] sm:$0xff]
                %392 = vst [vmem:[%s194 + $0x310] sm:$0xff] %v391
                %v393 = vld [vmem:[%s193 + $0x628] sm:$0xff]
                %394 = vst [vmem:[%s194 + $0x318] sm:$0xff] %v393
                %v395 = vld [vmem:[%s193 + $0x640] sm:$0xff]
                %396 = vst [vmem:[%s194 + $0x320] sm:$0xff] %v395
                %v397 = vld [vmem:[%s193 + $0x648] sm:$0xff]
                %398 = vst [vmem:[%s194 + $0x328] sm:$0xff] %v397
                %v399 = vld [vmem:[%s193 + $0x660] sm:$0xff]
                %400 = vst [vmem:[%s194 + $0x330] sm:$0xff] %v399
                %v401 = vld [vmem:[%s193 + $0x668] sm:$0xff]
                %402 = vst [vmem:[%s194 + $0x338] sm:$0xff] %v401
                %v403 = vld [vmem:[%s193 + $0x680] sm:$0xff]
                %404 = vst [vmem:[%s194 + $0x340] sm:$0xff] %v403
                %v405 = vld [vmem:[%s193 + $0x688] sm:$0xff]
                %406 = vst [vmem:[%s194 + $0x348] sm:$0xff] %v405
                %v407 = vld [vmem:[%s193 + $0x6a0] sm:$0xff]
                %408 = vst [vmem:[%s194 + $0x350] sm:$0xff] %v407
                %v409 = vld [vmem:[%s193 + $0x6a8] sm:$0xff]
                %410 = vst [vmem:[%s194 + $0x358] sm:$0xff] %v409
                %v411 = vld [vmem:[%s193 + $0x6c0] sm:$0xff]
                %412 = vst [vmem:[%s194 + $0x360] sm:$0xff] %v411
                %v413 = vld [vmem:[%s193 + $0x6c8] sm:$0xff]
                %414 = vst [vmem:[%s194 + $0x368] sm:$0xff] %v413
                %v415 = vld [vmem:[%s193 + $0x6e0] sm:$0xff]
                %416 = vst [vmem:[%s194 + $0x370] sm:$0xff] %v415
                %v417 = vld [vmem:[%s193 + $0x6e8] sm:$0xff]
                %418 = vst [vmem:[%s194 + $0x378] sm:$0xff] %v417
                %v419 = vld [vmem:[%s193 + $0x700] sm:$0xff]
                %420 = vst [vmem:[%s194 + $0x380] sm:$0xff] %v419
                %v421 = vld [vmem:[%s193 + $0x708] sm:$0xff]
                %422 = vst [vmem:[%s194 + $0x388] sm:$0xff] %v421
                %v423 = vld [vmem:[%s193 + $0x720] sm:$0xff]
                %424 = vst [vmem:[%s194 + $0x390] sm:$0xff] %v423
                %v425 = vld [vmem:[%s193 + $0x728] sm:$0xff]
                %426 = vst [vmem:[%s194 + $0x398] sm:$0xff] %v425
                %v427 = vld [vmem:[%s193 + $0x740] sm:$0xff]
                %428 = vst [vmem:[%s194 + $0x3a0] sm:$0xff] %v427
                %v429 = vld [vmem:[%s193 + $0x748] sm:$0xff]
                %430 = vst [vmem:[%s194 + $0x3a8] sm:$0xff] %v429
                %v431 = vld [vmem:[%s193 + $0x760] sm:$0xff]
                %432 = vst [vmem:[%s194 + $0x3b0] sm:$0xff] %v431
                %v433 = vld [vmem:[%s193 + $0x768] sm:$0xff]
                %434 = vst [vmem:[%s194 + $0x3b8] sm:$0xff] %v433
                %v435 = vld [vmem:[%s193 + $0x780] sm:$0xff]
                %436 = vst [vmem:[%s194 + $0x3c0] sm:$0xff] %v435
                %v437 = vld [vmem:[%s193 + $0x788] sm:$0xff]
                %438 = vst [vmem:[%s194 + $0x3c8] sm:$0xff] %v437
                %v439 = vld [vmem:[%s193 + $0x7a0] sm:$0xff]
                %440 = vst [vmem:[%s194 + $0x3d0] sm:$0xff] %v439
                %v441 = vld [vmem:[%s193 + $0x7a8] sm:$0xff]
                %442 = vst [vmem:[%s194 + $0x3d8] sm:$0xff] %v441
                %v443 = vld [vmem:[%s193 + $0x7c0] sm:$0xff]
                %444 = vst [vmem:[%s194 + $0x3e0] sm:$0xff] %v443
                %v445 = vld [vmem:[%s193 + $0x7c8] sm:$0xff]
                %446 = vst [vmem:[%s194 + $0x3e8] sm:$0xff] %v445
                %v447 = vld [vmem:[%s193 + $0x7e0] sm:$0xff]
                %448 = vst [vmem:[%s194 + $0x3f0] sm:$0xff] %v447
                %v449 = vld [vmem:[%s193 + $0x7e8] sm:$0xff]
                %450 = vst [vmem:[%s194 + $0x3f8] sm:$0xff] %v449
              $region37: #{context_encoding_forward.8} parent=31 // loop_footer
                %s192 = sadd.s32 1, %s188
              $region38: #{context_encoding_forward.8} parent=31 // loop_footer_branch
                %187 = sbr.rel target = $region34
              $region39: #{context_encoding_forward.8} parent=31 // loop_exit
                _
            $region32: #{context_encoding_forward.8} parent=27 // pred_fallthru
              _
            // Predicated region
            $region40: #{context_encoding_forward.8} parent=27 // pred_check
              _
            $region41: #{context_encoding_forward.8} parent=27 // pred_check_branch
              %452 = sbr.rel target = $region43
            $region42: #{context_encoding_forward.8} parent=27 // pred_region
              _
            $region43: #{context_encoding_forward.8} parent=27 // pred_fallthru
              _
          $region28: #{context_encoding_forward.8} parent=23 // pred_fallthru
            _
          %453 = vnop
        $region24: #{context_encoding_forward.8} parent=15 // pred_fallthru
          _
        // Predicated region
        $region44: #{context_encoding_forward.8} parent=15 // pred_check
          %p454 = pneg %p104
        $region45: #{context_encoding_forward.8} parent=15 // pred_check_branch
          %456 = sbr.rel (%p454) target = $region47
        $region46: #{context_encoding_forward.8} parent=15 // pred_region
          %s457 = smul.u32 2, %s17
          %p458 = scmp.lt.s32.totalorder %s457, 3
          %s459 = scalar_select %p458, %s457, 3
          %s460 = scalar_lea.vmem %s2, %s459
          %s461 = smul.u32 2, %s17
        $region47: #{context_encoding_forward.8} parent=15 // pred_fallthru
          _
      $region16: #{context_encoding_forward.8} parent=5 // pred_fallthru
        _
      %p462 = scmp.le.s32.totalorder 1, %s9
      %p463 = scmp.lt.s32.totalorder %s9, 17
      %p464 = pnand %p462, %p463
      %p465 = pneg %p464
      // Predicated region
      $region48: #{context_encoding_forward.8} parent=5 // pred_check
        _
      $region49: #{context_encoding_forward.8} parent=5 // pred_check_branch
        %467 = sbr.rel (%p464) target = $region51
      $region50: #{context_encoding_forward.8} parent=5 // pred_region
        %s468 = ssub.s32 %s9, 1
        %s469 = sand.u32 %s71, 1
        %s470 = sand.u32 %s71, 1
        %s471 = smul.addr %s470, 1024
        %s472 = scalar_lea.vmem [#allocation3], %s471
        // Predicated region
        $region52: #{context_encoding_forward.8} parent=50 // pred_check
          %p473 = pneg %p84
        $region53: #{context_encoding_forward.8} parent=50 // pred_check_branch
          %475 = sbr.rel (%p473) target = $region55
        $region54: #{context_encoding_forward.8} parent=50 // pred_region
          _
        $region55: #{context_encoding_forward.8} parent=50 // pred_fallthru
          _
        %s476 = smul.u32 4, %s21
        %p477 = scmp.lt.s32.totalorder %s19, 0
        %s478 = scalar_select %p477, %s19, 0
        %p479 = scmp.lt.s32.totalorder %s476, 31
        %s480 = scalar_select %p479, %s476, 31
        %s481 = smul.addr %s478, 32
        %s482 = sadd.s32 %s480, %s481
        %s483 = smul.addr %s482, 2
        %s484 = scalar_lea.vmem %s0, %s483
        %p485 = pneg %p56
        %p486 = pneg %p53
        %s487 = sand.u32 %s71, 1
        %s488 = sand.u32 %s71, 1
        %s489 = smul.addr %s488, 1024
        %s490 = scalar_lea.vmem [#allocation3], %s489
        %p491 = pneg %p84
        %p492 = pneg %p81
        %s493 = smul.u32 2, %s20
        %p494 = scmp.lt.s32.totalorder %s493, 3
        %s495 = scalar_select %p494, %s493, 3
        %s496 = scalar_lea.vmem %s2, %s495
        %p497 = pneg %p110
        %p498 = pneg %p107
        %p499 = pneg %p138
        %p500 = pneg %p135
        %s501 = smul.u32 2, %s20
        %p502 = scmp.lt.s32.totalorder %s19, 0
        %s503 = scalar_select %p502, %s19, 0
        %p504 = scmp.lt.s32.totalorder %s501, 3
        %s505 = scalar_select %p504, %s501, 3
        %s506 = smul.addr %s503, 4
        %s507 = sadd.s32 %s505, %s506
        %s508 = smul.addr %s507, 2
        %s509 = scalar_lea.vmem %s3, %s508
        %s510 = smul.u32 4, %s21
        %p511 = scmp.lt.s32.totalorder %s19, 0
        %s512 = scalar_select %p511, %s19, 0
        %p513 = scmp.lt.s32.totalorder %s510, 31
        %s514 = scalar_select %p513, %s510, 31
        %s515 = smul.addr %s512, 32
        %s516 = sadd.s32 %s514, %s515
        %s517 = smul.addr %s516, 2
        %s518 = scalar_lea.vmem %s0, %s517
        %s519 = smul.u32 4, %s21
        %s520 = smul.u32 64, %s21
        %s521 = smul.u32 2, %s20
        %s522 = smul.u32 2, %s20
        %p523 = scmp.lt.s32.totalorder %s522, 3
        %s524 = scalar_select %p523, %s522, 3
        %s525 = scalar_lea.vmem %s2, %s524
        %s526 = smul.u32 2, %s20
        %s527 = smul.u32 2, %s20
        %p528 = scmp.lt.s32.totalorder %s19, 0
        %s529 = scalar_select %p528, %s19, 0
        %p530 = scmp.lt.s32.totalorder %s527, 3
        %s531 = scalar_select %p530, %s527, 3
        %s532 = smul.addr %s529, 4
        %s533 = sadd.s32 %s531, %s532
        %s534 = smul.addr %s533, 2
        %s535 = scalar_lea.vmem %s3, %s534
        %s536 = smul.u32 2, %s20
        %p537 = scmp.eq.s32.totalorder %s21, 0
        // Predicated region
        $region56: #{context_encoding_forward.8} parent=50 // pred_check
          %p538 = pneg %p537
        $region57: #{context_encoding_forward.8} parent=50 // pred_check_branch
          %540 = sbr.rel (%p538) target = $region59
        $region58: #{context_encoding_forward.8} parent=50 // pred_region
          %541 = vst [vmem:[#allocation2] sm:$0xf] 0.0
        $region59: #{context_encoding_forward.8} parent=50 // pred_fallthru
          _
        %v542 = vld [vmem:[#allocation2] sm:$0xf]
        %v543 = vld [vmem:[%s518] sm:$0xff]
        %v544 = vld [vmem:[%s472] sm:$0xff]
        %v545 = vld [vmem:[%s472 + $0x8] sm:$0xff]
        %v546 = vld [vmem:[%s472 + $0x10] sm:$0xff]
        %v547 = vld [vmem:[%s472 + $0x18] sm:$0xff]
        %v548 = vld [vmem:[%s472 + $0x20] sm:$0xff]
        %v549 = vld [vmem:[%s472 + $0x28] sm:$0xff]
        %v550 = vld [vmem:[%s472 + $0x30] sm:$0xff]
        %v551 = vld [vmem:[%s472 + $0x38] sm:$0xff]
        %v552 = vld [vmem:[%s472 + $0x40] sm:$0xff]
        %v553 = vld [vmem:[%s472 + $0x48] sm:$0xff]
        %v554 = vld [vmem:[%s472 + $0x50] sm:$0xff]
        %v555 = vld [vmem:[%s472 + $0x58] sm:$0xff]
        %v556 = vld [vmem:[%s472 + $0x60] sm:$0xff]
        %v557 = vld [vmem:[%s472 + $0x68] sm:$0xff]
        %v558 = vld [vmem:[%s472 + $0x70] sm:$0xff]
        %v559 = vld [vmem:[%s472 + $0x78] sm:$0xff]
        %v560 = vld [vmem:[%s472 + $0x80] sm:$0xff]
        %v561 = vld [vmem:[%s472 + $0x88] sm:$0xff]
        %v562 = vld [vmem:[%s472 + $0x90] sm:$0xff]
        %v563 = vld [vmem:[%s472 + $0x98] sm:$0xff]
        %v564 = vld [vmem:[%s472 + $0xa0] sm:$0xff]
        %v565 = vld [vmem:[%s472 + $0xa8] sm:$0xff]
        %v566 = vld [vmem:[%s472 + $0xb0] sm:$0xff]
        %v567 = vld [vmem:[%s472 + $0xb8] sm:$0xff]
        %v568 = vld [vmem:[%s472 + $0xc0] sm:$0xff]
        %v569 = vld [vmem:[%s472 + $0xc8] sm:$0xff]
        %v570 = vld [vmem:[%s472 + $0xd0] sm:$0xff]
        %v571 = vld [vmem:[%s472 + $0xd8] sm:$0xff]
        %v572 = vld [vmem:[%s472 + $0xe0] sm:$0xff]
        %v573 = vld [vmem:[%s472 + $0xe8] sm:$0xff]
        %v574 = vld [vmem:[%s472 + $0xf0] sm:$0xff]
        %v575 = vld [vmem:[%s472 + $0xf8] sm:$0xff]
        %v576 = vld [vmem:[%s472 + $0x100] sm:$0xff]
        %v577 = vld [vmem:[%s472 + $0x108] sm:$0xff]
        %v578 = vld [vmem:[%s472 + $0x110] sm:$0xff]
        %v579 = vld [vmem:[%s472 + $0x118] sm:$0xff]
        %v580 = vld [vmem:[%s472 + $0x120] sm:$0xff]
        %v581 = vld [vmem:[%s472 + $0x128] sm:$0xff]
        %v582 = vld [vmem:[%s472 + $0x130] sm:$0xff]
        %v583 = vld [vmem:[%s472 + $0x138] sm:$0xff]
        %v584 = vld [vmem:[%s472 + $0x140] sm:$0xff]
        %v585 = vld [vmem:[%s472 + $0x148] sm:$0xff]
        %v586 = vld [vmem:[%s472 + $0x150] sm:$0xff]
        %v587 = vld [vmem:[%s472 + $0x158] sm:$0xff]
        %v588 = vld [vmem:[%s472 + $0x160] sm:$0xff]
        %v589 = vld [vmem:[%s472 + $0x168] sm:$0xff]
        %v590 = vld [vmem:[%s472 + $0x170] sm:$0xff]
        %v591 = vld [vmem:[%s472 + $0x178] sm:$0xff]
        %v592 = vld [vmem:[%s472 + $0x180] sm:$0xff]
        %v593 = vld [vmem:[%s472 + $0x188] sm:$0xff]
        %v594 = vld [vmem:[%s472 + $0x190] sm:$0xff]
        %v595 = vld [vmem:[%s472 + $0x198] sm:$0xff]
        %v596 = vld [vmem:[%s472 + $0x1a0] sm:$0xff]
        %v597 = vld [vmem:[%s472 + $0x1a8] sm:$0xff]
        %v598 = vld [vmem:[%s472 + $0x1b0] sm:$0xff]
        %v599 = vld [vmem:[%s472 + $0x1b8] sm:$0xff]
        %v600 = vld [vmem:[%s472 + $0x1c0] sm:$0xff]
        %v601 = vld [vmem:[%s472 + $0x1c8] sm:$0xff]
        %v602 = vld [vmem:[%s472 + $0x1d0] sm:$0xff]
        %v603 = vld [vmem:[%s472 + $0x1d8] sm:$0xff]
        %v604 = vld [vmem:[%s472 + $0x1e0] sm:$0xff]
        %v605 = vld [vmem:[%s472 + $0x1e8] sm:$0xff]
        %v606 = vld [vmem:[%s472 + $0x1f0] sm:$0xff]
        %v607 = vld [vmem:[%s472 + $0x1f8] sm:$0xff]
        %v608 = vld [vmem:[%s472 + $0x200] sm:$0xff]
        %v609 = vld [vmem:[%s472 + $0x208] sm:$0xff]
        %v610 = vld [vmem:[%s472 + $0x210] sm:$0xff]
        %v611 = vld [vmem:[%s472 + $0x218] sm:$0xff]
        %v612 = vld [vmem:[%s472 + $0x220] sm:$0xff]
        %v613 = vld [vmem:[%s472 + $0x228] sm:$0xff]
        %v614 = vld [vmem:[%s472 + $0x230] sm:$0xff]
        %v615 = vld [vmem:[%s472 + $0x238] sm:$0xff]
        %v616 = vld [vmem:[%s472 + $0x240] sm:$0xff]
        %v617 = vld [vmem:[%s472 + $0x248] sm:$0xff]
        %v618 = vld [vmem:[%s472 + $0x250] sm:$0xff]
        %v619 = vld [vmem:[%s472 + $0x258] sm:$0xff]
        %v620 = vld [vmem:[%s472 + $0x260] sm:$0xff]
        %v621 = vld [vmem:[%s472 + $0x268] sm:$0xff]
        %v622 = vld [vmem:[%s472 + $0x270] sm:$0xff]
        %v623 = vld [vmem:[%s472 + $0x278] sm:$0xff]
        %v624 = vld [vmem:[%s472 + $0x280] sm:$0xff]
        %v625 = vld [vmem:[%s472 + $0x288] sm:$0xff]
        %v626 = vld [vmem:[%s472 + $0x290] sm:$0xff]
        %v627 = vld [vmem:[%s472 + $0x298] sm:$0xff]
        %v628 = vld [vmem:[%s472 + $0x2a0] sm:$0xff]
        %v629 = vld [vmem:[%s472 + $0x2a8] sm:$0xff]
        %v630 = vld [vmem:[%s472 + $0x2b0] sm:$0xff]
        %v631 = vld [vmem:[%s472 + $0x2b8] sm:$0xff]
        %v632 = vld [vmem:[%s472 + $0x2c0] sm:$0xff]
        %v633 = vld [vmem:[%s472 + $0x2c8] sm:$0xff]
        %v634 = vld [vmem:[%s472 + $0x2d0] sm:$0xff]
        %v635 = vld [vmem:[%s472 + $0x2d8] sm:$0xff]
        %v636 = vld [vmem:[%s472 + $0x2e0] sm:$0xff]
        %v637 = vld [vmem:[%s472 + $0x2e8] sm:$0xff]
        %v638 = vld [vmem:[%s472 + $0x2f0] sm:$0xff]
        %v639 = vld [vmem:[%s472 + $0x2f8] sm:$0xff]
        %v640 = vld [vmem:[%s472 + $0x300] sm:$0xff]
        %v641 = vld [vmem:[%s472 + $0x308] sm:$0xff]
        %v642 = vld [vmem:[%s472 + $0x310] sm:$0xff]
        %v643 = vld [vmem:[%s472 + $0x318] sm:$0xff]
        %v644 = vld [vmem:[%s472 + $0x320] sm:$0xff]
        %v645 = vld [vmem:[%s472 + $0x328] sm:$0xff]
        %v646 = vld [vmem:[%s472 + $0x330] sm:$0xff]
        %v647 = vld [vmem:[%s472 + $0x338] sm:$0xff]
        %v648 = vld [vmem:[%s472 + $0x340] sm:$0xff]
        %v649 = vld [vmem:[%s472 + $0x348] sm:$0xff]
        %v650 = vld [vmem:[%s472 + $0x350] sm:$0xff]
        %v651 = vld [vmem:[%s472 + $0x358] sm:$0xff]
        %v652 = vld [vmem:[%s472 + $0x360] sm:$0xff]
        %v653 = vld [vmem:[%s472 + $0x368] sm:$0xff]
        %v654 = vld [vmem:[%s472 + $0x370] sm:$0xff]
        %v655 = vld [vmem:[%s472 + $0x378] sm:$0xff]
        %v656 = vld [vmem:[%s472 + $0x380] sm:$0xff]
        %v657 = vld [vmem:[%s472 + $0x388] sm:$0xff]
        %v658 = vld [vmem:[%s472 + $0x390] sm:$0xff]
        %v659 = vld [vmem:[%s472 + $0x398] sm:$0xff]
        %v660 = vld [vmem:[%s472 + $0x3a0] sm:$0xff]
        %v661 = vld [vmem:[%s472 + $0x3a8] sm:$0xff]
        %v662 = vld [vmem:[%s472 + $0x3b0] sm:$0xff]
        %v663 = vld [vmem:[%s472 + $0x3b8] sm:$0xff]
        %v664 = vld [vmem:[%s472 + $0x3c0] sm:$0xff]
        %v665 = vld [vmem:[%s472 + $0x3c8] sm:$0xff]
        %v666 = vld [vmem:[%s472 + $0x3d0] sm:$0xff]
        %v667 = vld [vmem:[%s472 + $0x3d8] sm:$0xff]
        %v668 = vld [vmem:[%s472 + $0x3e0] sm:$0xff]
        %v669 = vld [vmem:[%s472 + $0x3e8] sm:$0xff]
        %v670 = vld [vmem:[%s472 + $0x3f0] sm:$0xff]
        %v671 = vld [vmem:[%s472 + $0x3f8] sm:$0xff]
        %v673 = vcombine.high %v543, %v543
        %v675 = vunpack.c.l.s4 1983009808
        %v676 = vunpack.c.0.s8 %v675
        %v677 = vlaneseq
        %v678 = vshrl.u32 %v677, 7
        %v679 = vsub.s32 %v676, %v678
        %v680 = vrot.slane %v543, %v679
        %v682 = vunpack.c.l.s4 1983009808
        %v683 = vunpack.c.0.s8 %v682
        %v684 = vlaneseq
        %v685 = vshrl.u32 %v684, 7
        %v686 = vsub.s32 %v683, %v685
        %v687 = vrot.slane %v673, %v686
        %v688 = vcombine.high %v680, %v680
        %v689 = vcombine.high %v687, %v687
        %694 = vmatprep.subr.mxu0 %v545
        %695 = vmatpush1.msra.mxu0 %v544
        %696 = vmatprep.subr.mxu0 %v547
        %697 = vmatpush1.msra.mxu0 %v546
        %698 = vmatprep.subr.mxu0 %v549
        %699 = vmatpush1.msra.mxu0 %v548
        %700 = vmatprep.subr.mxu0 %v551
        %701 = vmatpush1.msra.mxu0 %v550
        %702 = vmatprep.subr.mxu0 %v553
        %703 = vmatpush1.msra.mxu0 %v552
        %704 = vmatprep.subr.mxu0 %v555
        %705 = vmatpush1.msra.mxu0 %v554
        %706 = vmatprep.subr.mxu0 %v557
        %707 = vmatpush1.msra.mxu0 %v556
        %708 = vmatprep.subr.mxu0 %v559
        %709 = vmatpush1.msra.mxu0 %v558
        %710 = vmatprep.subr.mxu0 %v561
        %711 = vmatpush1.msra.mxu0 %v560
        %712 = vmatprep.subr.mxu0 %v563
        %713 = vmatpush1.msra.mxu0 %v562
        %714 = vmatprep.subr.mxu0 %v565
        %715 = vmatpush1.msra.mxu0 %v564
        %716 = vmatprep.subr.mxu0 %v567
        %717 = vmatpush1.msra.mxu0 %v566
        %718 = vmatprep.subr.mxu0 %v569
        %719 = vmatpush1.msra.mxu0 %v568
        %720 = vmatprep.subr.mxu0 %v571
        %721 = vmatpush1.msra.mxu0 %v570
        %722 = vmatprep.subr.mxu0 %v573
        %723 = vmatpush1.msra.mxu0 %v572
        %724 = vmatprep.subr.mxu0 %v575
        %725 = vmatpush1.msra.mxu0 %v574
        %726 = vmatprep.subr.mxu0 %v577
        %727 = vmatpush1.msra.mxu0 %v576
        %728 = vmatprep.subr.mxu0 %v579
        %729 = vmatpush1.msra.mxu0 %v578
        %730 = vmatprep.subr.mxu0 %v581
        %731 = vmatpush1.msra.mxu0 %v580
        %732 = vmatprep.subr.mxu0 %v583
        %733 = vmatpush1.msra.mxu0 %v582
        %734 = vmatprep.subr.mxu0 %v585
        %735 = vmatpush1.msra.mxu0 %v584
        %736 = vmatprep.subr.mxu0 %v587
        %737 = vmatpush1.msra.mxu0 %v586
        %738 = vmatprep.subr.mxu0 %v589
        %739 = vmatpush1.msra.mxu0 %v588
        %740 = vmatprep.subr.mxu0 %v591
        %741 = vmatpush1.msra.mxu0 %v590
        %742 = vmatprep.subr.mxu0 %v593
        %743 = vmatpush1.msra.mxu0 %v592
        %744 = vmatprep.subr.mxu0 %v595
        %745 = vmatpush1.msra.mxu0 %v594
        %746 = vmatprep.subr.mxu0 %v597
        %747 = vmatpush1.msra.mxu0 %v596
        %748 = vmatprep.subr.mxu0 %v599
        %749 = vmatpush1.msra.mxu0 %v598
        %750 = vmatprep.subr.mxu0 %v601
        %751 = vmatpush1.msra.mxu0 %v600
        %752 = vmatprep.subr.mxu0 %v603
        %753 = vmatpush1.msra.mxu0 %v602
        %754 = vmatprep.subr.mxu0 %v605
        %755 = vmatpush1.msra.mxu0 %v604
        %756 = vmatprep.subr.mxu0 %v607
        %757 = vmatpush1.msra.mxu0 %v606
        %758 = vmatprep.mubr.f32.mxu0 %v688
        %759 = vmatmul.mubr.f32.gmra.mrb[0].mxu0 %v680
        %v760 = vpop.f32.mrb[0].mxu0
        %v761 = vadd.f32 0.0, %v760
        %v762 = vpop.f32.mrb[0].mxu0
        %v763 = vadd.f32 0.0, %v762
        %764 = vdwg.mxu0
        %765 = vmatprep.subr.mxu0 %v609
        %766 = vmatpush1.msra.mxu0 %v608
        %767 = vmatprep.subr.mxu0 %v611
        %768 = vmatpush1.msra.mxu0 %v610
        %769 = vmatprep.subr.mxu0 %v613
        %770 = vmatpush1.msra.mxu0 %v612
        %771 = vmatprep.subr.mxu0 %v615
        %772 = vmatpush1.msra.mxu0 %v614
        %773 = vmatprep.subr.mxu0 %v617
        %774 = vmatpush1.msra.mxu0 %v616
        %775 = vmatprep.subr.mxu0 %v619
        %776 = vmatpush1.msra.mxu0 %v618
        %777 = vmatprep.subr.mxu0 %v621
        %778 = vmatpush1.msra.mxu0 %v620
        %779 = vmatprep.subr.mxu0 %v623
        %780 = vmatpush1.msra.mxu0 %v622
        %781 = vmatprep.subr.mxu0 %v625
        %782 = vmatpush1.msra.mxu0 %v624
        %783 = vmatprep.subr.mxu0 %v627
        %784 = vmatpush1.msra.mxu0 %v626
        %785 = vmatprep.subr.mxu0 %v629
        %786 = vmatpush1.msra.mxu0 %v628
        %787 = vmatprep.subr.mxu0 %v631
        %788 = vmatpush1.msra.mxu0 %v630
        %789 = vmatprep.subr.mxu0 %v633
        %790 = vmatpush1.msra.mxu0 %v632
        %791 = vmatprep.subr.mxu0 %v635
        %792 = vmatpush1.msra.mxu0 %v634
        %793 = vmatprep.subr.mxu0 %v637
        %794 = vmatpush1.msra.mxu0 %v636
        %795 = vmatprep.subr.mxu0 %v639
        %796 = vmatpush1.msra.mxu0 %v638
        %797 = vmatprep.subr.mxu0 %v641
        %798 = vmatpush1.msra.mxu0 %v640
        %799 = vmatprep.subr.mxu0 %v643
        %800 = vmatpush1.msra.mxu0 %v642
        %801 = vmatprep.subr.mxu0 %v645
        %802 = vmatpush1.msra.mxu0 %v644
        %803 = vmatprep.subr.mxu0 %v647
        %804 = vmatpush1.msra.mxu0 %v646
        %805 = vmatprep.subr.mxu0 %v649
        %806 = vmatpush1.msra.mxu0 %v648
        %807 = vmatprep.subr.mxu0 %v651
        %808 = vmatpush1.msra.mxu0 %v650
        %809 = vmatprep.subr.mxu0 %v653
        %810 = vmatpush1.msra.mxu0 %v652
        %811 = vmatprep.subr.mxu0 %v655
        %812 = vmatpush1.msra.mxu0 %v654
        %813 = vmatprep.subr.mxu0 %v657
        %814 = vmatpush1.msra.mxu0 %v656
        %815 = vmatprep.subr.mxu0 %v659
        %816 = vmatpush1.msra.mxu0 %v658
        %817 = vmatprep.subr.mxu0 %v661
        %818 = vmatpush1.msra.mxu0 %v660
        %819 = vmatprep.subr.mxu0 %v663
        %820 = vmatpush1.msra.mxu0 %v662
        %821 = vmatprep.subr.mxu0 %v665
        %822 = vmatpush1.msra.mxu0 %v664
        %823 = vmatprep.subr.mxu0 %v667
        %824 = vmatpush1.msra.mxu0 %v666
        %825 = vmatprep.subr.mxu0 %v669
        %826 = vmatpush1.msra.mxu0 %v668
        %827 = vmatprep.subr.mxu0 %v671
        %828 = vmatpush1.msra.mxu0 %v670
        %829 = vmatprep.mubr.f32.mxu0 %v689
        %830 = vmatmul.mubr.f32.gmra.mrb[0].mxu0 %v687
        %v831 = vpop.f32.mrb[0].mxu0
        %v832 = vadd.f32 %v761, %v831
        %v833 = vpop.f32.mrb[0].mxu0
        %v834 = vadd.f32 %v763, %v833
        %835 = vdwg.mxu0
        %v838 = vcombine.low %v832, %v834
        %v840 = vunpack.c.l.s4 1983009808
        %v841 = vunpack.c.0.s8 %v840
        %v842 = vlaneseq
        %v843 = vshrl.u32 %v842, 7
        %v844 = vsub.s32 %v841, %v843
        %v845 = vrot.slane %v838, %v844
        %v847 = vadd.f32 %v542, %v845
        %848 = vst [vmem:[#allocation2] sm:$0xf] %v847
        %p849 = scmp.eq.s32.totalorder %s21, 7
        // Predicated region
        $region60: #{context_encoding_forward.8} parent=50 // pred_check
          %p850 = pneg %p849
        $region61: #{context_encoding_forward.8} parent=50 // pred_check_branch
          %852 = sbr.rel (%p850) target = $region63
        $region62: #{context_encoding_forward.8} parent=50 // pred_region
          %v853 = vld [vmem:[#allocation2] sm:$0xf]
          %v854 = vld [vmem:[%s525] sm:$0x3]
          %v856 = vlaneseq
          %v857 = vshrl.u32 %v856, 7
          %v858 = vsub.s32 0, %v857
          %v859 = vrot.slane %v854, %v858
          %v860 = vlaneseq
          %v861 = vshrl.u32 %v860, 7
          %v862 = vsub.s32 1, %v861
          %v863 = vrot.slane %v854, %v862
          %v864 = vcombine.low %v859, %v863
          %v866 = vunpack.c.l.s4 1983009808
          %v867 = vunpack.c.0.s8 %v866
          %v868 = vlaneseq
          %v869 = vshrl.u32 %v868, 7
          %v870 = vsub.s32 %v867, %v869
          %v871 = vrot.slane %v864, %v870
          %v873 = vadd.f32 %v853, %v871
          %v874 = vmax.f32 %v873, 0.0
          %875 = vst [vmem:[%s535] sm:$0xf] %v874
        $region63: #{context_encoding_forward.8} parent=50 // pred_fallthru
          _
        %s876 = smul.u32 2, %s20
        %p877 = scmp.lt.s32.totalorder %s19, 0
        %s878 = scalar_select %p877, %s19, 0
        %p879 = scmp.lt.s32.totalorder %s876, 3
        %s880 = scalar_select %p879, %s876, 3
        %s881 = smul.addr %s878, 4
        %s882 = sadd.s32 %s880, %s881
        %s883 = smul.addr %s882, 2
        %s884 = scalar_lea.vmem %s3, %s883
        // Predicated region
        $region64: #{context_encoding_forward.8} parent=50 // pred_check
          %p885 = pneg %p135
        $region65: #{context_encoding_forward.8} parent=50 // pred_check_branch
          %887 = sbr.rel (%p885) target = $region67
        $region66: #{context_encoding_forward.8} parent=50 // pred_region
          %s888 = smul.u32 2, %s20
        $region67: #{context_encoding_forward.8} parent=50 // pred_fallthru
          _
      $region51: #{context_encoding_forward.8} parent=5 // pred_fallthru
        _
      %p889 = scmp.le.s32.totalorder 2, %s9
      // Predicated region
      $region68: #{context_encoding_forward.8} parent=5 // pred_check
        %p890 = pneg %p889
      $region69: #{context_encoding_forward.8} parent=5 // pred_check_branch
        %892 = sbr.rel (%p890) target = $region71
      $region70: #{context_encoding_forward.8} parent=5 // pred_region
        %s893 = ssub.s32 %s9, 2
        // Predicated region
        $region72: #{context_encoding_forward.8} parent=70 // pred_check
          %p894 = pneg %p141
        $region73: #{context_encoding_forward.8} parent=70 // pred_check_branch
          %896 = sbr.rel (%p894) target = $region75
        $region74: #{context_encoding_forward.8} parent=70 // pred_region
          %s897 = smul.u32 2, %s23
          %p898 = scmp.lt.s32.totalorder %s22, 0
          %s899 = scalar_select %p898, %s22, 0
          %p900 = scmp.lt.s32.totalorder %s897, 3
          %s901 = scalar_select %p900, %s897, 3
          %s902 = smul.addr %s899, 4
          %s903 = sadd.s32 %s901, %s902
          %s904 = smul.addr %s903, 2
          %s905 = scalar_lea.vmem %s3, %s904
        $region75: #{context_encoding_forward.8} parent=70 // pred_fallthru
          _
      $region71: #{context_encoding_forward.8} parent=5 // pred_fallthru
        _
    $region6: #{context_encoding_forward.8} parent=1 // loop_footer
      %s13 = sadd.s32 1, %s9
    $region7: #{context_encoding_forward.8} parent=1 // loop_footer_branch
      %8 = sbr.rel target = $region3
    $region8: #{context_encoding_forward.8} parent=1 // loop_exit
      _

// kernel: context_encoding_forward.9
$region0: #{context_encoding_forward.9}
  #allocation0 [shape = 'u32[]', space=smem, size = 0x4, offset = 0x4, fixed_abs, tag = 'smem constant byte address 0x4 - core index']
  #allocation1 [shape = 'u32[144,128]{1,0:T(1,128)}', space=vmem, size = 0x12000, scoped, tag = 'internal scratch']
  #allocation2 [shape = 'f32[2,128]{1,0:T(2,128)}', space=vmem, size = 0x400, scoped, tag = 'scratch operand']
  %s0 = inlined_call_operand.vmem [shape: f32[2,512], index: 0, kind: input, shape index: {}]
  %s1 = inlined_call_operand.vmem [shape: f32[512,128], index: 1, kind: input, shape index: {}]
  %s2 = inlined_call_operand.vmem [shape: f32[1,128], index: 2, kind: input, shape index: {}]
  %s3 = inlined_call_operand.vmem [shape: f32[2,128], index: 3, kind: output, shape index: {}]
  %s4 = sld [smem:[#allocation0]]
  $region30: #{context_encoding_forward.9} parent=0
    _
  %s6 = ssub.s32 1, %s4
  %s7 = scalar_select 0, %s6, %s4
  // Predicated region
  $region2: #{context_encoding_forward.9} parent=0 // pred_check
    _
  $region3: #{context_encoding_forward.9} parent=0 // pred_check_branch
    %9 = sbr.rel (0) target = $region5
  $region4: #{context_encoding_forward.9} parent=0 // pred_region
    _
  $region5: #{context_encoding_forward.9} parent=0 // pred_fallthru
    _
  // Predicated region
  $region6: #{context_encoding_forward.9} parent=0 // pred_check
    _
  $region7: #{context_encoding_forward.9} parent=0 // pred_check_branch
    %11 = sbr.rel (0) target = $region9
  $region8: #{context_encoding_forward.9} parent=0 // pred_region
    _
  $region9: #{context_encoding_forward.9} parent=0 // pred_fallthru
    _
  // Predicated region
  $region10: #{context_encoding_forward.9} parent=0 // pred_check
    _
  $region11: #{context_encoding_forward.9} parent=0 // pred_check_branch
    %13 = sbr.rel (0) target = $region13
  $region12: #{context_encoding_forward.9} parent=0 // pred_region
    _
  $region13: #{context_encoding_forward.9} parent=0 // pred_fallthru
    _
  %p14 = scmp.eq.s32.totalorder 0, 0
  // Predicated region
  $region14: #{context_encoding_forward.9} parent=0 // pred_check
    %p15 = pneg %p14
  $region15: #{context_encoding_forward.9} parent=0 // pred_check_branch
    %17 = sbr.rel (%p15) target = $region17
  $region16: #{context_encoding_forward.9} parent=0 // pred_region
    %18 = vst [vmem:[#allocation2] sm:$0x3] 0.0
  $region17: #{context_encoding_forward.9} parent=0 // pred_fallthru
    _
  %v19 = vld [vmem:[#allocation2] sm:$0x3]
  %v20 = vld [vmem:[%s0] sm:$0xff]
  %v21 = vld [vmem:[%s1] sm:$0xff]
  %v22 = vld [vmem:[%s1 + $0x8] sm:$0xff]
  %v23 = vld [vmem:[%s1 + $0x10] sm:$0xff]
  %v24 = vld [vmem:[%s1 + $0x18] sm:$0xff]
  %v25 = vld [vmem:[%s1 + $0x20] sm:$0xff]
  %v26 = vld [vmem:[%s1 + $0x28] sm:$0xff]
  %v27 = vld [vmem:[%s1 + $0x30] sm:$0xff]
  %v28 = vld [vmem:[%s1 + $0x38] sm:$0xff]
  %v29 = vld [vmem:[%s1 + $0x40] sm:$0xff]
  %v30 = vld [vmem:[%s1 + $0x48] sm:$0xff]
  %v31 = vld [vmem:[%s1 + $0x50] sm:$0xff]
  %v32 = vld [vmem:[%s1 + $0x58] sm:$0xff]
  %v33 = vld [vmem:[%s1 + $0x60] sm:$0xff]
  %v34 = vld [vmem:[%s1 + $0x68] sm:$0xff]
  %v35 = vld [vmem:[%s1 + $0x70] sm:$0xff]
  %v36 = vld [vmem:[%s1 + $0x78] sm:$0xff]
  %v37 = vld [vmem:[%s1 + $0x80] sm:$0xff]
  %v38 = vld [vmem:[%s1 + $0x88] sm:$0xff]
  %v39 = vld [vmem:[%s1 + $0x90] sm:$0xff]
  %v40 = vld [vmem:[%s1 + $0x98] sm:$0xff]
  %v41 = vld [vmem:[%s1 + $0xa0] sm:$0xff]
  %v42 = vld [vmem:[%s1 + $0xa8] sm:$0xff]
  %v43 = vld [vmem:[%s1 + $0xb0] sm:$0xff]
  %v44 = vld [vmem:[%s1 + $0xb8] sm:$0xff]
  %v45 = vld [vmem:[%s1 + $0xc0] sm:$0xff]
  %v46 = vld [vmem:[%s1 + $0xc8] sm:$0xff]
  %v47 = vld [vmem:[%s1 + $0xd0] sm:$0xff]
  %v48 = vld [vmem:[%s1 + $0xd8] sm:$0xff]
  %v49 = vld [vmem:[%s1 + $0xe0] sm:$0xff]
  %v50 = vld [vmem:[%s1 + $0xe8] sm:$0xff]
  %v51 = vld [vmem:[%s1 + $0xf0] sm:$0xff]
  %v52 = vld [vmem:[%s1 + $0xf8] sm:$0xff]
  %v53 = vld [vmem:[%s1 + $0x100] sm:$0xff]
  %v54 = vld [vmem:[%s1 + $0x108] sm:$0xff]
  %v55 = vld [vmem:[%s1 + $0x110] sm:$0xff]
  %v56 = vld [vmem:[%s1 + $0x118] sm:$0xff]
  %v57 = vld [vmem:[%s1 + $0x120] sm:$0xff]
  %v58 = vld [vmem:[%s1 + $0x128] sm:$0xff]
  %v59 = vld [vmem:[%s1 + $0x130] sm:$0xff]
  %v60 = vld [vmem:[%s1 + $0x138] sm:$0xff]
  %v61 = vld [vmem:[%s1 + $0x140] sm:$0xff]
  %v62 = vld [vmem:[%s1 + $0x148] sm:$0xff]
  %v63 = vld [vmem:[%s1 + $0x150] sm:$0xff]
  %v64 = vld [vmem:[%s1 + $0x158] sm:$0xff]
  %v65 = vld [vmem:[%s1 + $0x160] sm:$0xff]
  %v66 = vld [vmem:[%s1 + $0x168] sm:$0xff]
  %v67 = vld [vmem:[%s1 + $0x170] sm:$0xff]
  %v68 = vld [vmem:[%s1 + $0x178] sm:$0xff]
  %v69 = vld [vmem:[%s1 + $0x180] sm:$0xff]
  %v70 = vld [vmem:[%s1 + $0x188] sm:$0xff]
  %v71 = vld [vmem:[%s1 + $0x190] sm:$0xff]
  %v72 = vld [vmem:[%s1 + $0x198] sm:$0xff]
  %v73 = vld [vmem:[%s1 + $0x1a0] sm:$0xff]
  %v74 = vld [vmem:[%s1 + $0x1a8] sm:$0xff]
  %v75 = vld [vmem:[%s1 + $0x1b0] sm:$0xff]
  %v76 = vld [vmem:[%s1 + $0x1b8] sm:$0xff]
  %v77 = vld [vmem:[%s1 + $0x1c0] sm:$0xff]
  %v78 = vld [vmem:[%s1 + $0x1c8] sm:$0xff]
  %v79 = vld [vmem:[%s1 + $0x1d0] sm:$0xff]
  %v80 = vld [vmem:[%s1 + $0x1d8] sm:$0xff]
  %v81 = vld [vmem:[%s1 + $0x1e0] sm:$0xff]
  %v82 = vld [vmem:[%s1 + $0x1e8] sm:$0xff]
  %v83 = vld [vmem:[%s1 + $0x1f0] sm:$0xff]
  %v84 = vld [vmem:[%s1 + $0x1f8] sm:$0xff]
  %v86 = vcombine.high %v20, %v20
  %v88 = vunpack.c.l.s4 1983009808
  %v89 = vunpack.c.0.s8 %v88
  %v90 = vlaneseq
  %v91 = vshrl.u32 %v90, 7
  %v92 = vsub.s32 %v89, %v91
  %v93 = vrot.slane %v20, %v92
  %v95 = vunpack.c.l.s4 1983009808
  %v96 = vunpack.c.0.s8 %v95
  %v97 = vlaneseq
  %v98 = vshrl.u32 %v97, 7
  %v99 = vsub.s32 %v96, %v98
  %v100 = vrot.slane %v86, %v99
  %v101 = vcombine.high %v93, %v93
  %v102 = vcombine.high %v100, %v100
  %107 = vmatprep.subr.mxu0 0.0
  %108 = vmatpush1.msra.mxu0 %v21
  %109 = vmatprep.subr.mxu0 0.0
  %110 = vmatpush1.msra.mxu0 %v22
  %111 = vmatprep.subr.mxu0 0.0
  %112 = vmatpush1.msra.mxu0 %v23
  %113 = vmatprep.subr.mxu0 0.0
  %114 = vmatpush1.msra.mxu0 %v24
  %115 = vmatprep.subr.mxu0 0.0
  %116 = vmatpush1.msra.mxu0 %v25
  %117 = vmatprep.subr.mxu0 0.0
  %118 = vmatpush1.msra.mxu0 %v26
  %119 = vmatprep.subr.mxu0 0.0
  %120 = vmatpush1.msra.mxu0 %v27
  %121 = vmatprep.subr.mxu0 0.0
  %122 = vmatpush1.msra.mxu0 %v28
  %123 = vmatprep.subr.mxu0 0.0
  %124 = vmatpush1.msra.mxu0 %v29
  %125 = vmatprep.subr.mxu0 0.0
  %126 = vmatpush1.msra.mxu0 %v30
  %127 = vmatprep.subr.mxu0 0.0
  %128 = vmatpush1.msra.mxu0 %v31
  %129 = vmatprep.subr.mxu0 0.0
  %130 = vmatpush1.msra.mxu0 %v32
  %131 = vmatprep.subr.mxu0 0.0
  %132 = vmatpush1.msra.mxu0 %v33
  %133 = vmatprep.subr.mxu0 0.0
  %134 = vmatpush1.msra.mxu0 %v34
  %135 = vmatprep.subr.mxu0 0.0
  %136 = vmatpush1.msra.mxu0 %v35
  %137 = vmatprep.subr.mxu0 0.0
  %138 = vmatpush1.msra.mxu0 %v36
  %139 = vmatprep.subr.mxu0 0.0
  %140 = vmatpush1.msra.mxu0 %v37
  %141 = vmatprep.subr.mxu0 0.0
  %142 = vmatpush1.msra.mxu0 %v38
  %143 = vmatprep.subr.mxu0 0.0
  %144 = vmatpush1.msra.mxu0 %v39
  %145 = vmatprep.subr.mxu0 0.0
  %146 = vmatpush1.msra.mxu0 %v40
  %147 = vmatprep.subr.mxu0 0.0
  %148 = vmatpush1.msra.mxu0 %v41
  %149 = vmatprep.subr.mxu0 0.0
  %150 = vmatpush1.msra.mxu0 %v42
  %151 = vmatprep.subr.mxu0 0.0
  %152 = vmatpush1.msra.mxu0 %v43
  %153 = vmatprep.subr.mxu0 0.0
  %154 = vmatpush1.msra.mxu0 %v44
  %155 = vmatprep.subr.mxu0 0.0
  %156 = vmatpush1.msra.mxu0 %v45
  %157 = vmatprep.subr.mxu0 0.0
  %158 = vmatpush1.msra.mxu0 %v46
  %159 = vmatprep.subr.mxu0 0.0
  %160 = vmatpush1.msra.mxu0 %v47
  %161 = vmatprep.subr.mxu0 0.0
  %162 = vmatpush1.msra.mxu0 %v48
  %163 = vmatprep.subr.mxu0 0.0
  %164 = vmatpush1.msra.mxu0 %v49
  %165 = vmatprep.subr.mxu0 0.0
  %166 = vmatpush1.msra.mxu0 %v50
  %167 = vmatprep.subr.mxu0 0.0
  %168 = vmatpush1.msra.mxu0 %v51
  %169 = vmatprep.subr.mxu0 0.0
  %170 = vmatpush1.msra.mxu0 %v52
  %171 = vmatprep.mubr.f32.mxu0 %v101
  %172 = vmatmul.mubr.f32.gmra.mrb[0].mxu0 %v93
  %v173 = vpop.f32.mrb[0].mxu0
  %v174 = vadd.f32 0.0, %v173
  %v175 = vpop.f32.mrb[0].mxu0
  %176 = vdwg.mxu0
  %177 = vmatprep.subr.mxu0 0.0
  %178 = vmatpush1.msra.mxu0 %v53
  %179 = vmatprep.subr.mxu0 0.0
  %180 = vmatpush1.msra.mxu0 %v54
  %181 = vmatprep.subr.mxu0 0.0
  %182 = vmatpush1.msra.mxu0 %v55
  %183 = vmatprep.subr.mxu0 0.0
  %184 = vmatpush1.msra.mxu0 %v56
  %185 = vmatprep.subr.mxu0 0.0
  %186 = vmatpush1.msra.mxu0 %v57
  %187 = vmatprep.subr.mxu0 0.0
  %188 = vmatpush1.msra.mxu0 %v58
  %189 = vmatprep.subr.mxu0 0.0
  %190 = vmatpush1.msra.mxu0 %v59
  %191 = vmatprep.subr.mxu0 0.0
  %192 = vmatpush1.msra.mxu0 %v60
  %193 = vmatprep.subr.mxu0 0.0
  %194 = vmatpush1.msra.mxu0 %v61
  %195 = vmatprep.subr.mxu0 0.0
  %196 = vmatpush1.msra.mxu0 %v62
  %197 = vmatprep.subr.mxu0 0.0
  %198 = vmatpush1.msra.mxu0 %v63
  %199 = vmatprep.subr.mxu0 0.0
  %200 = vmatpush1.msra.mxu0 %v64
  %201 = vmatprep.subr.mxu0 0.0
  %202 = vmatpush1.msra.mxu0 %v65
  %203 = vmatprep.subr.mxu0 0.0
  %204 = vmatpush1.msra.mxu0 %v66
  %205 = vmatprep.subr.mxu0 0.0
  %206 = vmatpush1.msra.mxu0 %v67
  %207 = vmatprep.subr.mxu0 0.0
  %208 = vmatpush1.msra.mxu0 %v68
  %209 = vmatprep.subr.mxu0 0.0
  %210 = vmatpush1.msra.mxu0 %v69
  %211 = vmatprep.subr.mxu0 0.0
  %212 = vmatpush1.msra.mxu0 %v70
  %213 = vmatprep.subr.mxu0 0.0
  %214 = vmatpush1.msra.mxu0 %v71
  %215 = vmatprep.subr.mxu0 0.0
  %216 = vmatpush1.msra.mxu0 %v72
  %217 = vmatprep.subr.mxu0 0.0
  %218 = vmatpush1.msra.mxu0 %v73
  %219 = vmatprep.subr.mxu0 0.0
  %220 = vmatpush1.msra.mxu0 %v74
  %221 = vmatprep.subr.mxu0 0.0
  %222 = vmatpush1.msra.mxu0 %v75
  %223 = vmatprep.subr.mxu0 0.0
  %224 = vmatpush1.msra.mxu0 %v76
  %225 = vmatprep.subr.mxu0 0.0
  %226 = vmatpush1.msra.mxu0 %v77
  %227 = vmatprep.subr.mxu0 0.0
  %228 = vmatpush1.msra.mxu0 %v78
  %229 = vmatprep.subr.mxu0 0.0
  %230 = vmatpush1.msra.mxu0 %v79
  %231 = vmatprep.subr.mxu0 0.0
  %232 = vmatpush1.msra.mxu0 %v80
  %233 = vmatprep.subr.mxu0 0.0
  %234 = vmatpush1.msra.mxu0 %v81
  %235 = vmatprep.subr.mxu0 0.0
  %236 = vmatpush1.msra.mxu0 %v82
  %237 = vmatprep.subr.mxu0 0.0
  %238 = vmatpush1.msra.mxu0 %v83
  %239 = vmatprep.subr.mxu0 0.0
  %240 = vmatpush1.msra.mxu0 %v84
  %241 = vmatprep.mubr.f32.mxu0 %v102
  %242 = vmatmul.mubr.f32.gmra.mrb[0].mxu0 %v100
  %v243 = vpop.f32.mrb[0].mxu0
  %v244 = vadd.f32 %v174, %v243
  %v245 = vpop.f32.mrb[0].mxu0
  %246 = vdwg.mxu0
  %v247 = vadd.f32 %v19, %v244
  %248 = vst [vmem:[#allocation2] sm:$0x3] %v247
  // Predicated region
  $region18: #{context_encoding_forward.9} parent=0 // pred_check
    %p249 = pneg %p14
  $region19: #{context_encoding_forward.9} parent=0 // pred_check_branch
    %251 = sbr.rel (%p249) target = $region21
  $region20: #{context_encoding_forward.9} parent=0 // pred_region
    %v252 = vld [vmem:[#allocation2] sm:$0x3]
    %v253 = vld [vmem:[%s2] sm:$0x1]
    %v255 = vlaneseq
    %v256 = vshrl.u32 %v255, 7
    %v257 = vsub.s32 0, %v256
    %v258 = vrot.slane %v253, %v257
    %v260 = vadd.f32 %v252, %v258
    %v261 = vsub.f32 0.0, %v260
    %v262 = vmul.f32 %v261, 1.442695
    %v263 = vpow.pop %v262
    %v264 = vadd.f32 %v263, 1.0
    %v265 = vrcp.pop %v264
    %v266 = vmul.f32 1.0, %v265
    %267 = vst [vmem:[%s3] sm:$0x3] %v266
  $region21: #{context_encoding_forward.9} parent=0 // pred_fallthru
    _
  // Predicated region
  $region22: #{context_encoding_forward.9} parent=0 // pred_check
    _
  $region23: #{context_encoding_forward.9} parent=0 // pred_check_branch
    %269 = sbr.rel (0) target = $region25
  $region24: #{context_encoding_forward.9} parent=0 // pred_region
    _
  $region25: #{context_encoding_forward.9} parent=0 // pred_fallthru
    _
  // Predicated region
  $region26: #{context_encoding_forward.9} parent=0 // pred_check
    _
  $region27: #{context_encoding_forward.9} parent=0 // pred_check_branch
    %271 = sbr.rel (0) target = $region29
  $region28: #{context_encoding_forward.9} parent=0 // pred_region
    _
  $region29: #{context_encoding_forward.9} parent=0 // pred_fallthru
    _

</llo_original>
